<compile_context>
chip_gen: v6e
topology: v6e:2x2x1
jax: 0.10.0
libtpu: 0.0.40
codegen_flags: <defaults>
</compile_context>

<pallas_src>
import jax
import jax.numpy as jnp
from jax.experimental import pallas as pl
from jax.experimental.pallas import tpu as pltpu


# ------------------------- Pallas kernel -------------------------------------

def qsar_mlp_kernel(x_ref,
                    w1_ref, b1_ref,
                    w2_ref, b2_ref,
                    w3_ref, b3_ref,
                    w4_ref, b4_ref,
                    out_ref):
    """Fused 4-layer MLP on one batch tile (all weights resident in VMEM).

    x / weights are bf16, accumulation and biases are f32.
    """
    x = x_ref[...]

    h = jnp.dot(x, w1_ref[...], preferred_element_type=jnp.float32) + b1_ref[...]
    h = jnp.maximum(h, 0.0).astype(jnp.bfloat16)

    h = jnp.dot(h, w2_ref[...], preferred_element_type=jnp.float32) + b2_ref[...]
    h = jnp.maximum(h, 0.0).astype(jnp.bfloat16)

    h = jnp.dot(h, w3_ref[...], preferred_element_type=jnp.float32) + b3_ref[...]
    h = jnp.maximum(h, 0.0).astype(jnp.bfloat16)

    logits = jnp.dot(h, w4_ref[...], preferred_element_type=jnp.float32) + b4_ref[...]
    # sigmoid: exp goes to the EUP slot, approx reciprocal too (VPU stays free).
    out_ref[...] = (pl.reciprocal(1.0 + jnp.exp(-logits), approx=True)
                    ).astype(out_ref.dtype)


# ------------------------- host-side parameter prep --------------------------

def _pad_to(n, m):
    return ((n + m - 1) // m) * m


def prepare_params(params):
    """One-time padding + bf16 cast of the weights (hoisted out of forward)."""
    (w1, b1), (w2, b2), (w3, b3), (w4, b4) = params

    d_in = w1.shape[0]                                     # 2048 (already 128-aligned)
    dims = [w1.shape[1], w2.shape[1], w3.shape[1], w4.shape[1]]   # 524, 10, 10, 2
    # Wide hidden layer padded to a 256 multiple (MXU tile on v6e/v7x), tiny
    # layers padded to the 128-lane minimum.
    dims_p = [_pad_to(d, 256) if d > 128 else _pad_to(d, 128) for d in dims]  # 768,128,128,128

    def pad_w(w, in_p, out_p):
        wp = jnp.pad(w, ((0, in_p - w.shape[0]), (0, out_p - w.shape[1])))
        return wp.astype(jnp.bfloat16)

    def pad_b(b, out_p):
        return jnp.pad(b, (0, out_p - b.shape[0])).reshape(1, out_p).astype(jnp.float32)

    packed = (
        pad_w(w1, d_in,      dims_p[0]), pad_b(b1, dims_p[0]),
        pad_w(w2, dims_p[0], dims_p[1]), pad_b(b2, dims_p[1]),
        pad_w(w3, dims_p[1], dims_p[2]), pad_b(b3, dims_p[2]),
        pad_w(w4, dims_p[2], dims_p[3]), pad_b(b4, dims_p[3]),
    )
    return packed, dims, dims_p, d_in


# ------------------------- forward wrapper -----------------------------------

def qsar_mlp_forward(x, prepped, *, batch_tile=256):
    """Runs the fused MLP kernel. x: [B, 2048] float32. Returns [B, 2] float32."""
    packed, dims, dims_p, d_in = prepped
    w1p, b1p, w2p, b2p, w3p, b3p, w4p, b4p = packed

    b = x.shape[0]
    # Tile of up to `batch_tile` rows (multiple of 8); clamp for small batches.
    tile = min(batch_tile, _pad_to(b, 8))
    b_pad = _pad_to(b, tile)
    x_p = jnp.pad(x.astype(jnp.bfloat16), ((0, b_pad - b), (0, 0)))

    grid = (b_pad // tile,)

    full = lambda shape: pl.BlockSpec(shape, lambda i: (0, 0))

    out_p = pl.pallas_call(
        qsar_mlp_kernel,
        out_shape=jax.ShapeDtypeStruct((b_pad, dims_p[3]), jnp.float32),
        grid_spec=pltpu.PrefetchScalarGridSpec(
            num_scalar_prefetch=0,
            grid=grid,
            in_specs=[
                pl.BlockSpec((tile, d_in), lambda i: (i, 0)),   # x tile
                full(w1p.shape), full(b1p.shape),
                full(w2p.shape), full(b2p.shape),
                full(w3p.shape), full(b3p.shape),
                full(w4p.shape), full(b4p.shape),
            ],
            out_specs=pl.BlockSpec((tile, dims_p[3]), lambda i: (i, 0)),
        ),
        compiler_params=pltpu.CompilerParams(
            # Batch axis is fully independent -> let v7x shard it across its
            # two TensorCores (weights are replicated in each TC's VMEM).
            dimension_semantics=("parallel",),
            vmem_limit_bytes=32 << 20,
        ),
    )(x_p, w1p, b1p, w2p, b2p, w3p, b3p, w4p, b4p)

    return out_p[:b, :dims[3]]


# ------------------------- deterministic params & reference ------------------

def init_params(key):
    """PyTorch-style U(-1/sqrt(fan_in), 1/sqrt(fan_in)) init; weights as [in, out]."""
    sizes = [(2048, 524), (524, 10), (10, 10), (10, 2)]
    params = []
    for (fan_in, fan_out) in sizes:
        key, kw, kb = jax.random.split(key, 3)
        bound = 1.0 / (fan_in ** 0.5)
        w = jax.random.uniform(kw, (fan_in, fan_out), jnp.float32, -bound, bound)
        b = jax.random.uniform(kb, (fan_out,), jnp.float32, -bound, bound)
        params.append((w, b))
    return params


def reference_forward(x, params):
    (w1, b1), (w2, b2), (w3, b3), (w4, b4) = params
    h1 = jax.nn.relu(x @ w1 + b1)
    h2 = jax.nn.relu(h1 @ w2 + b2)
    h3 = jax.nn.relu(h2 @ w3 + b3)
    return jax.nn.sigmoid(h3 @ w4 + b4)


# ------------------------- main ----------------------------------------------

if __name__ == "__main__":
    key = jax.random.PRNGKey(0)
    key, kx = jax.random.split(key)

    batch = 4
    x = jax.random.normal(kx, (batch, 2048), jnp.float32)
    params = init_params(key)
    prepped = prepare_params(params)      # one-time pad + bf16 cast

    out = qsar_mlp_forward(x, prepped)
    out = jax.block_until_ready(out)

    ref = reference_forward(x, params)    # f32 reference
    assert out.shape == (batch, 2), out.shape
    # bf16 weights/activations + approx reciprocal -> loosened tolerance.
    max_err = float(jnp.max(jnp.abs(out - ref)))
    assert jnp.allclose(out, ref, atol=2e-2, rtol=0.0), max_err

    print("KERNEL_OK")
</pallas_src>

<mosaic_0001>
module attributes {stable_mosaic.version = 11 : i64} {
  func.func @qsar_mlp_kernel(%arg0: i32, %arg1: memref<8x2048xbf16, #tpu.memory_space<vmem>>, %arg2: memref<2048x768xbf16, #tpu.memory_space<vmem>>, %arg3: memref<1x768xf32, #tpu.memory_space<vmem>>, %arg4: memref<768x128xbf16, #tpu.memory_space<vmem>>, %arg5: memref<1x128xf32, #tpu.memory_space<vmem>>, %arg6: memref<128x128xbf16, #tpu.memory_space<vmem>>, %arg7: memref<1x128xf32, #tpu.memory_space<vmem>>, %arg8: memref<128x128xbf16, #tpu.memory_space<vmem>>, %arg9: memref<1x128xf32, #tpu.memory_space<vmem>>, %arg10: memref<8x128xf32, #tpu.memory_space<vmem>>) attributes {dimension_semantics = [#tpu.dimension_semantics<parallel>], iteration_bounds = array<i64: 1>, scalar_prefetch = 0 : i64, scratch_operands = 0 : i64, tpu.core_type = #tpu.core_type<tc>, window_params = [{transform_indices = @transform_0, window_bounds = array<i64: 8, 2048>}, {pipeline_mode = #tpu.pipeline_mode<synchronous>, transform_indices = @transform_1, window_bounds = array<i64: 2048, 768>}, {pipeline_mode = #tpu.pipeline_mode<synchronous>, transform_indices = @transform_2, window_bounds = array<i64: 1, 768>}, {pipeline_mode = #tpu.pipeline_mode<synchronous>, transform_indices = @transform_3, window_bounds = array<i64: 768, 128>}, {pipeline_mode = #tpu.pipeline_mode<synchronous>, transform_indices = @transform_4, window_bounds = array<i64: 1, 128>}, {pipeline_mode = #tpu.pipeline_mode<synchronous>, transform_indices = @transform_5, window_bounds = array<i64: 128, 128>}, {pipeline_mode = #tpu.pipeline_mode<synchronous>, transform_indices = @transform_6, window_bounds = array<i64: 1, 128>}, {pipeline_mode = #tpu.pipeline_mode<synchronous>, transform_indices = @transform_7, window_bounds = array<i64: 128, 128>}, {pipeline_mode = #tpu.pipeline_mode<synchronous>, transform_indices = @transform_8, window_bounds = array<i64: 1, 128>}, {transform_indices = @transform_9, window_bounds = array<i64: 8, 128>}]} {
    %c0 = arith.constant 0 : index
    %c0_0 = arith.constant 0 : index
    %0 = vector.load %arg1[%c0, %c0_0] : memref<8x2048xbf16, #tpu.memory_space<vmem>>, vector<8x2048xbf16>
    %c0_1 = arith.constant 0 : index
    %c0_2 = arith.constant 0 : index
    %1 = vector.load %arg2[%c0_1, %c0_2] : memref<2048x768xbf16, #tpu.memory_space<vmem>>, vector<2048x768xbf16>
    %cst = arith.constant dense<0.000000e+00> : vector<8x768xf32>
    %2 = tpu.matmul %0, %1, %cst {dimension_numbers = #tpu.dot_dimension_numbers<[1], [0], [0], [1], [0, 0, 1, 1], [], []>} : vector<8x2048xbf16>, vector<2048x768xbf16>, vector<8x768xf32> -> vector<8x768xf32>
    %c0_3 = arith.constant 0 : index
    %c0_4 = arith.constant 0 : index
    %3 = vector.load %arg3[%c0_3, %c0_4] : memref<1x768xf32, #tpu.memory_space<vmem>>, vector<1x768xf32>
    %4 = vector.broadcast %3 : vector<1x768xf32> to vector<8x768xf32>
    %5 = arith.addf %2, %4 : vector<8x768xf32>
    %cst_5 = arith.constant 0.000000e+00 : f32
    %6 = vector.broadcast %cst_5 : f32 to vector<8x768xf32>
    %7 = arith.maximumf %5, %6 : vector<8x768xf32>
    %8 = arith.truncf %7 : vector<8x768xf32> to vector<8x768xbf16>
    %c0_6 = arith.constant 0 : index
    %c0_7 = arith.constant 0 : index
    %9 = vector.load %arg4[%c0_6, %c0_7] : memref<768x128xbf16, #tpu.memory_space<vmem>>, vector<768x128xbf16>
    %cst_8 = arith.constant dense<0.000000e+00> : vector<8x128xf32>
    %10 = tpu.matmul %8, %9, %cst_8 {dimension_numbers = #tpu.dot_dimension_numbers<[1], [0], [0], [1], [0, 0, 1, 1], [], []>} : vector<8x768xbf16>, vector<768x128xbf16>, vector<8x128xf32> -> vector<8x128xf32>
    %c0_9 = arith.constant 0 : index
    %c0_10 = arith.constant 0 : index
    %11 = vector.load %arg5[%c0_9, %c0_10] : memref<1x128xf32, #tpu.memory_space<vmem>>, vector<1x128xf32>
    %12 = vector.broadcast %11 : vector<1x128xf32> to vector<8x128xf32>
    %13 = arith.addf %10, %12 : vector<8x128xf32>
    %cst_11 = arith.constant 0.000000e+00 : f32
    %14 = vector.broadcast %cst_11 : f32 to vector<8x128xf32>
    %15 = arith.maximumf %13, %14 : vector<8x128xf32>
    %16 = arith.truncf %15 : vector<8x128xf32> to vector<8x128xbf16>
    %c0_12 = arith.constant 0 : index
    %c0_13 = arith.constant 0 : index
    %17 = vector.load %arg6[%c0_12, %c0_13] : memref<128x128xbf16, #tpu.memory_space<vmem>>, vector<128x128xbf16>
    %cst_14 = arith.constant dense<0.000000e+00> : vector<8x128xf32>
    %18 = tpu.matmul %16, %17, %cst_14 {dimension_numbers = #tpu.dot_dimension_numbers<[1], [0], [0], [1], [0, 0, 1, 1], [], []>} : vector<8x128xbf16>, vector<128x128xbf16>, vector<8x128xf32> -> vector<8x128xf32>
    %c0_15 = arith.constant 0 : index
    %c0_16 = arith.constant 0 : index
    %19 = vector.load %arg7[%c0_15, %c0_16] : memref<1x128xf32, #tpu.memory_space<vmem>>, vector<1x128xf32>
    %20 = vector.broadcast %19 : vector<1x128xf32> to vector<8x128xf32>
    %21 = arith.addf %18, %20 : vector<8x128xf32>
    %cst_17 = arith.constant 0.000000e+00 : f32
    %22 = vector.broadcast %cst_17 : f32 to vector<8x128xf32>
    %23 = arith.maximumf %21, %22 : vector<8x128xf32>
    %24 = arith.truncf %23 : vector<8x128xf32> to vector<8x128xbf16>
    %c0_18 = arith.constant 0 : index
    %c0_19 = arith.constant 0 : index
    %25 = vector.load %arg8[%c0_18, %c0_19] : memref<128x128xbf16, #tpu.memory_space<vmem>>, vector<128x128xbf16>
    %cst_20 = arith.constant dense<0.000000e+00> : vector<8x128xf32>
    %26 = tpu.matmul %24, %25, %cst_20 {dimension_numbers = #tpu.dot_dimension_numbers<[1], [0], [0], [1], [0, 0, 1, 1], [], []>} : vector<8x128xbf16>, vector<128x128xbf16>, vector<8x128xf32> -> vector<8x128xf32>
    %c0_21 = arith.constant 0 : index
    %c0_22 = arith.constant 0 : index
    %27 = vector.load %arg9[%c0_21, %c0_22] : memref<1x128xf32, #tpu.memory_space<vmem>>, vector<1x128xf32>
    %28 = vector.broadcast %27 : vector<1x128xf32> to vector<8x128xf32>
    %29 = arith.addf %26, %28 : vector<8x128xf32>
    %cst_23 = arith.constant 0.000000e+00 : f32
    %30 = vector.broadcast %cst_23 : f32 to vector<8x128xf32>
    %31 = arith.subf %30, %29 : vector<8x128xf32>
    %32 = math.exp %31 : vector<8x128xf32>
    %cst_24 = arith.constant 1.000000e+00 : f32
    %33 = vector.broadcast %cst_24 : f32 to vector<8x128xf32>
    %34 = arith.addf %33, %32 : vector<8x128xf32>
    %35 = tpu.reciprocal %34 {approx = true} : vector<8x128xf32> -> vector<8x128xf32>
    %c0_25 = arith.constant 0 : index
    %c0_26 = arith.constant 0 : index
    %36 = vector.load %arg10[%c0_25, %c0_26] : memref<8x128xf32, #tpu.memory_space<vmem>>, vector<8x128xf32>
    tpu.vector_store %arg10[%c0_25, %c0_26], %35 {strides = array<i32>} : memref<8x128xf32, #tpu.memory_space<vmem>>, vector<8x128xf32>,
    return
  }
  func.func @transform_0(%arg0: i32) -> (i32, i32) {
    %c0_i32 = arith.constant 0 : i32
    %c0_i32_0 = arith.constant 0 : i32
    return %arg0, %c0_i32 : i32, i32
  }
  func.func @transform_1(%arg0: i32) -> (i32, i32) {
    %c0_i32 = arith.constant 0 : i32
    %c0_i32_0 = arith.constant 0 : i32
    %c0_i32_1 = arith.constant 0 : i32
    return %c0_i32, %c0_i32_0 : i32, i32
  }
  func.func @transform_2(%arg0: i32) -> (i32, i32) {
    %c0_i32 = arith.constant 0 : i32
    %c0_i32_0 = arith.constant 0 : i32
    %c0_i32_1 = arith.constant 0 : i32
    return %c0_i32, %c0_i32_0 : i32, i32
  }
  func.func @transform_3(%arg0: i32) -> (i32, i32) {
    %c0_i32 = arith.constant 0 : i32
    %c0_i32_0 = arith.constant 0 : i32
    %c0_i32_1 = arith.constant 0 : i32
    return %c0_i32, %c0_i32_0 : i32, i32
  }
  func.func @transform_4(%arg0: i32) -> (i32, i32) {
    %c0_i32 = arith.constant 0 : i32
    %c0_i32_0 = arith.constant 0 : i32
    %c0_i32_1 = arith.constant 0 : i32
    return %c0_i32, %c0_i32_0 : i32, i32
  }
  func.func @transform_5(%arg0: i32) -> (i32, i32) {
    %c0_i32 = arith.constant 0 : i32
    %c0_i32_0 = arith.constant 0 : i32
    %c0_i32_1 = arith.constant 0 : i32
    return %c0_i32, %c0_i32_0 : i32, i32
  }
  func.func @transform_6(%arg0: i32) -> (i32, i32) {
    %c0_i32 = arith.constant 0 : i32
    %c0_i32_0 = arith.constant 0 : i32
    %c0_i32_1 = arith.constant 0 : i32
    return %c0_i32, %c0_i32_0 : i32, i32
  }
  func.func @transform_7(%arg0: i32) -> (i32, i32) {
    %c0_i32 = arith.constant 0 : i32
    %c0_i32_0 = arith.constant 0 : i32
    %c0_i32_1 = arith.constant 0 : i32
    return %c0_i32, %c0_i32_0 : i32, i32
  }
  func.func @transform_8(%arg0: i32) -> (i32, i32) {
    %c0_i32 = arith.constant 0 : i32
    %c0_i32_0 = arith.constant 0 : i32
    %c0_i32_1 = arith.constant 0 : i32
    return %c0_i32, %c0_i32_0 : i32, i32
  }
  func.func @transform_9(%arg0: i32) -> (i32, i32) {
    %c0_i32 = arith.constant 0 : i32
    %c0_i32_0 = arith.constant 0 : i32
    return %arg0, %c0_i32 : i32, i32
  }
}

</mosaic_0001>

<llo_original>
// kernel: tpu_custom_call.1
$region0: #{tpu_custom_call.1}
  #allocation0 [shape = 'u32[]', space=smem, size = 0x4, offset = 0x4, fixed_abs, tag = 'smem constant byte address 0x4 - core index']
  #allocation1 [shape = 'u32[144,128]{1,0:T(1,128)}', space=vmem, size = 0x12000, scoped, tag = 'internal scratch']
  %s0 = inlined_call_operand.hbm [shape: bf16[8,2048], index: 0, kind: input, shape index: {}]
  %s1 = inlined_call_operand.hbm [shape: bf16[2048,768], index: 1, kind: input, shape index: {}]
  %s2 = inlined_call_operand.hbm [shape: f32[1,768], index: 2, kind: input, shape index: {}]
  %s3 = inlined_call_operand.hbm [shape: bf16[768,128], index: 3, kind: input, shape index: {}]
  %s4 = inlined_call_operand.hbm [shape: f32[1,128], index: 4, kind: input, shape index: {}]
  %s5 = inlined_call_operand.hbm [shape: bf16[128,128], index: 5, kind: input, shape index: {}]
  %s6 = inlined_call_operand.hbm [shape: f32[1,128], index: 6, kind: input, shape index: {}]
  %s7 = inlined_call_operand.hbm [shape: bf16[128,128], index: 7, kind: input, shape index: {}]
  %s8 = inlined_call_operand.hbm [shape: f32[1,128], index: 8, kind: input, shape index: {}]
  %s9 = inlined_call_operand.hbm [shape: f32[8,128], index: 9, kind: output, shape index: {}]
  %s10 = sld [smem:[#allocation0]]
  $region82: #{tpu_custom_call.1} parent=0
    _
  %s12 = ssub.s32 1, %s10
  %s13 = scalar_select 0, %s12, %s10
  $region1: #{tpu_custom_call.1} parent=0
    #allocation2 [shape = 'u8[32768]{0}', space=vmem, size = 0x8000, scoped, tag = 'input window, operand 0, single buffered']
    #allocation3 [shape = 's32[1]{0}', space=sflag, size = 0x4, scoped, tag = 'scoped memory for tpu_custom_call.1']
    #allocation4 [shape = 's32[1]{0}', space=sflag, size = 0x4, scoped, tag = 'scoped memory for tpu_custom_call.1']
    #allocation5 [shape = 'u8[3145728]{0}', space=vmem, size = 0x300000, scoped, tag = 'input window, operand 1, single buffered']
    #allocation6 [shape = 's32[1]{0}', space=sflag, size = 0x4, scoped, tag = 'scoped memory for tpu_custom_call.1']
    #allocation7 [shape = 'u8[3072]{0}', space=vmem, size = 0xc00, scoped, tag = 'input window, operand 2, single buffered']
    #allocation8 [shape = 'u8[196608]{0}', space=vmem, size = 0x30000, scoped, tag = 'input window, operand 3, single buffered']
    #allocation9 [shape = 's32[1]{0}', space=sflag, size = 0x4, scoped, tag = 'scoped memory for tpu_custom_call.1']
    #allocation10 [shape = 'u8[512]{0}', space=vmem, size = 0x400, scoped, tag = 'input window, operand 4, single buffered']
    #allocation11 [shape = 'u8[32768]{0}', space=vmem, size = 0x8000, scoped, tag = 'input window, operand 5, single buffered']
    #allocation12 [shape = 's32[1]{0}', space=sflag, size = 0x4, scoped, tag = 'scoped memory for tpu_custom_call.1']
    #allocation13 [shape = 'u8[512]{0}', space=vmem, size = 0x400, scoped, tag = 'input window, operand 6, single buffered']
    #allocation14 [shape = 'u8[32768]{0}', space=vmem, size = 0x8000, scoped, tag = 'input window, operand 7, single buffered']
    #allocation15 [shape = 's32[1]{0}', space=sflag, size = 0x4, scoped, tag = 'scoped memory for tpu_custom_call.1']
    #allocation16 [shape = 'u8[512]{0}', space=vmem, size = 0x400, scoped, tag = 'input window, operand 8, single buffered']
    #allocation17 [shape = 'u8[4096]{0}', space=vmem, size = 0x1000, scoped, tag = 'output window, operand 0, single buffered']
    %14 = vsyncpa [#allocation3], 0
    %15 = vsyncpa [#allocation6], 0
    %16 = vsyncpa [#allocation9], 0
    %17 = vsyncpa [#allocation12], 0
    %18 = vsyncpa [#allocation15], 0
    %19 = vsyncpa [#allocation4], 0
    // Predicated region
    $region2: #{tpu_custom_call.1} parent=1 // pred_check
      _
    $region3: #{tpu_custom_call.1} parent=1 // pred_check_branch
      %21 = sbr.rel (0) target = $region5
    $region4: #{tpu_custom_call.1} parent=1 // pred_region
      %s23 = ssub.s32 1024, 1024
      %24 = vsyncadd [#allocation3], %s23
      %s26 = sshll.u32 [#allocation2], 4
      %s27 = int_to_ptr.vmem [resolvable:$true] %s26
      %29 = dma.hbm_to_vmem [thread:$0]  %s0, 1024, %s27, [#allocation3]
    $region5: #{tpu_custom_call.1} parent=1 // pred_fallthru
      _
    // Predicated region
    $region6: #{tpu_custom_call.1} parent=1 // pred_check
      _
    $region7: #{tpu_custom_call.1} parent=1 // pred_check_branch
      %31 = sbr.rel (0) target = $region9
    $region8: #{tpu_custom_call.1} parent=1 // pred_region
      %s33 = ssub.s32 98304, 98304
      %34 = vsyncadd [#allocation6], %s33
      %s35 = sshll.u32 [#allocation5], 4
      %s36 = int_to_ptr.vmem [resolvable:$true] %s35
      %41 = dma.hbm_to_vmem [thread:$0]  %s1, 98304, %s36, [#allocation6], 384, 384, 24
    $region9: #{tpu_custom_call.1} parent=1 // pred_fallthru
      _
    // Predicated region
    $region10: #{tpu_custom_call.1} parent=1 // pred_check
      _
    $region11: #{tpu_custom_call.1} parent=1 // pred_check_branch
      %43 = sbr.rel (0) target = $region13
    $region12: #{tpu_custom_call.1} parent=1 // pred_region
      %s45 = ssub.s32 96, 96
      %46 = vsyncadd [#allocation6], %s45
      %s48 = sshll.u32 [#allocation7], 4
      %s49 = int_to_ptr.vmem [resolvable:$true] %s48
      %51 = dma.hbm_to_vmem [thread:$0]  %s2, 96, %s49, [#allocation6]
    $region13: #{tpu_custom_call.1} parent=1 // pred_fallthru
      _
    // Predicated region
    $region14: #{tpu_custom_call.1} parent=1 // pred_check
      _
    $region15: #{tpu_custom_call.1} parent=1 // pred_check_branch
      %53 = sbr.rel (0) target = $region17
    $region16: #{tpu_custom_call.1} parent=1 // pred_region
      %s55 = ssub.s32 6144, 6144
      %56 = vsyncadd [#allocation9], %s55
      %s57 = sshll.u32 [#allocation8], 4
      %s58 = int_to_ptr.vmem [resolvable:$true] %s57
      %63 = dma.hbm_to_vmem [thread:$0]  %s3, 6144, %s58, [#allocation9], 64, 64, 4
    $region17: #{tpu_custom_call.1} parent=1 // pred_fallthru
      _
    // Predicated region
    $region18: #{tpu_custom_call.1} parent=1 // pred_check
      _
    $region19: #{tpu_custom_call.1} parent=1 // pred_check_branch
      %65 = sbr.rel (0) target = $region21
    $region20: #{tpu_custom_call.1} parent=1 // pred_region
      %s67 = ssub.s32 16, 16
      %68 = vsyncadd [#allocation9], %s67
      %s70 = sshll.u32 [#allocation10], 4
      %s71 = int_to_ptr.vmem [resolvable:$true] %s70
      %73 = dma.hbm_to_vmem [thread:$0]  %s4, 16, %s71, [#allocation9]
    $region21: #{tpu_custom_call.1} parent=1 // pred_fallthru
      _
    // Predicated region
    $region22: #{tpu_custom_call.1} parent=1 // pred_check
      _
    $region23: #{tpu_custom_call.1} parent=1 // pred_check_branch
      %75 = sbr.rel (0) target = $region25
    $region24: #{tpu_custom_call.1} parent=1 // pred_region
      %s77 = ssub.s32 1024, 1024
      %78 = vsyncadd [#allocation12], %s77
      %s79 = sshll.u32 [#allocation11], 4
      %s80 = int_to_ptr.vmem [resolvable:$true] %s79
      %85 = dma.hbm_to_vmem [thread:$0]  %s5, 1024, %s80, [#allocation12], 64, 64, 4
    $region25: #{tpu_custom_call.1} parent=1 // pred_fallthru
      _
    // Predicated region
    $region26: #{tpu_custom_call.1} parent=1 // pred_check
      _
    $region27: #{tpu_custom_call.1} parent=1 // pred_check_branch
      %87 = sbr.rel (0) target = $region29
    $region28: #{tpu_custom_call.1} parent=1 // pred_region
      %s89 = ssub.s32 16, 16
      %90 = vsyncadd [#allocation12], %s89
      %s92 = sshll.u32 [#allocation13], 4
      %s93 = int_to_ptr.vmem [resolvable:$true] %s92
      %95 = dma.hbm_to_vmem [thread:$0]  %s6, 16, %s93, [#allocation12]
    $region29: #{tpu_custom_call.1} parent=1 // pred_fallthru
      _
    // Predicated region
    $region30: #{tpu_custom_call.1} parent=1 // pred_check
      _
    $region31: #{tpu_custom_call.1} parent=1 // pred_check_branch
      %97 = sbr.rel (0) target = $region33
    $region32: #{tpu_custom_call.1} parent=1 // pred_region
      %s99 = ssub.s32 1024, 1024
      %100 = vsyncadd [#allocation15], %s99
      %s101 = sshll.u32 [#allocation14], 4
      %s102 = int_to_ptr.vmem [resolvable:$true] %s101
      %107 = dma.hbm_to_vmem [thread:$0]  %s7, 1024, %s102, [#allocation15], 64, 64, 4
    $region33: #{tpu_custom_call.1} parent=1 // pred_fallthru
      _
    // Predicated region
    $region34: #{tpu_custom_call.1} parent=1 // pred_check
      _
    $region35: #{tpu_custom_call.1} parent=1 // pred_check_branch
      %109 = sbr.rel (0) target = $region37
    $region36: #{tpu_custom_call.1} parent=1 // pred_region
      %s111 = ssub.s32 16, 16
      %112 = vsyncadd [#allocation15], %s111
      %s114 = sshll.u32 [#allocation16], 4
      %s115 = int_to_ptr.vmem [resolvable:$true] %s114
      %117 = dma.hbm_to_vmem [thread:$0]  %s8, 16, %s115, [#allocation15]
    $region37: #{tpu_custom_call.1} parent=1 // pred_fallthru
      _
    // Predicated region
    $region38: #{tpu_custom_call.1} parent=1 // pred_check
      _
    $region39: #{tpu_custom_call.1} parent=1 // pred_check_branch
      %119 = sbr.rel (0) target = $region41
    $region40: #{tpu_custom_call.1} parent=1 // pred_region
      %120 = dma.done [#allocation3], 1024
    $region41: #{tpu_custom_call.1} parent=1 // pred_fallthru
      _
    // Predicated region
    $region42: #{tpu_custom_call.1} parent=1 // pred_check
      _
    $region43: #{tpu_custom_call.1} parent=1 // pred_check_branch
      %122 = sbr.rel (0) target = $region45
    $region44: #{tpu_custom_call.1} parent=1 // pred_region
      %123 = dma.done [#allocation6], 98304
    $region45: #{tpu_custom_call.1} parent=1 // pred_fallthru
      _
    // Predicated region
    $region46: #{tpu_custom_call.1} parent=1 // pred_check
      _
    $region47: #{tpu_custom_call.1} parent=1 // pred_check_branch
      %125 = sbr.rel (0) target = $region49
    $region48: #{tpu_custom_call.1} parent=1 // pred_region
      %126 = dma.done [#allocation6], 96
    $region49: #{tpu_custom_call.1} parent=1 // pred_fallthru
      _
    // Predicated region
    $region50: #{tpu_custom_call.1} parent=1 // pred_check
      _
    $region51: #{tpu_custom_call.1} parent=1 // pred_check_branch
      %128 = sbr.rel (0) target = $region53
    $region52: #{tpu_custom_call.1} parent=1 // pred_region
      %129 = dma.done [#allocation9], 6144
    $region53: #{tpu_custom_call.1} parent=1 // pred_fallthru
      _
    // Predicated region
    $region54: #{tpu_custom_call.1} parent=1 // pred_check
      _
    $region55: #{tpu_custom_call.1} parent=1 // pred_check_branch
      %131 = sbr.rel (0) target = $region57
    $region56: #{tpu_custom_call.1} parent=1 // pred_region
      %132 = dma.done [#allocation9], 16
    $region57: #{tpu_custom_call.1} parent=1 // pred_fallthru
      _
    // Predicated region
    $region58: #{tpu_custom_call.1} parent=1 // pred_check
      _
    $region59: #{tpu_custom_call.1} parent=1 // pred_check_branch
      %134 = sbr.rel (0) target = $region61
    $region60: #{tpu_custom_call.1} parent=1 // pred_region
      %135 = dma.done [#allocation12], 1024
    $region61: #{tpu_custom_call.1} parent=1 // pred_fallthru
      _
    // Predicated region
    $region62: #{tpu_custom_call.1} parent=1 // pred_check
      _
    $region63: #{tpu_custom_call.1} parent=1 // pred_check_branch
      %137 = sbr.rel (0) target = $region65
    $region64: #{tpu_custom_call.1} parent=1 // pred_region
      %138 = dma.done [#allocation12], 16
    $region65: #{tpu_custom_call.1} parent=1 // pred_fallthru
      _
    // Predicated region
    $region66: #{tpu_custom_call.1} parent=1 // pred_check
      _
    $region67: #{tpu_custom_call.1} parent=1 // pred_check_branch
      %140 = sbr.rel (0) target = $region69
    $region68: #{tpu_custom_call.1} parent=1 // pred_region
      %141 = dma.done [#allocation15], 1024
    $region69: #{tpu_custom_call.1} parent=1 // pred_fallthru
      _
    // Predicated region
    $region70: #{tpu_custom_call.1} parent=1 // pred_check
      _
    $region71: #{tpu_custom_call.1} parent=1 // pred_check_branch
      %143 = sbr.rel (0) target = $region73
    $region72: #{tpu_custom_call.1} parent=1 // pred_region
      %144 = dma.done [#allocation15], 16
    $region73: #{tpu_custom_call.1} parent=1 // pred_fallthru
      _
    %v146 = vld [vmem:[#allocation2] sm:$0xff]
    %v147 = vld [vmem:[#allocation2 + $0x8] sm:$0xff]
    %v148 = vld [vmem:[#allocation2 + $0x10] sm:$0xff]
    %v149 = vld [vmem:[#allocation2 + $0x18] sm:$0xff]
    %v150 = vld [vmem:[#allocation2 + $0x20] sm:$0xff]
    %v151 = vld [vmem:[#allocation2 + $0x28] sm:$0xff]
    %v152 = vld [vmem:[#allocation2 + $0x30] sm:$0xff]
    %v153 = vld [vmem:[#allocation2 + $0x38] sm:$0xff]
    %v154 = vld [vmem:[#allocation5] sm:$0xff]
    %v155 = vld [vmem:[#allocation5 + $0x8] sm:$0xff]
    %v156 = vld [vmem:[#allocation5 + $0x10] sm:$0xff]
    %v157 = vld [vmem:[#allocation5 + $0x18] sm:$0xff]
    %v158 = vld [vmem:[#allocation5 + $0x20] sm:$0xff]
    %v159 = vld [vmem:[#allocation5 + $0x28] sm:$0xff]
    %v160 = vld [vmem:[#allocation5 + $0x30] sm:$0xff]
    %v161 = vld [vmem:[#allocation5 + $0x38] sm:$0xff]
    %v162 = vld [vmem:[#allocation5 + $0x40] sm:$0xff]
    %v163 = vld [vmem:[#allocation5 + $0x48] sm:$0xff]
    %v164 = vld [vmem:[#allocation5 + $0x50] sm:$0xff]
    %v165 = vld [vmem:[#allocation5 + $0x58] sm:$0xff]
    %v166 = vld [vmem:[#allocation5 + $0x60] sm:$0xff]
    %v167 = vld [vmem:[#allocation5 + $0x68] sm:$0xff]
    %v168 = vld [vmem:[#allocation5 + $0x70] sm:$0xff]
    %v169 = vld [vmem:[#allocation5 + $0x78] sm:$0xff]
    %v170 = vld [vmem:[#allocation5 + $0x80] sm:$0xff]
    %v171 = vld [vmem:[#allocation5 + $0x88] sm:$0xff]
    %v172 = vld [vmem:[#allocation5 + $0x90] sm:$0xff]
    %v173 = vld [vmem:[#allocation5 + $0x98] sm:$0xff]
    %v174 = vld [vmem:[#allocation5 + $0xa0] sm:$0xff]
    %v175 = vld [vmem:[#allocation5 + $0xa8] sm:$0xff]
    %v176 = vld [vmem:[#allocation5 + $0xb0] sm:$0xff]
    %v177 = vld [vmem:[#allocation5 + $0xb8] sm:$0xff]
    %v178 = vld [vmem:[#allocation5 + $0xc0] sm:$0xff]
    %v179 = vld [vmem:[#allocation5 + $0xc8] sm:$0xff]
    %v180 = vld [vmem:[#allocation5 + $0xd0] sm:$0xff]
    %v181 = vld [vmem:[#allocation5 + $0xd8] sm:$0xff]
    %v182 = vld [vmem:[#allocation5 + $0xe0] sm:$0xff]
    %v183 = vld [vmem:[#allocation5 + $0xe8] sm:$0xff]
    %v184 = vld [vmem:[#allocation5 + $0xf0] sm:$0xff]
    %v185 = vld [vmem:[#allocation5 + $0xf8] sm:$0xff]
    %v186 = vld [vmem:[#allocation5 + $0x100] sm:$0xff]
    %v187 = vld [vmem:[#allocation5 + $0x108] sm:$0xff]
    %v188 = vld [vmem:[#allocation5 + $0x110] sm:$0xff]
    %v189 = vld [vmem:[#allocation5 + $0x118] sm:$0xff]
    %v190 = vld [vmem:[#allocation5 + $0x120] sm:$0xff]
    %v191 = vld [vmem:[#allocation5 + $0x128] sm:$0xff]
    %v192 = vld [vmem:[#allocation5 + $0x130] sm:$0xff]
    %v193 = vld [vmem:[#allocation5 + $0x138] sm:$0xff]
    %v194 = vld [vmem:[#allocation5 + $0x140] sm:$0xff]
    %v195 = vld [vmem:[#allocation5 + $0x148] sm:$0xff]
    %v196 = vld [vmem:[#allocation5 + $0x150] sm:$0xff]
    %v197 = vld [vmem:[#allocation5 + $0x158] sm:$0xff]
    %v198 = vld [vmem:[#allocation5 + $0x160] sm:$0xff]
    %v199 = vld [vmem:[#allocation5 + $0x168] sm:$0xff]
    %v200 = vld [vmem:[#allocation5 + $0x170] sm:$0xff]
    %v201 = vld [vmem:[#allocation5 + $0x178] sm:$0xff]
    %v202 = vld [vmem:[#allocation5 + $0x180] sm:$0xff]
    %v203 = vld [vmem:[#allocation5 + $0x188] sm:$0xff]
    %v204 = vld [vmem:[#allocation5 + $0x190] sm:$0xff]
    %v205 = vld [vmem:[#allocation5 + $0x198] sm:$0xff]
    %v206 = vld [vmem:[#allocation5 + $0x1a0] sm:$0xff]
    %v207 = vld [vmem:[#allocation5 + $0x1a8] sm:$0xff]
    %v208 = vld [vmem:[#allocation5 + $0x1b0] sm:$0xff]
    %v209 = vld [vmem:[#allocation5 + $0x1b8] sm:$0xff]
    %v210 = vld [vmem:[#allocation5 + $0x1c0] sm:$0xff]
    %v211 = vld [vmem:[#allocation5 + $0x1c8] sm:$0xff]
    %v212 = vld [vmem:[#allocation5 + $0x1d0] sm:$0xff]
    %v213 = vld [vmem:[#allocation5 + $0x1d8] sm:$0xff]
    %v214 = vld [vmem:[#allocation5 + $0x1e0] sm:$0xff]
    %v215 = vld [vmem:[#allocation5 + $0x1e8] sm:$0xff]
    %v216 = vld [vmem:[#allocation5 + $0x1f0] sm:$0xff]
    %v217 = vld [vmem:[#allocation5 + $0x1f8] sm:$0xff]
    %v218 = vld [vmem:[#allocation5 + $0x200] sm:$0xff]
    %v219 = vld [vmem:[#allocation5 + $0x208] sm:$0xff]
    %v220 = vld [vmem:[#allocation5 + $0x210] sm:$0xff]
    %v221 = vld [vmem:[#allocation5 + $0x218] sm:$0xff]
    %v222 = vld [vmem:[#allocation5 + $0x220] sm:$0xff]
    %v223 = vld [vmem:[#allocation5 + $0x228] sm:$0xff]
    %v224 = vld [vmem:[#allocation5 + $0x230] sm:$0xff]
    %v225 = vld [vmem:[#allocation5 + $0x238] sm:$0xff]
    %v226 = vld [vmem:[#allocation5 + $0x240] sm:$0xff]
    %v227 = vld [vmem:[#allocation5 + $0x248] sm:$0xff]
    %v228 = vld [vmem:[#allocation5 + $0x250] sm:$0xff]
    %v229 = vld [vmem:[#allocation5 + $0x258] sm:$0xff]
    %v230 = vld [vmem:[#allocation5 + $0x260] sm:$0xff]
    %v231 = vld [vmem:[#allocation5 + $0x268] sm:$0xff]
    %v232 = vld [vmem:[#allocation5 + $0x270] sm:$0xff]
    %v233 = vld [vmem:[#allocation5 + $0x278] sm:$0xff]
    %v234 = vld [vmem:[#allocation5 + $0x280] sm:$0xff]
    %v235 = vld [vmem:[#allocation5 + $0x288] sm:$0xff]
    %v236 = vld [vmem:[#allocation5 + $0x290] sm:$0xff]
    %v237 = vld [vmem:[#allocation5 + $0x298] sm:$0xff]
    %v238 = vld [vmem:[#allocation5 + $0x2a0] sm:$0xff]
    %v239 = vld [vmem:[#allocation5 + $0x2a8] sm:$0xff]
    %v240 = vld [vmem:[#allocation5 + $0x2b0] sm:$0xff]
    %v241 = vld [vmem:[#allocation5 + $0x2b8] sm:$0xff]
    %v242 = vld [vmem:[#allocation5 + $0x2c0] sm:$0xff]
    %v243 = vld [vmem:[#allocation5 + $0x2c8] sm:$0xff]
    %v244 = vld [vmem:[#allocation5 + $0x2d0] sm:$0xff]
    %v245 = vld [vmem:[#allocation5 + $0x2d8] sm:$0xff]
    %v246 = vld [vmem:[#allocation5 + $0x2e0] sm:$0xff]
    %v247 = vld [vmem:[#allocation5 + $0x2e8] sm:$0xff]
    %v248 = vld [vmem:[#allocation5 + $0x2f0] sm:$0xff]
    %v249 = vld [vmem:[#allocation5 + $0x2f8] sm:$0xff]
    %v250 = vld [vmem:[#allocation5 + $0x300] sm:$0xff]
    %v251 = vld [vmem:[#allocation5 + $0x308] sm:$0xff]
    %v252 = vld [vmem:[#allocation5 + $0x310] sm:$0xff]
    %v253 = vld [vmem:[#allocation5 + $0x318] sm:$0xff]
    %v254 = vld [vmem:[#allocation5 + $0x320] sm:$0xff]
    %v255 = vld [vmem:[#allocation5 + $0x328] sm:$0xff]
    %v256 = vld [vmem:[#allocation5 + $0x330] sm:$0xff]
    %v257 = vld [vmem:[#allocation5 + $0x338] sm:$0xff]
    %v258 = vld [vmem:[#allocation5 + $0x340] sm:$0xff]
    %v259 = vld [vmem:[#allocation5 + $0x348] sm:$0xff]
    %v260 = vld [vmem:[#allocation5 + $0x350] sm:$0xff]
    %v261 = vld [vmem:[#allocation5 + $0x358] sm:$0xff]
    %v262 = vld [vmem:[#allocation5 + $0x360] sm:$0xff]
    %v263 = vld [vmem:[#allocation5 + $0x368] sm:$0xff]
    %v264 = vld [vmem:[#allocation5 + $0x370] sm:$0xff]
    %v265 = vld [vmem:[#allocation5 + $0x378] sm:$0xff]
    %v266 = vld [vmem:[#allocation5 + $0x380] sm:$0xff]
    %v267 = vld [vmem:[#allocation5 + $0x388] sm:$0xff]
    %v268 = vld [vmem:[#allocation5 + $0x390] sm:$0xff]
    %v269 = vld [vmem:[#allocation5 + $0x398] sm:$0xff]
    %v270 = vld [vmem:[#allocation5 + $0x3a0] sm:$0xff]
    %v271 = vld [vmem:[#allocation5 + $0x3a8] sm:$0xff]
    %v272 = vld [vmem:[#allocation5 + $0x3b0] sm:$0xff]
    %v273 = vld [vmem:[#allocation5 + $0x3b8] sm:$0xff]
    %v274 = vld [vmem:[#allocation5 + $0x3c0] sm:$0xff]
    %v275 = vld [vmem:[#allocation5 + $0x3c8] sm:$0xff]
    %v276 = vld [vmem:[#allocation5 + $0x3d0] sm:$0xff]
    %v277 = vld [vmem:[#allocation5 + $0x3d8] sm:$0xff]
    %v278 = vld [vmem:[#allocation5 + $0x3e0] sm:$0xff]
    %v279 = vld [vmem:[#allocation5 + $0x3e8] sm:$0xff]
    %v280 = vld [vmem:[#allocation5 + $0x3f0] sm:$0xff]
    %v281 = vld [vmem:[#allocation5 + $0x3f8] sm:$0xff]
    %v282 = vld [vmem:[#allocation5 + $0x400] sm:$0xff]
    %v283 = vld [vmem:[#allocation5 + $0x408] sm:$0xff]
    %v284 = vld [vmem:[#allocation5 + $0x410] sm:$0xff]
    %v285 = vld [vmem:[#allocation5 + $0x418] sm:$0xff]
    %v286 = vld [vmem:[#allocation5 + $0x420] sm:$0xff]
    %v287 = vld [vmem:[#allocation5 + $0x428] sm:$0xff]
    %v288 = vld [vmem:[#allocation5 + $0x430] sm:$0xff]
    %v289 = vld [vmem:[#allocation5 + $0x438] sm:$0xff]
    %v290 = vld [vmem:[#allocation5 + $0x440] sm:$0xff]
    %v291 = vld [vmem:[#allocation5 + $0x448] sm:$0xff]
    %v292 = vld [vmem:[#allocation5 + $0x450] sm:$0xff]
    %v293 = vld [vmem:[#allocation5 + $0x458] sm:$0xff]
    %v294 = vld [vmem:[#allocation5 + $0x460] sm:$0xff]
    %v295 = vld [vmem:[#allocation5 + $0x468] sm:$0xff]
    %v296 = vld [vmem:[#allocation5 + $0x470] sm:$0xff]
    %v297 = vld [vmem:[#allocation5 + $0x478] sm:$0xff]
    %v298 = vld [vmem:[#allocation5 + $0x480] sm:$0xff]
    %v299 = vld [vmem:[#allocation5 + $0x488] sm:$0xff]
    %v300 = vld [vmem:[#allocation5 + $0x490] sm:$0xff]
    %v301 = vld [vmem:[#allocation5 + $0x498] sm:$0xff]
    %v302 = vld [vmem:[#allocation5 + $0x4a0] sm:$0xff]
    %v303 = vld [vmem:[#allocation5 + $0x4a8] sm:$0xff]
    %v304 = vld [vmem:[#allocation5 + $0x4b0] sm:$0xff]
    %v305 = vld [vmem:[#allocation5 + $0x4b8] sm:$0xff]
    %v306 = vld [vmem:[#allocation5 + $0x4c0] sm:$0xff]
    %v307 = vld [vmem:[#allocation5 + $0x4c8] sm:$0xff]
    %v308 = vld [vmem:[#allocation5 + $0x4d0] sm:$0xff]
    %v309 = vld [vmem:[#allocation5 + $0x4d8] sm:$0xff]
    %v310 = vld [vmem:[#allocation5 + $0x4e0] sm:$0xff]
    %v311 = vld [vmem:[#allocation5 + $0x4e8] sm:$0xff]
    %v312 = vld [vmem:[#allocation5 + $0x4f0] sm:$0xff]
    %v313 = vld [vmem:[#allocation5 + $0x4f8] sm:$0xff]
    %v314 = vld [vmem:[#allocation5 + $0x500] sm:$0xff]
    %v315 = vld [vmem:[#allocation5 + $0x508] sm:$0xff]
    %v316 = vld [vmem:[#allocation5 + $0x510] sm:$0xff]
    %v317 = vld [vmem:[#allocation5 + $0x518] sm:$0xff]
    %v318 = vld [vmem:[#allocation5 + $0x520] sm:$0xff]
    %v319 = vld [vmem:[#allocation5 + $0x528] sm:$0xff]
    %v320 = vld [vmem:[#allocation5 + $0x530] sm:$0xff]
    %v321 = vld [vmem:[#allocation5 + $0x538] sm:$0xff]
    %v322 = vld [vmem:[#allocation5 + $0x540] sm:$0xff]
    %v323 = vld [vmem:[#allocation5 + $0x548] sm:$0xff]
    %v324 = vld [vmem:[#allocation5 + $0x550] sm:$0xff]
    %v325 = vld [vmem:[#allocation5 + $0x558] sm:$0xff]
    %v326 = vld [vmem:[#allocation5 + $0x560] sm:$0xff]
    %v327 = vld [vmem:[#allocation5 + $0x568] sm:$0xff]
    %v328 = vld [vmem:[#allocation5 + $0x570] sm:$0xff]
    %v329 = vld [vmem:[#allocation5 + $0x578] sm:$0xff]
    %v330 = vld [vmem:[#allocation5 + $0x580] sm:$0xff]
    %v331 = vld [vmem:[#allocation5 + $0x588] sm:$0xff]
    %v332 = vld [vmem:[#allocation5 + $0x590] sm:$0xff]
    %v333 = vld [vmem:[#allocation5 + $0x598] sm:$0xff]
    %v334 = vld [vmem:[#allocation5 + $0x5a0] sm:$0xff]
    %v335 = vld [vmem:[#allocation5 + $0x5a8] sm:$0xff]
    %v336 = vld [vmem:[#allocation5 + $0x5b0] sm:$0xff]
    %v337 = vld [vmem:[#allocation5 + $0x5b8] sm:$0xff]
    %v338 = vld [vmem:[#allocation5 + $0x5c0] sm:$0xff]
    %v339 = vld [vmem:[#allocation5 + $0x5c8] sm:$0xff]
    %v340 = vld [vmem:[#allocation5 + $0x5d0] sm:$0xff]
    %v341 = vld [vmem:[#allocation5 + $0x5d8] sm:$0xff]
    %v342 = vld [vmem:[#allocation5 + $0x5e0] sm:$0xff]
    %v343 = vld [vmem:[#allocation5 + $0x5e8] sm:$0xff]
    %v344 = vld [vmem:[#allocation5 + $0x5f0] sm:$0xff]
    %v345 = vld [vmem:[#allocation5 + $0x5f8] sm:$0xff]
    %v346 = vld [vmem:[#allocation5 + $0x600] sm:$0xff]
    %v347 = vld [vmem:[#allocation5 + $0x608] sm:$0xff]
    %v348 = vld [vmem:[#allocation5 + $0x610] sm:$0xff]
    %v349 = vld [vmem:[#allocation5 + $0x618] sm:$0xff]
    %v350 = vld [vmem:[#allocation5 + $0x620] sm:$0xff]
    %v351 = vld [vmem:[#allocation5 + $0x628] sm:$0xff]
    %v352 = vld [vmem:[#allocation5 + $0x630] sm:$0xff]
    %v353 = vld [vmem:[#allocation5 + $0x638] sm:$0xff]
    %v354 = vld [vmem:[#allocation5 + $0x640] sm:$0xff]
    %v355 = vld [vmem:[#allocation5 + $0x648] sm:$0xff]
    %v356 = vld [vmem:[#allocation5 + $0x650] sm:$0xff]
    %v357 = vld [vmem:[#allocation5 + $0x658] sm:$0xff]
    %v358 = vld [vmem:[#allocation5 + $0x660] sm:$0xff]
    %v359 = vld [vmem:[#allocation5 + $0x668] sm:$0xff]
    %v360 = vld [vmem:[#allocation5 + $0x670] sm:$0xff]
    %v361 = vld [vmem:[#allocation5 + $0x678] sm:$0xff]
    %v362 = vld [vmem:[#allocation5 + $0x680] sm:$0xff]
    %v363 = vld [vmem:[#allocation5 + $0x688] sm:$0xff]
    %v364 = vld [vmem:[#allocation5 + $0x690] sm:$0xff]
    %v365 = vld [vmem:[#allocation5 + $0x698] sm:$0xff]
    %v366 = vld [vmem:[#allocation5 + $0x6a0] sm:$0xff]
    %v367 = vld [vmem:[#allocation5 + $0x6a8] sm:$0xff]
    %v368 = vld [vmem:[#allocation5 + $0x6b0] sm:$0xff]
    %v369 = vld [vmem:[#allocation5 + $0x6b8] sm:$0xff]
    %v370 = vld [vmem:[#allocation5 + $0x6c0] sm:$0xff]
    %v371 = vld [vmem:[#allocation5 + $0x6c8] sm:$0xff]
    %v372 = vld [vmem:[#allocation5 + $0x6d0] sm:$0xff]
    %v373 = vld [vmem:[#allocation5 + $0x6d8] sm:$0xff]
    %v374 = vld [vmem:[#allocation5 + $0x6e0] sm:$0xff]
    %v375 = vld [vmem:[#allocation5 + $0x6e8] sm:$0xff]
    %v376 = vld [vmem:[#allocation5 + $0x6f0] sm:$0xff]
    %v377 = vld [vmem:[#allocation5 + $0x6f8] sm:$0xff]
    %v378 = vld [vmem:[#allocation5 + $0x700] sm:$0xff]
    %v379 = vld [vmem:[#allocation5 + $0x708] sm:$0xff]
    %v380 = vld [vmem:[#allocation5 + $0x710] sm:$0xff]
    %v381 = vld [vmem:[#allocation5 + $0x718] sm:$0xff]
    %v382 = vld [vmem:[#allocation5 + $0x720] sm:$0xff]
    %v383 = vld [vmem:[#allocation5 + $0x728] sm:$0xff]
    %v384 = vld [vmem:[#allocation5 + $0x730] sm:$0xff]
    %v385 = vld [vmem:[#allocation5 + $0x738] sm:$0xff]
    %v386 = vld [vmem:[#allocation5 + $0x740] sm:$0xff]
    %v387 = vld [vmem:[#allocation5 + $0x748] sm:$0xff]
    %v388 = vld [vmem:[#allocation5 + $0x750] sm:$0xff]
    %v389 = vld [vmem:[#allocation5 + $0x758] sm:$0xff]
    %v390 = vld [vmem:[#allocation5 + $0x760] sm:$0xff]
    %v391 = vld [vmem:[#allocation5 + $0x768] sm:$0xff]
    %v392 = vld [vmem:[#allocation5 + $0x770] sm:$0xff]
    %v393 = vld [vmem:[#allocation5 + $0x778] sm:$0xff]
    %v394 = vld [vmem:[#allocation5 + $0x780] sm:$0xff]
    %v395 = vld [vmem:[#allocation5 + $0x788] sm:$0xff]
    %v396 = vld [vmem:[#allocation5 + $0x790] sm:$0xff]
    %v397 = vld [vmem:[#allocation5 + $0x798] sm:$0xff]
    %v398 = vld [vmem:[#allocation5 + $0x7a0] sm:$0xff]
    %v399 = vld [vmem:[#allocation5 + $0x7a8] sm:$0xff]
    %v400 = vld [vmem:[#allocation5 + $0x7b0] sm:$0xff]
    %v401 = vld [vmem:[#allocation5 + $0x7b8] sm:$0xff]
    %v402 = vld [vmem:[#allocation5 + $0x7c0] sm:$0xff]
    %v403 = vld [vmem:[#allocation5 + $0x7c8] sm:$0xff]
    %v404 = vld [vmem:[#allocation5 + $0x7d0] sm:$0xff]
    %v405 = vld [vmem:[#allocation5 + $0x7d8] sm:$0xff]
    %v406 = vld [vmem:[#allocation5 + $0x7e0] sm:$0xff]
    %v407 = vld [vmem:[#allocation5 + $0x7e8] sm:$0xff]
    %v408 = vld [vmem:[#allocation5 + $0x7f0] sm:$0xff]
    %v409 = vld [vmem:[#allocation5 + $0x7f8] sm:$0xff]
    %v410 = vld [vmem:[#allocation5 + $0x800] sm:$0xff]
    %v411 = vld [vmem:[#allocation5 + $0x808] sm:$0xff]
    %v412 = vld [vmem:[#allocation5 + $0x810] sm:$0xff]
    %v413 = vld [vmem:[#allocation5 + $0x818] sm:$0xff]
    %v414 = vld [vmem:[#allocation5 + $0x820] sm:$0xff]
    %v415 = vld [vmem:[#allocation5 + $0x828] sm:$0xff]
    %v416 = vld [vmem:[#allocation5 + $0x830] sm:$0xff]
    %v417 = vld [vmem:[#allocation5 + $0x838] sm:$0xff]
    %v418 = vld [vmem:[#allocation5 + $0x840] sm:$0xff]
    %v419 = vld [vmem:[#allocation5 + $0x848] sm:$0xff]
    %v420 = vld [vmem:[#allocation5 + $0x850] sm:$0xff]
    %v421 = vld [vmem:[#allocation5 + $0x858] sm:$0xff]
    %v422 = vld [vmem:[#allocation5 + $0x860] sm:$0xff]
    %v423 = vld [vmem:[#allocation5 + $0x868] sm:$0xff]
    %v424 = vld [vmem:[#allocation5 + $0x870] sm:$0xff]
    %v425 = vld [vmem:[#allocation5 + $0x878] sm:$0xff]
    %v426 = vld [vmem:[#allocation5 + $0x880] sm:$0xff]
    %v427 = vld [vmem:[#allocation5 + $0x888] sm:$0xff]
    %v428 = vld [vmem:[#allocation5 + $0x890] sm:$0xff]
    %v429 = vld [vmem:[#allocation5 + $0x898] sm:$0xff]
    %v430 = vld [vmem:[#allocation5 + $0x8a0] sm:$0xff]
    %v431 = vld [vmem:[#allocation5 + $0x8a8] sm:$0xff]
    %v432 = vld [vmem:[#allocation5 + $0x8b0] sm:$0xff]
    %v433 = vld [vmem:[#allocation5 + $0x8b8] sm:$0xff]
    %v434 = vld [vmem:[#allocation5 + $0x8c0] sm:$0xff]
    %v435 = vld [vmem:[#allocation5 + $0x8c8] sm:$0xff]
    %v436 = vld [vmem:[#allocation5 + $0x8d0] sm:$0xff]
    %v437 = vld [vmem:[#allocation5 + $0x8d8] sm:$0xff]
    %v438 = vld [vmem:[#allocation5 + $0x8e0] sm:$0xff]
    %v439 = vld [vmem:[#allocation5 + $0x8e8] sm:$0xff]
    %v440 = vld [vmem:[#allocation5 + $0x8f0] sm:$0xff]
    %v441 = vld [vmem:[#allocation5 + $0x8f8] sm:$0xff]
    %v442 = vld [vmem:[#allocation5 + $0x900] sm:$0xff]
    %v443 = vld [vmem:[#allocation5 + $0x908] sm:$0xff]
    %v444 = vld [vmem:[#allocation5 + $0x910] sm:$0xff]
    %v445 = vld [vmem:[#allocation5 + $0x918] sm:$0xff]
    %v446 = vld [vmem:[#allocation5 + $0x920] sm:$0xff]
    %v447 = vld [vmem:[#allocation5 + $0x928] sm:$0xff]
    %v448 = vld [vmem:[#allocation5 + $0x930] sm:$0xff]
    %v449 = vld [vmem:[#allocation5 + $0x938] sm:$0xff]
    %v450 = vld [vmem:[#allocation5 + $0x940] sm:$0xff]
    %v451 = vld [vmem:[#allocation5 + $0x948] sm:$0xff]
    %v452 = vld [vmem:[#allocation5 + $0x950] sm:$0xff]
    %v453 = vld [vmem:[#allocation5 + $0x958] sm:$0xff]
    %v454 = vld [vmem:[#allocation5 + $0x960] sm:$0xff]
    %v455 = vld [vmem:[#allocation5 + $0x968] sm:$0xff]
    %v456 = vld [vmem:[#allocation5 + $0x970] sm:$0xff]
    %v457 = vld [vmem:[#allocation5 + $0x978] sm:$0xff]
    %v458 = vld [vmem:[#allocation5 + $0x980] sm:$0xff]
    %v459 = vld [vmem:[#allocation5 + $0x988] sm:$0xff]
    %v460 = vld [vmem:[#allocation5 + $0x990] sm:$0xff]
    %v461 = vld [vmem:[#allocation5 + $0x998] sm:$0xff]
    %v462 = vld [vmem:[#allocation5 + $0x9a0] sm:$0xff]
    %v463 = vld [vmem:[#allocation5 + $0x9a8] sm:$0xff]
    %v464 = vld [vmem:[#allocation5 + $0x9b0] sm:$0xff]
    %v465 = vld [vmem:[#allocation5 + $0x9b8] sm:$0xff]
    %v466 = vld [vmem:[#allocation5 + $0x9c0] sm:$0xff]
    %v467 = vld [vmem:[#allocation5 + $0x9c8] sm:$0xff]
    %v468 = vld [vmem:[#allocation5 + $0x9d0] sm:$0xff]
    %v469 = vld [vmem:[#allocation5 + $0x9d8] sm:$0xff]
    %v470 = vld [vmem:[#allocation5 + $0x9e0] sm:$0xff]
    %v471 = vld [vmem:[#allocation5 + $0x9e8] sm:$0xff]
    %v472 = vld [vmem:[#allocation5 + $0x9f0] sm:$0xff]
    %v473 = vld [vmem:[#allocation5 + $0x9f8] sm:$0xff]
    %v474 = vld [vmem:[#allocation5 + $0xa00] sm:$0xff]
    %v475 = vld [vmem:[#allocation5 + $0xa08] sm:$0xff]
    %v476 = vld [vmem:[#allocation5 + $0xa10] sm:$0xff]
    %v477 = vld [vmem:[#allocation5 + $0xa18] sm:$0xff]
    %v478 = vld [vmem:[#allocation5 + $0xa20] sm:$0xff]
    %v479 = vld [vmem:[#allocation5 + $0xa28] sm:$0xff]
    %v480 = vld [vmem:[#allocation5 + $0xa30] sm:$0xff]
    %v481 = vld [vmem:[#allocation5 + $0xa38] sm:$0xff]
    %v482 = vld [vmem:[#allocation5 + $0xa40] sm:$0xff]
    %v483 = vld [vmem:[#allocation5 + $0xa48] sm:$0xff]
    %v484 = vld [vmem:[#allocation5 + $0xa50] sm:$0xff]
    %v485 = vld [vmem:[#allocation5 + $0xa58] sm:$0xff]
    %v486 = vld [vmem:[#allocation5 + $0xa60] sm:$0xff]
    %v487 = vld [vmem:[#allocation5 + $0xa68] sm:$0xff]
    %v488 = vld [vmem:[#allocation5 + $0xa70] sm:$0xff]
    %v489 = vld [vmem:[#allocation5 + $0xa78] sm:$0xff]
    %v490 = vld [vmem:[#allocation5 + $0xa80] sm:$0xff]
    %v491 = vld [vmem:[#allocation5 + $0xa88] sm:$0xff]
    %v492 = vld [vmem:[#allocation5 + $0xa90] sm:$0xff]
    %v493 = vld [vmem:[#allocation5 + $0xa98] sm:$0xff]
    %v494 = vld [vmem:[#allocation5 + $0xaa0] sm:$0xff]
    %v495 = vld [vmem:[#allocation5 + $0xaa8] sm:$0xff]
    %v496 = vld [vmem:[#allocation5 + $0xab0] sm:$0xff]
    %v497 = vld [vmem:[#allocation5 + $0xab8] sm:$0xff]
    %v498 = vld [vmem:[#allocation5 + $0xac0] sm:$0xff]
    %v499 = vld [vmem:[#allocation5 + $0xac8] sm:$0xff]
    %v500 = vld [vmem:[#allocation5 + $0xad0] sm:$0xff]
    %v501 = vld [vmem:[#allocation5 + $0xad8] sm:$0xff]
    %v502 = vld [vmem:[#allocation5 + $0xae0] sm:$0xff]
    %v503 = vld [vmem:[#allocation5 + $0xae8] sm:$0xff]
    %v504 = vld [vmem:[#allocation5 + $0xaf0] sm:$0xff]
    %v505 = vld [vmem:[#allocation5 + $0xaf8] sm:$0xff]
    %v506 = vld [vmem:[#allocation5 + $0xb00] sm:$0xff]
    %v507 = vld [vmem:[#allocation5 + $0xb08] sm:$0xff]
    %v508 = vld [vmem:[#allocation5 + $0xb10] sm:$0xff]
    %v509 = vld [vmem:[#allocation5 + $0xb18] sm:$0xff]
    %v510 = vld [vmem:[#allocation5 + $0xb20] sm:$0xff]
    %v511 = vld [vmem:[#allocation5 + $0xb28] sm:$0xff]
    %v512 = vld [vmem:[#allocation5 + $0xb30] sm:$0xff]
    %v513 = vld [vmem:[#allocation5 + $0xb38] sm:$0xff]
    %v514 = vld [vmem:[#allocation5 + $0xb40] sm:$0xff]
    %v515 = vld [vmem:[#allocation5 + $0xb48] sm:$0xff]
    %v516 = vld [vmem:[#allocation5 + $0xb50] sm:$0xff]
    %v517 = vld [vmem:[#allocation5 + $0xb58] sm:$0xff]
    %v518 = vld [vmem:[#allocation5 + $0xb60] sm:$0xff]
    %v519 = vld [vmem:[#allocation5 + $0xb68] sm:$0xff]
    %v520 = vld [vmem:[#allocation5 + $0xb70] sm:$0xff]
    %v521 = vld [vmem:[#allocation5 + $0xb78] sm:$0xff]
    %v522 = vld [vmem:[#allocation5 + $0xb80] sm:$0xff]
    %v523 = vld [vmem:[#allocation5 + $0xb88] sm:$0xff]
    %v524 = vld [vmem:[#allocation5 + $0xb90] sm:$0xff]
    %v525 = vld [vmem:[#allocation5 + $0xb98] sm:$0xff]
    %v526 = vld [vmem:[#allocation5 + $0xba0] sm:$0xff]
    %v527 = vld [vmem:[#allocation5 + $0xba8] sm:$0xff]
    %v528 = vld [vmem:[#allocation5 + $0xbb0] sm:$0xff]
    %v529 = vld [vmem:[#allocation5 + $0xbb8] sm:$0xff]
    %v530 = vld [vmem:[#allocation5 + $0xbc0] sm:$0xff]
    %v531 = vld [vmem:[#allocation5 + $0xbc8] sm:$0xff]
    %v532 = vld [vmem:[#allocation5 + $0xbd0] sm:$0xff]
    %v533 = vld [vmem:[#allocation5 + $0xbd8] sm:$0xff]
    %v534 = vld [vmem:[#allocation5 + $0xbe0] sm:$0xff]
    %v535 = vld [vmem:[#allocation5 + $0xbe8] sm:$0xff]
    %v536 = vld [vmem:[#allocation5 + $0xbf0] sm:$0xff]
    %v537 = vld [vmem:[#allocation5 + $0xbf8] sm:$0xff]
    %v538 = vld [vmem:[#allocation5 + $0xc00] sm:$0xff]
    %v539 = vld [vmem:[#allocation5 + $0xc08] sm:$0xff]
    %v540 = vld [vmem:[#allocation5 + $0xc10] sm:$0xff]
    %v541 = vld [vmem:[#allocation5 + $0xc18] sm:$0xff]
    %v542 = vld [vmem:[#allocation5 + $0xc20] sm:$0xff]
    %v543 = vld [vmem:[#allocation5 + $0xc28] sm:$0xff]
    %v544 = vld [vmem:[#allocation5 + $0xc30] sm:$0xff]
    %v545 = vld [vmem:[#allocation5 + $0xc38] sm:$0xff]
    %v546 = vld [vmem:[#allocation5 + $0xc40] sm:$0xff]
    %v547 = vld [vmem:[#allocation5 + $0xc48] sm:$0xff]
    %v548 = vld [vmem:[#allocation5 + $0xc50] sm:$0xff]
    %v549 = vld [vmem:[#allocation5 + $0xc58] sm:$0xff]
    %v550 = vld [vmem:[#allocation5 + $0xc60] sm:$0xff]
    %v551 = vld [vmem:[#allocation5 + $0xc68] sm:$0xff]
    %v552 = vld [vmem:[#allocation5 + $0xc70] sm:$0xff]
    %v553 = vld [vmem:[#allocation5 + $0xc78] sm:$0xff]
    %v554 = vld [vmem:[#allocation5 + $0xc80] sm:$0xff]
    %v555 = vld [vmem:[#allocation5 + $0xc88] sm:$0xff]
    %v556 = vld [vmem:[#allocation5 + $0xc90] sm:$0xff]
    %v557 = vld [vmem:[#allocation5 + $0xc98] sm:$0xff]
    %v558 = vld [vmem:[#allocation5 + $0xca0] sm:$0xff]
    %v559 = vld [vmem:[#allocation5 + $0xca8] sm:$0xff]
    %v560 = vld [vmem:[#allocation5 + $0xcb0] sm:$0xff]
    %v561 = vld [vmem:[#allocation5 + $0xcb8] sm:$0xff]
    %v562 = vld [vmem:[#allocation5 + $0xcc0] sm:$0xff]
    %v563 = vld [vmem:[#allocation5 + $0xcc8] sm:$0xff]
    %v564 = vld [vmem:[#allocation5 + $0xcd0] sm:$0xff]
    %v565 = vld [vmem:[#allocation5 + $0xcd8] sm:$0xff]
    %v566 = vld [vmem:[#allocation5 + $0xce0] sm:$0xff]
    %v567 = vld [vmem:[#allocation5 + $0xce8] sm:$0xff]
    %v568 = vld [vmem:[#allocation5 + $0xcf0] sm:$0xff]
    %v569 = vld [vmem:[#allocation5 + $0xcf8] sm:$0xff]
    %v570 = vld [vmem:[#allocation5 + $0xd00] sm:$0xff]
    %v571 = vld [vmem:[#allocation5 + $0xd08] sm:$0xff]
    %v572 = vld [vmem:[#allocation5 + $0xd10] sm:$0xff]
    %v573 = vld [vmem:[#allocation5 + $0xd18] sm:$0xff]
    %v574 = vld [vmem:[#allocation5 + $0xd20] sm:$0xff]
    %v575 = vld [vmem:[#allocation5 + $0xd28] sm:$0xff]
    %v576 = vld [vmem:[#allocation5 + $0xd30] sm:$0xff]
    %v577 = vld [vmem:[#allocation5 + $0xd38] sm:$0xff]
    %v578 = vld [vmem:[#allocation5 + $0xd40] sm:$0xff]
    %v579 = vld [vmem:[#allocation5 + $0xd48] sm:$0xff]
    %v580 = vld [vmem:[#allocation5 + $0xd50] sm:$0xff]
    %v581 = vld [vmem:[#allocation5 + $0xd58] sm:$0xff]
    %v582 = vld [vmem:[#allocation5 + $0xd60] sm:$0xff]
    %v583 = vld [vmem:[#allocation5 + $0xd68] sm:$0xff]
    %v584 = vld [vmem:[#allocation5 + $0xd70] sm:$0xff]
    %v585 = vld [vmem:[#allocation5 + $0xd78] sm:$0xff]
    %v586 = vld [vmem:[#allocation5 + $0xd80] sm:$0xff]
    %v587 = vld [vmem:[#allocation5 + $0xd88] sm:$0xff]
    %v588 = vld [vmem:[#allocation5 + $0xd90] sm:$0xff]
    %v589 = vld [vmem:[#allocation5 + $0xd98] sm:$0xff]
    %v590 = vld [vmem:[#allocation5 + $0xda0] sm:$0xff]
    %v591 = vld [vmem:[#allocation5 + $0xda8] sm:$0xff]
    %v592 = vld [vmem:[#allocation5 + $0xdb0] sm:$0xff]
    %v593 = vld [vmem:[#allocation5 + $0xdb8] sm:$0xff]
    %v594 = vld [vmem:[#allocation5 + $0xdc0] sm:$0xff]
    %v595 = vld [vmem:[#allocation5 + $0xdc8] sm:$0xff]
    %v596 = vld [vmem:[#allocation5 + $0xdd0] sm:$0xff]
    %v597 = vld [vmem:[#allocation5 + $0xdd8] sm:$0xff]
    %v598 = vld [vmem:[#allocation5 + $0xde0] sm:$0xff]
    %v599 = vld [vmem:[#allocation5 + $0xde8] sm:$0xff]
    %v600 = vld [vmem:[#allocation5 + $0xdf0] sm:$0xff]
    %v601 = vld [vmem:[#allocation5 + $0xdf8] sm:$0xff]
    %v602 = vld [vmem:[#allocation5 + $0xe00] sm:$0xff]
    %v603 = vld [vmem:[#allocation5 + $0xe08] sm:$0xff]
    %v604 = vld [vmem:[#allocation5 + $0xe10] sm:$0xff]
    %v605 = vld [vmem:[#allocation5 + $0xe18] sm:$0xff]
    %v606 = vld [vmem:[#allocation5 + $0xe20] sm:$0xff]
    %v607 = vld [vmem:[#allocation5 + $0xe28] sm:$0xff]
    %v608 = vld [vmem:[#allocation5 + $0xe30] sm:$0xff]
    %v609 = vld [vmem:[#allocation5 + $0xe38] sm:$0xff]
    %v610 = vld [vmem:[#allocation5 + $0xe40] sm:$0xff]
    %v611 = vld [vmem:[#allocation5 + $0xe48] sm:$0xff]
    %v612 = vld [vmem:[#allocation5 + $0xe50] sm:$0xff]
    %v613 = vld [vmem:[#allocation5 + $0xe58] sm:$0xff]
    %v614 = vld [vmem:[#allocation5 + $0xe60] sm:$0xff]
    %v615 = vld [vmem:[#allocation5 + $0xe68] sm:$0xff]
    %v616 = vld [vmem:[#allocation5 + $0xe70] sm:$0xff]
    %v617 = vld [vmem:[#allocation5 + $0xe78] sm:$0xff]
    %v618 = vld [vmem:[#allocation5 + $0xe80] sm:$0xff]
    %v619 = vld [vmem:[#allocation5 + $0xe88] sm:$0xff]
    %v620 = vld [vmem:[#allocation5 + $0xe90] sm:$0xff]
    %v621 = vld [vmem:[#allocation5 + $0xe98] sm:$0xff]
    %v622 = vld [vmem:[#allocation5 + $0xea0] sm:$0xff]
    %v623 = vld [vmem:[#allocation5 + $0xea8] sm:$0xff]
    %v624 = vld [vmem:[#allocation5 + $0xeb0] sm:$0xff]
    %v625 = vld [vmem:[#allocation5 + $0xeb8] sm:$0xff]
    %v626 = vld [vmem:[#allocation5 + $0xec0] sm:$0xff]
    %v627 = vld [vmem:[#allocation5 + $0xec8] sm:$0xff]
    %v628 = vld [vmem:[#allocation5 + $0xed0] sm:$0xff]
    %v629 = vld [vmem:[#allocation5 + $0xed8] sm:$0xff]
    %v630 = vld [vmem:[#allocation5 + $0xee0] sm:$0xff]
    %v631 = vld [vmem:[#allocation5 + $0xee8] sm:$0xff]
    %v632 = vld [vmem:[#allocation5 + $0xef0] sm:$0xff]
    %v633 = vld [vmem:[#allocation5 + $0xef8] sm:$0xff]
    %v634 = vld [vmem:[#allocation5 + $0xf00] sm:$0xff]
    %v635 = vld [vmem:[#allocation5 + $0xf08] sm:$0xff]
    %v636 = vld [vmem:[#allocation5 + $0xf10] sm:$0xff]
    %v637 = vld [vmem:[#allocation5 + $0xf18] sm:$0xff]
    %v638 = vld [vmem:[#allocation5 + $0xf20] sm:$0xff]
    %v639 = vld [vmem:[#allocation5 + $0xf28] sm:$0xff]
    %v640 = vld [vmem:[#allocation5 + $0xf30] sm:$0xff]
    %v641 = vld [vmem:[#allocation5 + $0xf38] sm:$0xff]
    %v642 = vld [vmem:[#allocation5 + $0xf40] sm:$0xff]
    %v643 = vld [vmem:[#allocation5 + $0xf48] sm:$0xff]
    %v644 = vld [vmem:[#allocation5 + $0xf50] sm:$0xff]
    %v645 = vld [vmem:[#allocation5 + $0xf58] sm:$0xff]
    %v646 = vld [vmem:[#allocation5 + $0xf60] sm:$0xff]
    %v647 = vld [vmem:[#allocation5 + $0xf68] sm:$0xff]
    %v648 = vld [vmem:[#allocation5 + $0xf70] sm:$0xff]
    %v649 = vld [vmem:[#allocation5 + $0xf78] sm:$0xff]
    %v650 = vld [vmem:[#allocation5 + $0xf80] sm:$0xff]
    %v651 = vld [vmem:[#allocation5 + $0xf88] sm:$0xff]
    %v652 = vld [vmem:[#allocation5 + $0xf90] sm:$0xff]
    %v653 = vld [vmem:[#allocation5 + $0xf98] sm:$0xff]
    %v654 = vld [vmem:[#allocation5 + $0xfa0] sm:$0xff]
    %v655 = vld [vmem:[#allocation5 + $0xfa8] sm:$0xff]
    %v656 = vld [vmem:[#allocation5 + $0xfb0] sm:$0xff]
    %v657 = vld [vmem:[#allocation5 + $0xfb8] sm:$0xff]
    %v658 = vld [vmem:[#allocation5 + $0xfc0] sm:$0xff]
    %v659 = vld [vmem:[#allocation5 + $0xfc8] sm:$0xff]
    %v660 = vld [vmem:[#allocation5 + $0xfd0] sm:$0xff]
    %v661 = vld [vmem:[#allocation5 + $0xfd8] sm:$0xff]
    %v662 = vld [vmem:[#allocation5 + $0xfe0] sm:$0xff]
    %v663 = vld [vmem:[#allocation5 + $0xfe8] sm:$0xff]
    %v664 = vld [vmem:[#allocation5 + $0xff0] sm:$0xff]
    %v665 = vld [vmem:[#allocation5 + $0xff8] sm:$0xff]
    %v666 = vld [vmem:[#allocation5 + $0x1000] sm:$0xff]
    %v667 = vld [vmem:[#allocation5 + $0x1008] sm:$0xff]
    %v668 = vld [vmem:[#allocation5 + $0x1010] sm:$0xff]
    %v669 = vld [vmem:[#allocation5 + $0x1018] sm:$0xff]
    %v670 = vld [vmem:[#allocation5 + $0x1020] sm:$0xff]
    %v671 = vld [vmem:[#allocation5 + $0x1028] sm:$0xff]
    %v672 = vld [vmem:[#allocation5 + $0x1030] sm:$0xff]
    %v673 = vld [vmem:[#allocation5 + $0x1038] sm:$0xff]
    %v674 = vld [vmem:[#allocation5 + $0x1040] sm:$0xff]
    %v675 = vld [vmem:[#allocation5 + $0x1048] sm:$0xff]
    %v676 = vld [vmem:[#allocation5 + $0x1050] sm:$0xff]
    %v677 = vld [vmem:[#allocation5 + $0x1058] sm:$0xff]
    %v678 = vld [vmem:[#allocation5 + $0x1060] sm:$0xff]
    %v679 = vld [vmem:[#allocation5 + $0x1068] sm:$0xff]
    %v680 = vld [vmem:[#allocation5 + $0x1070] sm:$0xff]
    %v681 = vld [vmem:[#allocation5 + $0x1078] sm:$0xff]
    %v682 = vld [vmem:[#allocation5 + $0x1080] sm:$0xff]
    %v683 = vld [vmem:[#allocation5 + $0x1088] sm:$0xff]
    %v684 = vld [vmem:[#allocation5 + $0x1090] sm:$0xff]
    %v685 = vld [vmem:[#allocation5 + $0x1098] sm:$0xff]
    %v686 = vld [vmem:[#allocation5 + $0x10a0] sm:$0xff]
    %v687 = vld [vmem:[#allocation5 + $0x10a8] sm:$0xff]
    %v688 = vld [vmem:[#allocation5 + $0x10b0] sm:$0xff]
    %v689 = vld [vmem:[#allocation5 + $0x10b8] sm:$0xff]
    %v690 = vld [vmem:[#allocation5 + $0x10c0] sm:$0xff]
    %v691 = vld [vmem:[#allocation5 + $0x10c8] sm:$0xff]
    %v692 = vld [vmem:[#allocation5 + $0x10d0] sm:$0xff]
    %v693 = vld [vmem:[#allocation5 + $0x10d8] sm:$0xff]
    %v694 = vld [vmem:[#allocation5 + $0x10e0] sm:$0xff]
    %v695 = vld [vmem:[#allocation5 + $0x10e8] sm:$0xff]
    %v696 = vld [vmem:[#allocation5 + $0x10f0] sm:$0xff]
    %v697 = vld [vmem:[#allocation5 + $0x10f8] sm:$0xff]
    %v698 = vld [vmem:[#allocation5 + $0x1100] sm:$0xff]
    %v699 = vld [vmem:[#allocation5 + $0x1108] sm:$0xff]
    %v700 = vld [vmem:[#allocation5 + $0x1110] sm:$0xff]
    %v701 = vld [vmem:[#allocation5 + $0x1118] sm:$0xff]
    %v702 = vld [vmem:[#allocation5 + $0x1120] sm:$0xff]
    %v703 = vld [vmem:[#allocation5 + $0x1128] sm:$0xff]
    %v704 = vld [vmem:[#allocation5 + $0x1130] sm:$0xff]
    %v705 = vld [vmem:[#allocation5 + $0x1138] sm:$0xff]
    %v706 = vld [vmem:[#allocation5 + $0x1140] sm:$0xff]
    %v707 = vld [vmem:[#allocation5 + $0x1148] sm:$0xff]
    %v708 = vld [vmem:[#allocation5 + $0x1150] sm:$0xff]
    %v709 = vld [vmem:[#allocation5 + $0x1158] sm:$0xff]
    %v710 = vld [vmem:[#allocation5 + $0x1160] sm:$0xff]
    %v711 = vld [vmem:[#allocation5 + $0x1168] sm:$0xff]
    %v712 = vld [vmem:[#allocation5 + $0x1170] sm:$0xff]
    %v713 = vld [vmem:[#allocation5 + $0x1178] sm:$0xff]
    %v714 = vld [vmem:[#allocation5 + $0x1180] sm:$0xff]
    %v715 = vld [vmem:[#allocation5 + $0x1188] sm:$0xff]
    %v716 = vld [vmem:[#allocation5 + $0x1190] sm:$0xff]
    %v717 = vld [vmem:[#allocation5 + $0x1198] sm:$0xff]
    %v718 = vld [vmem:[#allocation5 + $0x11a0] sm:$0xff]
    %v719 = vld [vmem:[#allocation5 + $0x11a8] sm:$0xff]
    %v720 = vld [vmem:[#allocation5 + $0x11b0] sm:$0xff]
    %v721 = vld [vmem:[#allocation5 + $0x11b8] sm:$0xff]
    %v722 = vld [vmem:[#allocation5 + $0x11c0] sm:$0xff]
    %v723 = vld [vmem:[#allocation5 + $0x11c8] sm:$0xff]
    %v724 = vld [vmem:[#allocation5 + $0x11d0] sm:$0xff]
    %v725 = vld [vmem:[#allocation5 + $0x11d8] sm:$0xff]
    %v726 = vld [vmem:[#allocation5 + $0x11e0] sm:$0xff]
    %v727 = vld [vmem:[#allocation5 + $0x11e8] sm:$0xff]
    %v728 = vld [vmem:[#allocation5 + $0x11f0] sm:$0xff]
    %v729 = vld [vmem:[#allocation5 + $0x11f8] sm:$0xff]
    %v730 = vld [vmem:[#allocation5 + $0x1200] sm:$0xff]
    %v731 = vld [vmem:[#allocation5 + $0x1208] sm:$0xff]
    %v732 = vld [vmem:[#allocation5 + $0x1210] sm:$0xff]
    %v733 = vld [vmem:[#allocation5 + $0x1218] sm:$0xff]
    %v734 = vld [vmem:[#allocation5 + $0x1220] sm:$0xff]
    %v735 = vld [vmem:[#allocation5 + $0x1228] sm:$0xff]
    %v736 = vld [vmem:[#allocation5 + $0x1230] sm:$0xff]
    %v737 = vld [vmem:[#allocation5 + $0x1238] sm:$0xff]
    %v738 = vld [vmem:[#allocation5 + $0x1240] sm:$0xff]
    %v739 = vld [vmem:[#allocation5 + $0x1248] sm:$0xff]
    %v740 = vld [vmem:[#allocation5 + $0x1250] sm:$0xff]
    %v741 = vld [vmem:[#allocation5 + $0x1258] sm:$0xff]
    %v742 = vld [vmem:[#allocation5 + $0x1260] sm:$0xff]
    %v743 = vld [vmem:[#allocation5 + $0x1268] sm:$0xff]
    %v744 = vld [vmem:[#allocation5 + $0x1270] sm:$0xff]
    %v745 = vld [vmem:[#allocation5 + $0x1278] sm:$0xff]
    %v746 = vld [vmem:[#allocation5 + $0x1280] sm:$0xff]
    %v747 = vld [vmem:[#allocation5 + $0x1288] sm:$0xff]
    %v748 = vld [vmem:[#allocation5 + $0x1290] sm:$0xff]
    %v749 = vld [vmem:[#allocation5 + $0x1298] sm:$0xff]
    %v750 = vld [vmem:[#allocation5 + $0x12a0] sm:$0xff]
    %v751 = vld [vmem:[#allocation5 + $0x12a8] sm:$0xff]
    %v752 = vld [vmem:[#allocation5 + $0x12b0] sm:$0xff]
    %v753 = vld [vmem:[#allocation5 + $0x12b8] sm:$0xff]
    %v754 = vld [vmem:[#allocation5 + $0x12c0] sm:$0xff]
    %v755 = vld [vmem:[#allocation5 + $0x12c8] sm:$0xff]
    %v756 = vld [vmem:[#allocation5 + $0x12d0] sm:$0xff]
    %v757 = vld [vmem:[#allocation5 + $0x12d8] sm:$0xff]
    %v758 = vld [vmem:[#allocation5 + $0x12e0] sm:$0xff]
    %v759 = vld [vmem:[#allocation5 + $0x12e8] sm:$0xff]
    %v760 = vld [vmem:[#allocation5 + $0x12f0] sm:$0xff]
    %v761 = vld [vmem:[#allocation5 + $0x12f8] sm:$0xff]
    %v762 = vld [vmem:[#allocation5 + $0x1300] sm:$0xff]
    %v763 = vld [vmem:[#allocation5 + $0x1308] sm:$0xff]
    %v764 = vld [vmem:[#allocation5 + $0x1310] sm:$0xff]
    %v765 = vld [vmem:[#allocation5 + $0x1318] sm:$0xff]
    %v766 = vld [vmem:[#allocation5 + $0x1320] sm:$0xff]
    %v767 = vld [vmem:[#allocation5 + $0x1328] sm:$0xff]
    %v768 = vld [vmem:[#allocation5 + $0x1330] sm:$0xff]
    %v769 = vld [vmem:[#allocation5 + $0x1338] sm:$0xff]
    %v770 = vld [vmem:[#allocation5 + $0x1340] sm:$0xff]
    %v771 = vld [vmem:[#allocation5 + $0x1348] sm:$0xff]
    %v772 = vld [vmem:[#allocation5 + $0x1350] sm:$0xff]
    %v773 = vld [vmem:[#allocation5 + $0x1358] sm:$0xff]
    %v774 = vld [vmem:[#allocation5 + $0x1360] sm:$0xff]
    %v775 = vld [vmem:[#allocation5 + $0x1368] sm:$0xff]
    %v776 = vld [vmem:[#allocation5 + $0x1370] sm:$0xff]
    %v777 = vld [vmem:[#allocation5 + $0x1378] sm:$0xff]
    %v778 = vld [vmem:[#allocation5 + $0x1380] sm:$0xff]
    %v779 = vld [vmem:[#allocation5 + $0x1388] sm:$0xff]
    %v780 = vld [vmem:[#allocation5 + $0x1390] sm:$0xff]
    %v781 = vld [vmem:[#allocation5 + $0x1398] sm:$0xff]
    %v782 = vld [vmem:[#allocation5 + $0x13a0] sm:$0xff]
    %v783 = vld [vmem:[#allocation5 + $0x13a8] sm:$0xff]
    %v784 = vld [vmem:[#allocation5 + $0x13b0] sm:$0xff]
    %v785 = vld [vmem:[#allocation5 + $0x13b8] sm:$0xff]
    %v786 = vld [vmem:[#allocation5 + $0x13c0] sm:$0xff]
    %v787 = vld [vmem:[#allocation5 + $0x13c8] sm:$0xff]
    %v788 = vld [vmem:[#allocation5 + $0x13d0] sm:$0xff]
    %v789 = vld [vmem:[#allocation5 + $0x13d8] sm:$0xff]
    %v790 = vld [vmem:[#allocation5 + $0x13e0] sm:$0xff]
    %v791 = vld [vmem:[#allocation5 + $0x13e8] sm:$0xff]
    %v792 = vld [vmem:[#allocation5 + $0x13f0] sm:$0xff]
    %v793 = vld [vmem:[#allocation5 + $0x13f8] sm:$0xff]
    %v794 = vld [vmem:[#allocation5 + $0x1400] sm:$0xff]
    %v795 = vld [vmem:[#allocation5 + $0x1408] sm:$0xff]
    %v796 = vld [vmem:[#allocation5 + $0x1410] sm:$0xff]
    %v797 = vld [vmem:[#allocation5 + $0x1418] sm:$0xff]
    %v798 = vld [vmem:[#allocation5 + $0x1420] sm:$0xff]
    %v799 = vld [vmem:[#allocation5 + $0x1428] sm:$0xff]
    %v800 = vld [vmem:[#allocation5 + $0x1430] sm:$0xff]
    %v801 = vld [vmem:[#allocation5 + $0x1438] sm:$0xff]
    %v802 = vld [vmem:[#allocation5 + $0x1440] sm:$0xff]
    %v803 = vld [vmem:[#allocation5 + $0x1448] sm:$0xff]
    %v804 = vld [vmem:[#allocation5 + $0x1450] sm:$0xff]
    %v805 = vld [vmem:[#allocation5 + $0x1458] sm:$0xff]
    %v806 = vld [vmem:[#allocation5 + $0x1460] sm:$0xff]
    %v807 = vld [vmem:[#allocation5 + $0x1468] sm:$0xff]
    %v808 = vld [vmem:[#allocation5 + $0x1470] sm:$0xff]
    %v809 = vld [vmem:[#allocation5 + $0x1478] sm:$0xff]
    %v810 = vld [vmem:[#allocation5 + $0x1480] sm:$0xff]
    %v811 = vld [vmem:[#allocation5 + $0x1488] sm:$0xff]
    %v812 = vld [vmem:[#allocation5 + $0x1490] sm:$0xff]
    %v813 = vld [vmem:[#allocation5 + $0x1498] sm:$0xff]
    %v814 = vld [vmem:[#allocation5 + $0x14a0] sm:$0xff]
    %v815 = vld [vmem:[#allocation5 + $0x14a8] sm:$0xff]
    %v816 = vld [vmem:[#allocation5 + $0x14b0] sm:$0xff]
    %v817 = vld [vmem:[#allocation5 + $0x14b8] sm:$0xff]
    %v818 = vld [vmem:[#allocation5 + $0x14c0] sm:$0xff]
    %v819 = vld [vmem:[#allocation5 + $0x14c8] sm:$0xff]
    %v820 = vld [vmem:[#allocation5 + $0x14d0] sm:$0xff]
    %v821 = vld [vmem:[#allocation5 + $0x14d8] sm:$0xff]
    %v822 = vld [vmem:[#allocation5 + $0x14e0] sm:$0xff]
    %v823 = vld [vmem:[#allocation5 + $0x14e8] sm:$0xff]
    %v824 = vld [vmem:[#allocation5 + $0x14f0] sm:$0xff]
    %v825 = vld [vmem:[#allocation5 + $0x14f8] sm:$0xff]
    %v826 = vld [vmem:[#allocation5 + $0x1500] sm:$0xff]
    %v827 = vld [vmem:[#allocation5 + $0x1508] sm:$0xff]
    %v828 = vld [vmem:[#allocation5 + $0x1510] sm:$0xff]
    %v829 = vld [vmem:[#allocation5 + $0x1518] sm:$0xff]
    %v830 = vld [vmem:[#allocation5 + $0x1520] sm:$0xff]
    %v831 = vld [vmem:[#allocation5 + $0x1528] sm:$0xff]
    %v832 = vld [vmem:[#allocation5 + $0x1530] sm:$0xff]
    %v833 = vld [vmem:[#allocation5 + $0x1538] sm:$0xff]
    %v834 = vld [vmem:[#allocation5 + $0x1540] sm:$0xff]
    %v835 = vld [vmem:[#allocation5 + $0x1548] sm:$0xff]
    %v836 = vld [vmem:[#allocation5 + $0x1550] sm:$0xff]
    %v837 = vld [vmem:[#allocation5 + $0x1558] sm:$0xff]
    %v838 = vld [vmem:[#allocation5 + $0x1560] sm:$0xff]
    %v839 = vld [vmem:[#allocation5 + $0x1568] sm:$0xff]
    %v840 = vld [vmem:[#allocation5 + $0x1570] sm:$0xff]
    %v841 = vld [vmem:[#allocation5 + $0x1578] sm:$0xff]
    %v842 = vld [vmem:[#allocation5 + $0x1580] sm:$0xff]
    %v843 = vld [vmem:[#allocation5 + $0x1588] sm:$0xff]
    %v844 = vld [vmem:[#allocation5 + $0x1590] sm:$0xff]
    %v845 = vld [vmem:[#allocation5 + $0x1598] sm:$0xff]
    %v846 = vld [vmem:[#allocation5 + $0x15a0] sm:$0xff]
    %v847 = vld [vmem:[#allocation5 + $0x15a8] sm:$0xff]
    %v848 = vld [vmem:[#allocation5 + $0x15b0] sm:$0xff]
    %v849 = vld [vmem:[#allocation5 + $0x15b8] sm:$0xff]
    %v850 = vld [vmem:[#allocation5 + $0x15c0] sm:$0xff]
    %v851 = vld [vmem:[#allocation5 + $0x15c8] sm:$0xff]
    %v852 = vld [vmem:[#allocation5 + $0x15d0] sm:$0xff]
    %v853 = vld [vmem:[#allocation5 + $0x15d8] sm:$0xff]
    %v854 = vld [vmem:[#allocation5 + $0x15e0] sm:$0xff]
    %v855 = vld [vmem:[#allocation5 + $0x15e8] sm:$0xff]
    %v856 = vld [vmem:[#allocation5 + $0x15f0] sm:$0xff]
    %v857 = vld [vmem:[#allocation5 + $0x15f8] sm:$0xff]
    %v858 = vld [vmem:[#allocation5 + $0x1600] sm:$0xff]
    %v859 = vld [vmem:[#allocation5 + $0x1608] sm:$0xff]
    %v860 = vld [vmem:[#allocation5 + $0x1610] sm:$0xff]
    %v861 = vld [vmem:[#allocation5 + $0x1618] sm:$0xff]
    %v862 = vld [vmem:[#allocation5 + $0x1620] sm:$0xff]
    %v863 = vld [vmem:[#allocation5 + $0x1628] sm:$0xff]
    %v864 = vld [vmem:[#allocation5 + $0x1630] sm:$0xff]
    %v865 = vld [vmem:[#allocation5 + $0x1638] sm:$0xff]
    %v866 = vld [vmem:[#allocation5 + $0x1640] sm:$0xff]
    %v867 = vld [vmem:[#allocation5 + $0x1648] sm:$0xff]
    %v868 = vld [vmem:[#allocation5 + $0x1650] sm:$0xff]
    %v869 = vld [vmem:[#allocation5 + $0x1658] sm:$0xff]
    %v870 = vld [vmem:[#allocation5 + $0x1660] sm:$0xff]
    %v871 = vld [vmem:[#allocation5 + $0x1668] sm:$0xff]
    %v872 = vld [vmem:[#allocation5 + $0x1670] sm:$0xff]
    %v873 = vld [vmem:[#allocation5 + $0x1678] sm:$0xff]
    %v874 = vld [vmem:[#allocation5 + $0x1680] sm:$0xff]
    %v875 = vld [vmem:[#allocation5 + $0x1688] sm:$0xff]
    %v876 = vld [vmem:[#allocation5 + $0x1690] sm:$0xff]
    %v877 = vld [vmem:[#allocation5 + $0x1698] sm:$0xff]
    %v878 = vld [vmem:[#allocation5 + $0x16a0] sm:$0xff]
    %v879 = vld [vmem:[#allocation5 + $0x16a8] sm:$0xff]
    %v880 = vld [vmem:[#allocation5 + $0x16b0] sm:$0xff]
    %v881 = vld [vmem:[#allocation5 + $0x16b8] sm:$0xff]
    %v882 = vld [vmem:[#allocation5 + $0x16c0] sm:$0xff]
    %v883 = vld [vmem:[#allocation5 + $0x16c8] sm:$0xff]
    %v884 = vld [vmem:[#allocation5 + $0x16d0] sm:$0xff]
    %v885 = vld [vmem:[#allocation5 + $0x16d8] sm:$0xff]
    %v886 = vld [vmem:[#allocation5 + $0x16e0] sm:$0xff]
    %v887 = vld [vmem:[#allocation5 + $0x16e8] sm:$0xff]
    %v888 = vld [vmem:[#allocation5 + $0x16f0] sm:$0xff]
    %v889 = vld [vmem:[#allocation5 + $0x16f8] sm:$0xff]
    %v890 = vld [vmem:[#allocation5 + $0x1700] sm:$0xff]
    %v891 = vld [vmem:[#allocation5 + $0x1708] sm:$0xff]
    %v892 = vld [vmem:[#allocation5 + $0x1710] sm:$0xff]
    %v893 = vld [vmem:[#allocation5 + $0x1718] sm:$0xff]
    %v894 = vld [vmem:[#allocation5 + $0x1720] sm:$0xff]
    %v895 = vld [vmem:[#allocation5 + $0x1728] sm:$0xff]
    %v896 = vld [vmem:[#allocation5 + $0x1730] sm:$0xff]
    %v897 = vld [vmem:[#allocation5 + $0x1738] sm:$0xff]
    %v898 = vld [vmem:[#allocation5 + $0x1740] sm:$0xff]
    %v899 = vld [vmem:[#allocation5 + $0x1748] sm:$0xff]
    %v900 = vld [vmem:[#allocation5 + $0x1750] sm:$0xff]
    %v901 = vld [vmem:[#allocation5 + $0x1758] sm:$0xff]
    %v902 = vld [vmem:[#allocation5 + $0x1760] sm:$0xff]
    %v903 = vld [vmem:[#allocation5 + $0x1768] sm:$0xff]
    %v904 = vld [vmem:[#allocation5 + $0x1770] sm:$0xff]
    %v905 = vld [vmem:[#allocation5 + $0x1778] sm:$0xff]
    %v906 = vld [vmem:[#allocation5 + $0x1780] sm:$0xff]
    %v907 = vld [vmem:[#allocation5 + $0x1788] sm:$0xff]
    %v908 = vld [vmem:[#allocation5 + $0x1790] sm:$0xff]
    %v909 = vld [vmem:[#allocation5 + $0x1798] sm:$0xff]
    %v910 = vld [vmem:[#allocation5 + $0x17a0] sm:$0xff]
    %v911 = vld [vmem:[#allocation5 + $0x17a8] sm:$0xff]
    %v912 = vld [vmem:[#allocation5 + $0x17b0] sm:$0xff]
    %v913 = vld [vmem:[#allocation5 + $0x17b8] sm:$0xff]
    %v914 = vld [vmem:[#allocation5 + $0x17c0] sm:$0xff]
    %v915 = vld [vmem:[#allocation5 + $0x17c8] sm:$0xff]
    %v916 = vld [vmem:[#allocation5 + $0x17d0] sm:$0xff]
    %v917 = vld [vmem:[#allocation5 + $0x17d8] sm:$0xff]
    %v918 = vld [vmem:[#allocation5 + $0x17e0] sm:$0xff]
    %v919 = vld [vmem:[#allocation5 + $0x17e8] sm:$0xff]
    %v920 = vld [vmem:[#allocation5 + $0x17f0] sm:$0xff]
    %v921 = vld [vmem:[#allocation5 + $0x17f8] sm:$0xff]
    %v922 = vld [vmem:[#allocation7] sm:$0x3f]
    %v924 = vlaneseq
    %v925 = vshrl.u32 %v924, 7
    %v926 = vsub.s32 0, %v925
    %v927 = vrot.slane %v922, %v926
    %v928 = vlaneseq
    %v929 = vshrl.u32 %v928, 7
    %v930 = vsub.s32 1, %v929
    %v931 = vrot.slane %v922, %v930
    %v932 = vlaneseq
    %v933 = vshrl.u32 %v932, 7
    %v934 = vsub.s32 2, %v933
    %v935 = vrot.slane %v922, %v934
    %v936 = vlaneseq
    %v937 = vshrl.u32 %v936, 7
    %v938 = vsub.s32 3, %v937
    %v939 = vrot.slane %v922, %v938
    %v940 = vlaneseq
    %v941 = vshrl.u32 %v940, 7
    %v942 = vsub.s32 4, %v941
    %v943 = vrot.slane %v922, %v942
    %v944 = vlaneseq
    %v945 = vshrl.u32 %v944, 7
    %v946 = vsub.s32 5, %v945
    %v947 = vrot.slane %v922, %v946
    %v962 = vunpack.c.l.b16 %v146
    %v963 = vunpack.c.h.b16 %v146
    %v964 = vunpack.c.l.b16 %v147
    %v965 = vunpack.c.h.b16 %v147
    %v966 = vunpack.c.l.b16 %v148
    %v967 = vunpack.c.h.b16 %v148
    %v968 = vunpack.c.l.b16 %v149
    %v969 = vunpack.c.h.b16 %v149
    %v970 = vunpack.c.l.b16 %v150
    %v971 = vunpack.c.h.b16 %v150
    %v972 = vunpack.c.l.b16 %v151
    %v973 = vunpack.c.h.b16 %v151
    %v974 = vunpack.c.l.b16 %v152
    %v975 = vunpack.c.h.b16 %v152
    %v976 = vunpack.c.l.b16 %v153
    %v977 = vunpack.c.h.b16 %v153
    %v978 = vpack.c.b16 %v962, %v962
    %v979 = vpack.c.b16 %v963, %v963
    %v980 = vpack.c.b16 %v964, %v964
    %v981 = vpack.c.b16 %v965, %v965
    %v982 = vpack.c.b16 %v966, %v966
    %v983 = vpack.c.b16 %v967, %v967
    %v984 = vpack.c.b16 %v968, %v968
    %v985 = vpack.c.b16 %v969, %v969
    %v986 = vpack.c.b16 %v970, %v970
    %v987 = vpack.c.b16 %v971, %v971
    %v988 = vpack.c.b16 %v972, %v972
    %v989 = vpack.c.b16 %v973, %v973
    %v990 = vpack.c.b16 %v974, %v974
    %v991 = vpack.c.b16 %v975, %v975
    %v992 = vpack.c.b16 %v976, %v976
    %v993 = vpack.c.b16 %v977, %v977
    %v1778 = vunpack.c.l.b16 %v154
    %v1779 = vunpack.c.h.b16 %v154
    %v1780 = vunpack.c.l.b16 %v155
    %v1781 = vunpack.c.h.b16 %v155
    %v1782 = vunpack.c.l.b16 %v156
    %v1783 = vunpack.c.h.b16 %v156
    %v1784 = vunpack.c.l.b16 %v157
    %v1785 = vunpack.c.h.b16 %v157
    %v1786 = vunpack.c.l.b16 %v158
    %v1787 = vunpack.c.h.b16 %v158
    %v1788 = vunpack.c.l.b16 %v159
    %v1789 = vunpack.c.h.b16 %v159
    %v1790 = vunpack.c.l.b16 %v160
    %v1791 = vunpack.c.h.b16 %v160
    %v1792 = vunpack.c.l.b16 %v161
    %v1793 = vunpack.c.h.b16 %v161
    %v1794 = vunpack.c.l.b16 %v162
    %v1795 = vunpack.c.h.b16 %v162
    %v1796 = vunpack.c.l.b16 %v163
    %v1797 = vunpack.c.h.b16 %v163
    %v1798 = vunpack.c.l.b16 %v164
    %v1799 = vunpack.c.h.b16 %v164
    %v1800 = vunpack.c.l.b16 %v165
    %v1801 = vunpack.c.h.b16 %v165
    %v1802 = vunpack.c.l.b16 %v166
    %v1803 = vunpack.c.h.b16 %v166
    %v1804 = vunpack.c.l.b16 %v167
    %v1805 = vunpack.c.h.b16 %v167
    %v1806 = vunpack.c.l.b16 %v168
    %v1807 = vunpack.c.h.b16 %v168
    %v1808 = vunpack.c.l.b16 %v169
    %v1809 = vunpack.c.h.b16 %v169
    %v1810 = vunpack.c.l.b16 %v170
    %v1811 = vunpack.c.h.b16 %v170
    %v1812 = vunpack.c.l.b16 %v171
    %v1813 = vunpack.c.h.b16 %v171
    %v1814 = vunpack.c.l.b16 %v172
    %v1815 = vunpack.c.h.b16 %v172
    %v1816 = vunpack.c.l.b16 %v173
    %v1817 = vunpack.c.h.b16 %v173
    %v1818 = vunpack.c.l.b16 %v174
    %v1819 = vunpack.c.h.b16 %v174
    %v1820 = vunpack.c.l.b16 %v175
    %v1821 = vunpack.c.h.b16 %v175
    %v1822 = vunpack.c.l.b16 %v176
    %v1823 = vunpack.c.h.b16 %v176
    %v1824 = vunpack.c.l.b16 %v177
    %v1825 = vunpack.c.h.b16 %v177
    %v1826 = vunpack.c.l.b16 %v178
    %v1827 = vunpack.c.h.b16 %v178
    %v1828 = vunpack.c.l.b16 %v179
    %v1829 = vunpack.c.h.b16 %v179
    %v1830 = vunpack.c.l.b16 %v180
    %v1831 = vunpack.c.h.b16 %v180
    %v1832 = vunpack.c.l.b16 %v181
    %v1833 = vunpack.c.h.b16 %v181
    %v1834 = vunpack.c.l.b16 %v182
    %v1835 = vunpack.c.h.b16 %v182
    %v1836 = vunpack.c.l.b16 %v183
    %v1837 = vunpack.c.h.b16 %v183
    %v1838 = vunpack.c.l.b16 %v184
    %v1839 = vunpack.c.h.b16 %v184
    %v1840 = vunpack.c.l.b16 %v185
    %v1841 = vunpack.c.h.b16 %v185
    %v1842 = vunpack.c.l.b16 %v186
    %v1843 = vunpack.c.h.b16 %v186
    %v1844 = vunpack.c.l.b16 %v187
    %v1845 = vunpack.c.h.b16 %v187
    %v1846 = vunpack.c.l.b16 %v188
    %v1847 = vunpack.c.h.b16 %v188
    %v1848 = vunpack.c.l.b16 %v189
    %v1849 = vunpack.c.h.b16 %v189
    %v1850 = vunpack.c.l.b16 %v190
    %v1851 = vunpack.c.h.b16 %v190
    %v1852 = vunpack.c.l.b16 %v191
    %v1853 = vunpack.c.h.b16 %v191
    %v1854 = vunpack.c.l.b16 %v192
    %v1855 = vunpack.c.h.b16 %v192
    %v1856 = vunpack.c.l.b16 %v193
    %v1857 = vunpack.c.h.b16 %v193
    %v1858 = vunpack.c.l.b16 %v194
    %v1859 = vunpack.c.h.b16 %v194
    %v1860 = vunpack.c.l.b16 %v195
    %v1861 = vunpack.c.h.b16 %v195
    %v1862 = vunpack.c.l.b16 %v196
    %v1863 = vunpack.c.h.b16 %v196
    %v1864 = vunpack.c.l.b16 %v197
    %v1865 = vunpack.c.h.b16 %v197
    %v1866 = vunpack.c.l.b16 %v198
    %v1867 = vunpack.c.h.b16 %v198
    %v1868 = vunpack.c.l.b16 %v199
    %v1869 = vunpack.c.h.b16 %v199
    %v1870 = vunpack.c.l.b16 %v200
    %v1871 = vunpack.c.h.b16 %v200
    %v1872 = vunpack.c.l.b16 %v201
    %v1873 = vunpack.c.h.b16 %v201
    %v1874 = vunpack.c.l.b16 %v202
    %v1875 = vunpack.c.h.b16 %v202
    %v1876 = vunpack.c.l.b16 %v203
    %v1877 = vunpack.c.h.b16 %v203
    %v1878 = vunpack.c.l.b16 %v204
    %v1879 = vunpack.c.h.b16 %v204
    %v1880 = vunpack.c.l.b16 %v205
    %v1881 = vunpack.c.h.b16 %v205
    %v1882 = vunpack.c.l.b16 %v206
    %v1883 = vunpack.c.h.b16 %v206
    %v1884 = vunpack.c.l.b16 %v207
    %v1885 = vunpack.c.h.b16 %v207
    %v1886 = vunpack.c.l.b16 %v208
    %v1887 = vunpack.c.h.b16 %v208
    %v1888 = vunpack.c.l.b16 %v209
    %v1889 = vunpack.c.h.b16 %v209
    %v1890 = vunpack.c.l.b16 %v210
    %v1891 = vunpack.c.h.b16 %v210
    %v1892 = vunpack.c.l.b16 %v211
    %v1893 = vunpack.c.h.b16 %v211
    %v1894 = vunpack.c.l.b16 %v212
    %v1895 = vunpack.c.h.b16 %v212
    %v1896 = vunpack.c.l.b16 %v213
    %v1897 = vunpack.c.h.b16 %v213
    %v1898 = vunpack.c.l.b16 %v214
    %v1899 = vunpack.c.h.b16 %v214
    %v1900 = vunpack.c.l.b16 %v215
    %v1901 = vunpack.c.h.b16 %v215
    %v1902 = vunpack.c.l.b16 %v216
    %v1903 = vunpack.c.h.b16 %v216
    %v1904 = vunpack.c.l.b16 %v217
    %v1905 = vunpack.c.h.b16 %v217
    %v1906 = vunpack.c.l.b16 %v218
    %v1907 = vunpack.c.h.b16 %v218
    %v1908 = vunpack.c.l.b16 %v219
    %v1909 = vunpack.c.h.b16 %v219
    %v1910 = vunpack.c.l.b16 %v220
    %v1911 = vunpack.c.h.b16 %v220
    %v1912 = vunpack.c.l.b16 %v221
    %v1913 = vunpack.c.h.b16 %v221
    %v1914 = vunpack.c.l.b16 %v222
    %v1915 = vunpack.c.h.b16 %v222
    %v1916 = vunpack.c.l.b16 %v223
    %v1917 = vunpack.c.h.b16 %v223
    %v1918 = vunpack.c.l.b16 %v224
    %v1919 = vunpack.c.h.b16 %v224
    %v1920 = vunpack.c.l.b16 %v225
    %v1921 = vunpack.c.h.b16 %v225
    %v1922 = vunpack.c.l.b16 %v226
    %v1923 = vunpack.c.h.b16 %v226
    %v1924 = vunpack.c.l.b16 %v227
    %v1925 = vunpack.c.h.b16 %v227
    %v1926 = vunpack.c.l.b16 %v228
    %v1927 = vunpack.c.h.b16 %v228
    %v1928 = vunpack.c.l.b16 %v229
    %v1929 = vunpack.c.h.b16 %v229
    %v1930 = vunpack.c.l.b16 %v230
    %v1931 = vunpack.c.h.b16 %v230
    %v1932 = vunpack.c.l.b16 %v231
    %v1933 = vunpack.c.h.b16 %v231
    %v1934 = vunpack.c.l.b16 %v232
    %v1935 = vunpack.c.h.b16 %v232
    %v1936 = vunpack.c.l.b16 %v233
    %v1937 = vunpack.c.h.b16 %v233
    %v1938 = vunpack.c.l.b16 %v234
    %v1939 = vunpack.c.h.b16 %v234
    %v1940 = vunpack.c.l.b16 %v235
    %v1941 = vunpack.c.h.b16 %v235
    %v1942 = vunpack.c.l.b16 %v236
    %v1943 = vunpack.c.h.b16 %v236
    %v1944 = vunpack.c.l.b16 %v237
    %v1945 = vunpack.c.h.b16 %v237
    %v1946 = vunpack.c.l.b16 %v238
    %v1947 = vunpack.c.h.b16 %v238
    %v1948 = vunpack.c.l.b16 %v239
    %v1949 = vunpack.c.h.b16 %v239
    %v1950 = vunpack.c.l.b16 %v240
    %v1951 = vunpack.c.h.b16 %v240
    %v1952 = vunpack.c.l.b16 %v241
    %v1953 = vunpack.c.h.b16 %v241
    %v1954 = vunpack.c.l.b16 %v242
    %v1955 = vunpack.c.h.b16 %v242
    %v1956 = vunpack.c.l.b16 %v243
    %v1957 = vunpack.c.h.b16 %v243
    %v1958 = vunpack.c.l.b16 %v244
    %v1959 = vunpack.c.h.b16 %v244
    %v1960 = vunpack.c.l.b16 %v245
    %v1961 = vunpack.c.h.b16 %v245
    %v1962 = vunpack.c.l.b16 %v246
    %v1963 = vunpack.c.h.b16 %v246
    %v1964 = vunpack.c.l.b16 %v247
    %v1965 = vunpack.c.h.b16 %v247
    %v1966 = vunpack.c.l.b16 %v248
    %v1967 = vunpack.c.h.b16 %v248
    %v1968 = vunpack.c.l.b16 %v249
    %v1969 = vunpack.c.h.b16 %v249
    %v1970 = vunpack.c.l.b16 %v250
    %v1971 = vunpack.c.h.b16 %v250
    %v1972 = vunpack.c.l.b16 %v251
    %v1973 = vunpack.c.h.b16 %v251
    %v1974 = vunpack.c.l.b16 %v252
    %v1975 = vunpack.c.h.b16 %v252
    %v1976 = vunpack.c.l.b16 %v253
    %v1977 = vunpack.c.h.b16 %v253
    %v1978 = vunpack.c.l.b16 %v254
    %v1979 = vunpack.c.h.b16 %v254
    %v1980 = vunpack.c.l.b16 %v255
    %v1981 = vunpack.c.h.b16 %v255
    %v1982 = vunpack.c.l.b16 %v256
    %v1983 = vunpack.c.h.b16 %v256
    %v1984 = vunpack.c.l.b16 %v257
    %v1985 = vunpack.c.h.b16 %v257
    %v1986 = vunpack.c.l.b16 %v258
    %v1987 = vunpack.c.h.b16 %v258
    %v1988 = vunpack.c.l.b16 %v259
    %v1989 = vunpack.c.h.b16 %v259
    %v1990 = vunpack.c.l.b16 %v260
    %v1991 = vunpack.c.h.b16 %v260
    %v1992 = vunpack.c.l.b16 %v261
    %v1993 = vunpack.c.h.b16 %v261
    %v1994 = vunpack.c.l.b16 %v262
    %v1995 = vunpack.c.h.b16 %v262
    %v1996 = vunpack.c.l.b16 %v263
    %v1997 = vunpack.c.h.b16 %v263
    %v1998 = vunpack.c.l.b16 %v264
    %v1999 = vunpack.c.h.b16 %v264
    %v2000 = vunpack.c.l.b16 %v265
    %v2001 = vunpack.c.h.b16 %v265
    %v2002 = vunpack.c.l.b16 %v266
    %v2003 = vunpack.c.h.b16 %v266
    %v2004 = vunpack.c.l.b16 %v267
    %v2005 = vunpack.c.h.b16 %v267
    %v2006 = vunpack.c.l.b16 %v268
    %v2007 = vunpack.c.h.b16 %v268
    %v2008 = vunpack.c.l.b16 %v269
    %v2009 = vunpack.c.h.b16 %v269
    %v2010 = vunpack.c.l.b16 %v270
    %v2011 = vunpack.c.h.b16 %v270
    %v2012 = vunpack.c.l.b16 %v271
    %v2013 = vunpack.c.h.b16 %v271
    %v2014 = vunpack.c.l.b16 %v272
    %v2015 = vunpack.c.h.b16 %v272
    %v2016 = vunpack.c.l.b16 %v273
    %v2017 = vunpack.c.h.b16 %v273
    %v2018 = vunpack.c.l.b16 %v274
    %v2019 = vunpack.c.h.b16 %v274
    %v2020 = vunpack.c.l.b16 %v275
    %v2021 = vunpack.c.h.b16 %v275
    %v2022 = vunpack.c.l.b16 %v276
    %v2023 = vunpack.c.h.b16 %v276
    %v2024 = vunpack.c.l.b16 %v277
    %v2025 = vunpack.c.h.b16 %v277
    %v2026 = vunpack.c.l.b16 %v278
    %v2027 = vunpack.c.h.b16 %v278
    %v2028 = vunpack.c.l.b16 %v279
    %v2029 = vunpack.c.h.b16 %v279
    %v2030 = vunpack.c.l.b16 %v280
    %v2031 = vunpack.c.h.b16 %v280
    %v2032 = vunpack.c.l.b16 %v281
    %v2033 = vunpack.c.h.b16 %v281
    %v2034 = vunpack.c.l.b16 %v282
    %v2035 = vunpack.c.h.b16 %v282
    %v2036 = vunpack.c.l.b16 %v283
    %v2037 = vunpack.c.h.b16 %v283
    %v2038 = vunpack.c.l.b16 %v284
    %v2039 = vunpack.c.h.b16 %v284
    %v2040 = vunpack.c.l.b16 %v285
    %v2041 = vunpack.c.h.b16 %v285
    %v2042 = vunpack.c.l.b16 %v286
    %v2043 = vunpack.c.h.b16 %v286
    %v2044 = vunpack.c.l.b16 %v287
    %v2045 = vunpack.c.h.b16 %v287
    %v2046 = vunpack.c.l.b16 %v288
    %v2047 = vunpack.c.h.b16 %v288
    %v2048 = vunpack.c.l.b16 %v289
    %v2049 = vunpack.c.h.b16 %v289
    %v2050 = vunpack.c.l.b16 %v290
    %v2051 = vunpack.c.h.b16 %v290
    %v2052 = vunpack.c.l.b16 %v291
    %v2053 = vunpack.c.h.b16 %v291
    %v2054 = vunpack.c.l.b16 %v292
    %v2055 = vunpack.c.h.b16 %v292
    %v2056 = vunpack.c.l.b16 %v293
    %v2057 = vunpack.c.h.b16 %v293
    %v2058 = vunpack.c.l.b16 %v294
    %v2059 = vunpack.c.h.b16 %v294
    %v2060 = vunpack.c.l.b16 %v295
    %v2061 = vunpack.c.h.b16 %v295
    %v2062 = vunpack.c.l.b16 %v296
    %v2063 = vunpack.c.h.b16 %v296
    %v2064 = vunpack.c.l.b16 %v297
    %v2065 = vunpack.c.h.b16 %v297
    %v2066 = vunpack.c.l.b16 %v298
    %v2067 = vunpack.c.h.b16 %v298
    %v2068 = vunpack.c.l.b16 %v299
    %v2069 = vunpack.c.h.b16 %v299
    %v2070 = vunpack.c.l.b16 %v300
    %v2071 = vunpack.c.h.b16 %v300
    %v2072 = vunpack.c.l.b16 %v301
    %v2073 = vunpack.c.h.b16 %v301
    %v2074 = vunpack.c.l.b16 %v302
    %v2075 = vunpack.c.h.b16 %v302
    %v2076 = vunpack.c.l.b16 %v303
    %v2077 = vunpack.c.h.b16 %v303
    %v2078 = vunpack.c.l.b16 %v304
    %v2079 = vunpack.c.h.b16 %v304
    %v2080 = vunpack.c.l.b16 %v305
    %v2081 = vunpack.c.h.b16 %v305
    %v2082 = vunpack.c.l.b16 %v306
    %v2083 = vunpack.c.h.b16 %v306
    %v2084 = vunpack.c.l.b16 %v307
    %v2085 = vunpack.c.h.b16 %v307
    %v2086 = vunpack.c.l.b16 %v308
    %v2087 = vunpack.c.h.b16 %v308
    %v2088 = vunpack.c.l.b16 %v309
    %v2089 = vunpack.c.h.b16 %v309
    %v2090 = vunpack.c.l.b16 %v310
    %v2091 = vunpack.c.h.b16 %v310
    %v2092 = vunpack.c.l.b16 %v311
    %v2093 = vunpack.c.h.b16 %v311
    %v2094 = vunpack.c.l.b16 %v312
    %v2095 = vunpack.c.h.b16 %v312
    %v2096 = vunpack.c.l.b16 %v313
    %v2097 = vunpack.c.h.b16 %v313
    %v2098 = vunpack.c.l.b16 %v314
    %v2099 = vunpack.c.h.b16 %v314
    %v2100 = vunpack.c.l.b16 %v315
    %v2101 = vunpack.c.h.b16 %v315
    %v2102 = vunpack.c.l.b16 %v316
    %v2103 = vunpack.c.h.b16 %v316
    %v2104 = vunpack.c.l.b16 %v317
    %v2105 = vunpack.c.h.b16 %v317
    %v2106 = vunpack.c.l.b16 %v318
    %v2107 = vunpack.c.h.b16 %v318
    %v2108 = vunpack.c.l.b16 %v319
    %v2109 = vunpack.c.h.b16 %v319
    %v2110 = vunpack.c.l.b16 %v320
    %v2111 = vunpack.c.h.b16 %v320
    %v2112 = vunpack.c.l.b16 %v321
    %v2113 = vunpack.c.h.b16 %v321
    %v2114 = vunpack.c.l.b16 %v322
    %v2115 = vunpack.c.h.b16 %v322
    %v2116 = vunpack.c.l.b16 %v323
    %v2117 = vunpack.c.h.b16 %v323
    %v2118 = vunpack.c.l.b16 %v324
    %v2119 = vunpack.c.h.b16 %v324
    %v2120 = vunpack.c.l.b16 %v325
    %v2121 = vunpack.c.h.b16 %v325
    %v2122 = vunpack.c.l.b16 %v326
    %v2123 = vunpack.c.h.b16 %v326
    %v2124 = vunpack.c.l.b16 %v327
    %v2125 = vunpack.c.h.b16 %v327
    %v2126 = vunpack.c.l.b16 %v328
    %v2127 = vunpack.c.h.b16 %v328
    %v2128 = vunpack.c.l.b16 %v329
    %v2129 = vunpack.c.h.b16 %v329
    %v2130 = vunpack.c.l.b16 %v330
    %v2131 = vunpack.c.h.b16 %v330
    %v2132 = vunpack.c.l.b16 %v331
    %v2133 = vunpack.c.h.b16 %v331
    %v2134 = vunpack.c.l.b16 %v332
    %v2135 = vunpack.c.h.b16 %v332
    %v2136 = vunpack.c.l.b16 %v333
    %v2137 = vunpack.c.h.b16 %v333
    %v2138 = vunpack.c.l.b16 %v334
    %v2139 = vunpack.c.h.b16 %v334
    %v2140 = vunpack.c.l.b16 %v335
    %v2141 = vunpack.c.h.b16 %v335
    %v2142 = vunpack.c.l.b16 %v336
    %v2143 = vunpack.c.h.b16 %v336
    %v2144 = vunpack.c.l.b16 %v337
    %v2145 = vunpack.c.h.b16 %v337
    %v2146 = vunpack.c.l.b16 %v338
    %v2147 = vunpack.c.h.b16 %v338
    %v2148 = vunpack.c.l.b16 %v339
    %v2149 = vunpack.c.h.b16 %v339
    %v2150 = vunpack.c.l.b16 %v340
    %v2151 = vunpack.c.h.b16 %v340
    %v2152 = vunpack.c.l.b16 %v341
    %v2153 = vunpack.c.h.b16 %v341
    %v2154 = vunpack.c.l.b16 %v342
    %v2155 = vunpack.c.h.b16 %v342
    %v2156 = vunpack.c.l.b16 %v343
    %v2157 = vunpack.c.h.b16 %v343
    %v2158 = vunpack.c.l.b16 %v344
    %v2159 = vunpack.c.h.b16 %v344
    %v2160 = vunpack.c.l.b16 %v345
    %v2161 = vunpack.c.h.b16 %v345
    %v2162 = vunpack.c.l.b16 %v346
    %v2163 = vunpack.c.h.b16 %v346
    %v2164 = vunpack.c.l.b16 %v347
    %v2165 = vunpack.c.h.b16 %v347
    %v2166 = vunpack.c.l.b16 %v348
    %v2167 = vunpack.c.h.b16 %v348
    %v2168 = vunpack.c.l.b16 %v349
    %v2169 = vunpack.c.h.b16 %v349
    %v2170 = vunpack.c.l.b16 %v350
    %v2171 = vunpack.c.h.b16 %v350
    %v2172 = vunpack.c.l.b16 %v351
    %v2173 = vunpack.c.h.b16 %v351
    %v2174 = vunpack.c.l.b16 %v352
    %v2175 = vunpack.c.h.b16 %v352
    %v2176 = vunpack.c.l.b16 %v353
    %v2177 = vunpack.c.h.b16 %v353
    %v2178 = vunpack.c.l.b16 %v354
    %v2179 = vunpack.c.h.b16 %v354
    %v2180 = vunpack.c.l.b16 %v355
    %v2181 = vunpack.c.h.b16 %v355
    %v2182 = vunpack.c.l.b16 %v356
    %v2183 = vunpack.c.h.b16 %v356
    %v2184 = vunpack.c.l.b16 %v357
    %v2185 = vunpack.c.h.b16 %v357
    %v2186 = vunpack.c.l.b16 %v358
    %v2187 = vunpack.c.h.b16 %v358
    %v2188 = vunpack.c.l.b16 %v359
    %v2189 = vunpack.c.h.b16 %v359
    %v2190 = vunpack.c.l.b16 %v360
    %v2191 = vunpack.c.h.b16 %v360
    %v2192 = vunpack.c.l.b16 %v361
    %v2193 = vunpack.c.h.b16 %v361
    %v2194 = vunpack.c.l.b16 %v362
    %v2195 = vunpack.c.h.b16 %v362
    %v2196 = vunpack.c.l.b16 %v363
    %v2197 = vunpack.c.h.b16 %v363
    %v2198 = vunpack.c.l.b16 %v364
    %v2199 = vunpack.c.h.b16 %v364
    %v2200 = vunpack.c.l.b16 %v365
    %v2201 = vunpack.c.h.b16 %v365
    %v2202 = vunpack.c.l.b16 %v366
    %v2203 = vunpack.c.h.b16 %v366
    %v2204 = vunpack.c.l.b16 %v367
    %v2205 = vunpack.c.h.b16 %v367
    %v2206 = vunpack.c.l.b16 %v368
    %v2207 = vunpack.c.h.b16 %v368
    %v2208 = vunpack.c.l.b16 %v369
    %v2209 = vunpack.c.h.b16 %v369
    %v2210 = vunpack.c.l.b16 %v370
    %v2211 = vunpack.c.h.b16 %v370
    %v2212 = vunpack.c.l.b16 %v371
    %v2213 = vunpack.c.h.b16 %v371
    %v2214 = vunpack.c.l.b16 %v372
    %v2215 = vunpack.c.h.b16 %v372
    %v2216 = vunpack.c.l.b16 %v373
    %v2217 = vunpack.c.h.b16 %v373
    %v2218 = vunpack.c.l.b16 %v374
    %v2219 = vunpack.c.h.b16 %v374
    %v2220 = vunpack.c.l.b16 %v375
    %v2221 = vunpack.c.h.b16 %v375
    %v2222 = vunpack.c.l.b16 %v376
    %v2223 = vunpack.c.h.b16 %v376
    %v2224 = vunpack.c.l.b16 %v377
    %v2225 = vunpack.c.h.b16 %v377
    %v2226 = vunpack.c.l.b16 %v378
    %v2227 = vunpack.c.h.b16 %v378
    %v2228 = vunpack.c.l.b16 %v379
    %v2229 = vunpack.c.h.b16 %v379
    %v2230 = vunpack.c.l.b16 %v380
    %v2231 = vunpack.c.h.b16 %v380
    %v2232 = vunpack.c.l.b16 %v381
    %v2233 = vunpack.c.h.b16 %v381
    %v2234 = vunpack.c.l.b16 %v382
    %v2235 = vunpack.c.h.b16 %v382
    %v2236 = vunpack.c.l.b16 %v383
    %v2237 = vunpack.c.h.b16 %v383
    %v2238 = vunpack.c.l.b16 %v384
    %v2239 = vunpack.c.h.b16 %v384
    %v2240 = vunpack.c.l.b16 %v385
    %v2241 = vunpack.c.h.b16 %v385
    %v2242 = vunpack.c.l.b16 %v386
    %v2243 = vunpack.c.h.b16 %v386
    %v2244 = vunpack.c.l.b16 %v387
    %v2245 = vunpack.c.h.b16 %v387
    %v2246 = vunpack.c.l.b16 %v388
    %v2247 = vunpack.c.h.b16 %v388
    %v2248 = vunpack.c.l.b16 %v389
    %v2249 = vunpack.c.h.b16 %v389
    %v2250 = vunpack.c.l.b16 %v390
    %v2251 = vunpack.c.h.b16 %v390
    %v2252 = vunpack.c.l.b16 %v391
    %v2253 = vunpack.c.h.b16 %v391
    %v2254 = vunpack.c.l.b16 %v392
    %v2255 = vunpack.c.h.b16 %v392
    %v2256 = vunpack.c.l.b16 %v393
    %v2257 = vunpack.c.h.b16 %v393
    %v2258 = vunpack.c.l.b16 %v394
    %v2259 = vunpack.c.h.b16 %v394
    %v2260 = vunpack.c.l.b16 %v395
    %v2261 = vunpack.c.h.b16 %v395
    %v2262 = vunpack.c.l.b16 %v396
    %v2263 = vunpack.c.h.b16 %v396
    %v2264 = vunpack.c.l.b16 %v397
    %v2265 = vunpack.c.h.b16 %v397
    %v2266 = vunpack.c.l.b16 %v398
    %v2267 = vunpack.c.h.b16 %v398
    %v2268 = vunpack.c.l.b16 %v399
    %v2269 = vunpack.c.h.b16 %v399
    %v2270 = vunpack.c.l.b16 %v400
    %v2271 = vunpack.c.h.b16 %v400
    %v2272 = vunpack.c.l.b16 %v401
    %v2273 = vunpack.c.h.b16 %v401
    %v2274 = vunpack.c.l.b16 %v402
    %v2275 = vunpack.c.h.b16 %v402
    %v2276 = vunpack.c.l.b16 %v403
    %v2277 = vunpack.c.h.b16 %v403
    %v2278 = vunpack.c.l.b16 %v404
    %v2279 = vunpack.c.h.b16 %v404
    %v2280 = vunpack.c.l.b16 %v405
    %v2281 = vunpack.c.h.b16 %v405
    %v2282 = vunpack.c.l.b16 %v406
    %v2283 = vunpack.c.h.b16 %v406
    %v2284 = vunpack.c.l.b16 %v407
    %v2285 = vunpack.c.h.b16 %v407
    %v2286 = vunpack.c.l.b16 %v408
    %v2287 = vunpack.c.h.b16 %v408
    %v2288 = vunpack.c.l.b16 %v409
    %v2289 = vunpack.c.h.b16 %v409
    %v2290 = vunpack.c.l.b16 %v410
    %v2291 = vunpack.c.h.b16 %v410
    %v2292 = vunpack.c.l.b16 %v411
    %v2293 = vunpack.c.h.b16 %v411
    %v2294 = vunpack.c.l.b16 %v412
    %v2295 = vunpack.c.h.b16 %v412
    %v2296 = vunpack.c.l.b16 %v413
    %v2297 = vunpack.c.h.b16 %v413
    %v2298 = vunpack.c.l.b16 %v414
    %v2299 = vunpack.c.h.b16 %v414
    %v2300 = vunpack.c.l.b16 %v415
    %v2301 = vunpack.c.h.b16 %v415
    %v2302 = vunpack.c.l.b16 %v416
    %v2303 = vunpack.c.h.b16 %v416
    %v2304 = vunpack.c.l.b16 %v417
    %v2305 = vunpack.c.h.b16 %v417
    %v2306 = vunpack.c.l.b16 %v418
    %v2307 = vunpack.c.h.b16 %v418
    %v2308 = vunpack.c.l.b16 %v419
    %v2309 = vunpack.c.h.b16 %v419
    %v2310 = vunpack.c.l.b16 %v420
    %v2311 = vunpack.c.h.b16 %v420
    %v2312 = vunpack.c.l.b16 %v421
    %v2313 = vunpack.c.h.b16 %v421
    %v2314 = vunpack.c.l.b16 %v422
    %v2315 = vunpack.c.h.b16 %v422
    %v2316 = vunpack.c.l.b16 %v423
    %v2317 = vunpack.c.h.b16 %v423
    %v2318 = vunpack.c.l.b16 %v424
    %v2319 = vunpack.c.h.b16 %v424
    %v2320 = vunpack.c.l.b16 %v425
    %v2321 = vunpack.c.h.b16 %v425
    %v2322 = vunpack.c.l.b16 %v426
    %v2323 = vunpack.c.h.b16 %v426
    %v2324 = vunpack.c.l.b16 %v427
    %v2325 = vunpack.c.h.b16 %v427
    %v2326 = vunpack.c.l.b16 %v428
    %v2327 = vunpack.c.h.b16 %v428
    %v2328 = vunpack.c.l.b16 %v429
    %v2329 = vunpack.c.h.b16 %v429
    %v2330 = vunpack.c.l.b16 %v430
    %v2331 = vunpack.c.h.b16 %v430
    %v2332 = vunpack.c.l.b16 %v431
    %v2333 = vunpack.c.h.b16 %v431
    %v2334 = vunpack.c.l.b16 %v432
    %v2335 = vunpack.c.h.b16 %v432
    %v2336 = vunpack.c.l.b16 %v433
    %v2337 = vunpack.c.h.b16 %v433
    %v2338 = vunpack.c.l.b16 %v434
    %v2339 = vunpack.c.h.b16 %v434
    %v2340 = vunpack.c.l.b16 %v435
    %v2341 = vunpack.c.h.b16 %v435
    %v2342 = vunpack.c.l.b16 %v436
    %v2343 = vunpack.c.h.b16 %v436
    %v2344 = vunpack.c.l.b16 %v437
    %v2345 = vunpack.c.h.b16 %v437
    %v2346 = vunpack.c.l.b16 %v438
    %v2347 = vunpack.c.h.b16 %v438
    %v2348 = vunpack.c.l.b16 %v439
    %v2349 = vunpack.c.h.b16 %v439
    %v2350 = vunpack.c.l.b16 %v440
    %v2351 = vunpack.c.h.b16 %v440
    %v2352 = vunpack.c.l.b16 %v441
    %v2353 = vunpack.c.h.b16 %v441
    %v2354 = vunpack.c.l.b16 %v442
    %v2355 = vunpack.c.h.b16 %v442
    %v2356 = vunpack.c.l.b16 %v443
    %v2357 = vunpack.c.h.b16 %v443
    %v2358 = vunpack.c.l.b16 %v444
    %v2359 = vunpack.c.h.b16 %v444
    %v2360 = vunpack.c.l.b16 %v445
    %v2361 = vunpack.c.h.b16 %v445
    %v2362 = vunpack.c.l.b16 %v446
    %v2363 = vunpack.c.h.b16 %v446
    %v2364 = vunpack.c.l.b16 %v447
    %v2365 = vunpack.c.h.b16 %v447
    %v2366 = vunpack.c.l.b16 %v448
    %v2367 = vunpack.c.h.b16 %v448
    %v2368 = vunpack.c.l.b16 %v449
    %v2369 = vunpack.c.h.b16 %v449
    %v2370 = vunpack.c.l.b16 %v450
    %v2371 = vunpack.c.h.b16 %v450
    %v2372 = vunpack.c.l.b16 %v451
    %v2373 = vunpack.c.h.b16 %v451
    %v2374 = vunpack.c.l.b16 %v452
    %v2375 = vunpack.c.h.b16 %v452
    %v2376 = vunpack.c.l.b16 %v453
    %v2377 = vunpack.c.h.b16 %v453
    %v2378 = vunpack.c.l.b16 %v454
    %v2379 = vunpack.c.h.b16 %v454
    %v2380 = vunpack.c.l.b16 %v455
    %v2381 = vunpack.c.h.b16 %v455
    %v2382 = vunpack.c.l.b16 %v456
    %v2383 = vunpack.c.h.b16 %v456
    %v2384 = vunpack.c.l.b16 %v457
    %v2385 = vunpack.c.h.b16 %v457
    %v2386 = vunpack.c.l.b16 %v458
    %v2387 = vunpack.c.h.b16 %v458
    %v2388 = vunpack.c.l.b16 %v459
    %v2389 = vunpack.c.h.b16 %v459
    %v2390 = vunpack.c.l.b16 %v460
    %v2391 = vunpack.c.h.b16 %v460
    %v2392 = vunpack.c.l.b16 %v461
    %v2393 = vunpack.c.h.b16 %v461
    %v2394 = vunpack.c.l.b16 %v462
    %v2395 = vunpack.c.h.b16 %v462
    %v2396 = vunpack.c.l.b16 %v463
    %v2397 = vunpack.c.h.b16 %v463
    %v2398 = vunpack.c.l.b16 %v464
    %v2399 = vunpack.c.h.b16 %v464
    %v2400 = vunpack.c.l.b16 %v465
    %v2401 = vunpack.c.h.b16 %v465
    %v2402 = vunpack.c.l.b16 %v466
    %v2403 = vunpack.c.h.b16 %v466
    %v2404 = vunpack.c.l.b16 %v467
    %v2405 = vunpack.c.h.b16 %v467
    %v2406 = vunpack.c.l.b16 %v468
    %v2407 = vunpack.c.h.b16 %v468
    %v2408 = vunpack.c.l.b16 %v469
    %v2409 = vunpack.c.h.b16 %v469
    %v2410 = vunpack.c.l.b16 %v470
    %v2411 = vunpack.c.h.b16 %v470
    %v2412 = vunpack.c.l.b16 %v471
    %v2413 = vunpack.c.h.b16 %v471
    %v2414 = vunpack.c.l.b16 %v472
    %v2415 = vunpack.c.h.b16 %v472
    %v2416 = vunpack.c.l.b16 %v473
    %v2417 = vunpack.c.h.b16 %v473
    %v2418 = vunpack.c.l.b16 %v474
    %v2419 = vunpack.c.h.b16 %v474
    %v2420 = vunpack.c.l.b16 %v475
    %v2421 = vunpack.c.h.b16 %v475
    %v2422 = vunpack.c.l.b16 %v476
    %v2423 = vunpack.c.h.b16 %v476
    %v2424 = vunpack.c.l.b16 %v477
    %v2425 = vunpack.c.h.b16 %v477
    %v2426 = vunpack.c.l.b16 %v478
    %v2427 = vunpack.c.h.b16 %v478
    %v2428 = vunpack.c.l.b16 %v479
    %v2429 = vunpack.c.h.b16 %v479
    %v2430 = vunpack.c.l.b16 %v480
    %v2431 = vunpack.c.h.b16 %v480
    %v2432 = vunpack.c.l.b16 %v481
    %v2433 = vunpack.c.h.b16 %v481
    %v2434 = vunpack.c.l.b16 %v482
    %v2435 = vunpack.c.h.b16 %v482
    %v2436 = vunpack.c.l.b16 %v483
    %v2437 = vunpack.c.h.b16 %v483
    %v2438 = vunpack.c.l.b16 %v484
    %v2439 = vunpack.c.h.b16 %v484
    %v2440 = vunpack.c.l.b16 %v485
    %v2441 = vunpack.c.h.b16 %v485
    %v2442 = vunpack.c.l.b16 %v486
    %v2443 = vunpack.c.h.b16 %v486
    %v2444 = vunpack.c.l.b16 %v487
    %v2445 = vunpack.c.h.b16 %v487
    %v2446 = vunpack.c.l.b16 %v488
    %v2447 = vunpack.c.h.b16 %v488
    %v2448 = vunpack.c.l.b16 %v489
    %v2449 = vunpack.c.h.b16 %v489
    %v2450 = vunpack.c.l.b16 %v490
    %v2451 = vunpack.c.h.b16 %v490
    %v2452 = vunpack.c.l.b16 %v491
    %v2453 = vunpack.c.h.b16 %v491
    %v2454 = vunpack.c.l.b16 %v492
    %v2455 = vunpack.c.h.b16 %v492
    %v2456 = vunpack.c.l.b16 %v493
    %v2457 = vunpack.c.h.b16 %v493
    %v2458 = vunpack.c.l.b16 %v494
    %v2459 = vunpack.c.h.b16 %v494
    %v2460 = vunpack.c.l.b16 %v495
    %v2461 = vunpack.c.h.b16 %v495
    %v2462 = vunpack.c.l.b16 %v496
    %v2463 = vunpack.c.h.b16 %v496
    %v2464 = vunpack.c.l.b16 %v497
    %v2465 = vunpack.c.h.b16 %v497
    %v2466 = vunpack.c.l.b16 %v498
    %v2467 = vunpack.c.h.b16 %v498
    %v2468 = vunpack.c.l.b16 %v499
    %v2469 = vunpack.c.h.b16 %v499
    %v2470 = vunpack.c.l.b16 %v500
    %v2471 = vunpack.c.h.b16 %v500
    %v2472 = vunpack.c.l.b16 %v501
    %v2473 = vunpack.c.h.b16 %v501
    %v2474 = vunpack.c.l.b16 %v502
    %v2475 = vunpack.c.h.b16 %v502
    %v2476 = vunpack.c.l.b16 %v503
    %v2477 = vunpack.c.h.b16 %v503
    %v2478 = vunpack.c.l.b16 %v504
    %v2479 = vunpack.c.h.b16 %v504
    %v2480 = vunpack.c.l.b16 %v505
    %v2481 = vunpack.c.h.b16 %v505
    %v2482 = vunpack.c.l.b16 %v506
    %v2483 = vunpack.c.h.b16 %v506
    %v2484 = vunpack.c.l.b16 %v507
    %v2485 = vunpack.c.h.b16 %v507
    %v2486 = vunpack.c.l.b16 %v508
    %v2487 = vunpack.c.h.b16 %v508
    %v2488 = vunpack.c.l.b16 %v509
    %v2489 = vunpack.c.h.b16 %v509
    %v2490 = vunpack.c.l.b16 %v510
    %v2491 = vunpack.c.h.b16 %v510
    %v2492 = vunpack.c.l.b16 %v511
    %v2493 = vunpack.c.h.b16 %v511
    %v2494 = vunpack.c.l.b16 %v512
    %v2495 = vunpack.c.h.b16 %v512
    %v2496 = vunpack.c.l.b16 %v513
    %v2497 = vunpack.c.h.b16 %v513
    %v2498 = vunpack.c.l.b16 %v514
    %v2499 = vunpack.c.h.b16 %v514
    %v2500 = vunpack.c.l.b16 %v515
    %v2501 = vunpack.c.h.b16 %v515
    %v2502 = vunpack.c.l.b16 %v516
    %v2503 = vunpack.c.h.b16 %v516
    %v2504 = vunpack.c.l.b16 %v517
    %v2505 = vunpack.c.h.b16 %v517
    %v2506 = vunpack.c.l.b16 %v518
    %v2507 = vunpack.c.h.b16 %v518
    %v2508 = vunpack.c.l.b16 %v519
    %v2509 = vunpack.c.h.b16 %v519
    %v2510 = vunpack.c.l.b16 %v520
    %v2511 = vunpack.c.h.b16 %v520
    %v2512 = vunpack.c.l.b16 %v521
    %v2513 = vunpack.c.h.b16 %v521
    %v2514 = vunpack.c.l.b16 %v522
    %v2515 = vunpack.c.h.b16 %v522
    %v2516 = vunpack.c.l.b16 %v523
    %v2517 = vunpack.c.h.b16 %v523
    %v2518 = vunpack.c.l.b16 %v524
    %v2519 = vunpack.c.h.b16 %v524
    %v2520 = vunpack.c.l.b16 %v525
    %v2521 = vunpack.c.h.b16 %v525
    %v2522 = vunpack.c.l.b16 %v526
    %v2523 = vunpack.c.h.b16 %v526
    %v2524 = vunpack.c.l.b16 %v527
    %v2525 = vunpack.c.h.b16 %v527
    %v2526 = vunpack.c.l.b16 %v528
    %v2527 = vunpack.c.h.b16 %v528
    %v2528 = vunpack.c.l.b16 %v529
    %v2529 = vunpack.c.h.b16 %v529
    %v2530 = vunpack.c.l.b16 %v530
    %v2531 = vunpack.c.h.b16 %v530
    %v2532 = vunpack.c.l.b16 %v531
    %v2533 = vunpack.c.h.b16 %v531
    %v2534 = vunpack.c.l.b16 %v532
    %v2535 = vunpack.c.h.b16 %v532
    %v2536 = vunpack.c.l.b16 %v533
    %v2537 = vunpack.c.h.b16 %v533
    %v2538 = vunpack.c.l.b16 %v534
    %v2539 = vunpack.c.h.b16 %v534
    %v2540 = vunpack.c.l.b16 %v535
    %v2541 = vunpack.c.h.b16 %v535
    %v2542 = vunpack.c.l.b16 %v536
    %v2543 = vunpack.c.h.b16 %v536
    %v2544 = vunpack.c.l.b16 %v537
    %v2545 = vunpack.c.h.b16 %v537
    %v2546 = vunpack.c.l.b16 %v538
    %v2547 = vunpack.c.h.b16 %v538
    %v2548 = vunpack.c.l.b16 %v539
    %v2549 = vunpack.c.h.b16 %v539
    %v2550 = vunpack.c.l.b16 %v540
    %v2551 = vunpack.c.h.b16 %v540
    %v2552 = vunpack.c.l.b16 %v541
    %v2553 = vunpack.c.h.b16 %v541
    %v2554 = vunpack.c.l.b16 %v542
    %v2555 = vunpack.c.h.b16 %v542
    %v2556 = vunpack.c.l.b16 %v543
    %v2557 = vunpack.c.h.b16 %v543
    %v2558 = vunpack.c.l.b16 %v544
    %v2559 = vunpack.c.h.b16 %v544
    %v2560 = vunpack.c.l.b16 %v545
    %v2561 = vunpack.c.h.b16 %v545
    %v2562 = vunpack.c.l.b16 %v546
    %v2563 = vunpack.c.h.b16 %v546
    %v2564 = vunpack.c.l.b16 %v547
    %v2565 = vunpack.c.h.b16 %v547
    %v2566 = vunpack.c.l.b16 %v548
    %v2567 = vunpack.c.h.b16 %v548
    %v2568 = vunpack.c.l.b16 %v549
    %v2569 = vunpack.c.h.b16 %v549
    %v2570 = vunpack.c.l.b16 %v550
    %v2571 = vunpack.c.h.b16 %v550
    %v2572 = vunpack.c.l.b16 %v551
    %v2573 = vunpack.c.h.b16 %v551
    %v2574 = vunpack.c.l.b16 %v552
    %v2575 = vunpack.c.h.b16 %v552
    %v2576 = vunpack.c.l.b16 %v553
    %v2577 = vunpack.c.h.b16 %v553
    %v2578 = vunpack.c.l.b16 %v554
    %v2579 = vunpack.c.h.b16 %v554
    %v2580 = vunpack.c.l.b16 %v555
    %v2581 = vunpack.c.h.b16 %v555
    %v2582 = vunpack.c.l.b16 %v556
    %v2583 = vunpack.c.h.b16 %v556
    %v2584 = vunpack.c.l.b16 %v557
    %v2585 = vunpack.c.h.b16 %v557
    %v2586 = vunpack.c.l.b16 %v558
    %v2587 = vunpack.c.h.b16 %v558
    %v2588 = vunpack.c.l.b16 %v559
    %v2589 = vunpack.c.h.b16 %v559
    %v2590 = vunpack.c.l.b16 %v560
    %v2591 = vunpack.c.h.b16 %v560
    %v2592 = vunpack.c.l.b16 %v561
    %v2593 = vunpack.c.h.b16 %v561
    %v2594 = vunpack.c.l.b16 %v562
    %v2595 = vunpack.c.h.b16 %v562
    %v2596 = vunpack.c.l.b16 %v563
    %v2597 = vunpack.c.h.b16 %v563
    %v2598 = vunpack.c.l.b16 %v564
    %v2599 = vunpack.c.h.b16 %v564
    %v2600 = vunpack.c.l.b16 %v565
    %v2601 = vunpack.c.h.b16 %v565
    %v2602 = vunpack.c.l.b16 %v566
    %v2603 = vunpack.c.h.b16 %v566
    %v2604 = vunpack.c.l.b16 %v567
    %v2605 = vunpack.c.h.b16 %v567
    %v2606 = vunpack.c.l.b16 %v568
    %v2607 = vunpack.c.h.b16 %v568
    %v2608 = vunpack.c.l.b16 %v569
    %v2609 = vunpack.c.h.b16 %v569
    %v2610 = vunpack.c.l.b16 %v570
    %v2611 = vunpack.c.h.b16 %v570
    %v2612 = vunpack.c.l.b16 %v571
    %v2613 = vunpack.c.h.b16 %v571
    %v2614 = vunpack.c.l.b16 %v572
    %v2615 = vunpack.c.h.b16 %v572
    %v2616 = vunpack.c.l.b16 %v573
    %v2617 = vunpack.c.h.b16 %v573
    %v2618 = vunpack.c.l.b16 %v574
    %v2619 = vunpack.c.h.b16 %v574
    %v2620 = vunpack.c.l.b16 %v575
    %v2621 = vunpack.c.h.b16 %v575
    %v2622 = vunpack.c.l.b16 %v576
    %v2623 = vunpack.c.h.b16 %v576
    %v2624 = vunpack.c.l.b16 %v577
    %v2625 = vunpack.c.h.b16 %v577
    %v2626 = vunpack.c.l.b16 %v578
    %v2627 = vunpack.c.h.b16 %v578
    %v2628 = vunpack.c.l.b16 %v579
    %v2629 = vunpack.c.h.b16 %v579
    %v2630 = vunpack.c.l.b16 %v580
    %v2631 = vunpack.c.h.b16 %v580
    %v2632 = vunpack.c.l.b16 %v581
    %v2633 = vunpack.c.h.b16 %v581
    %v2634 = vunpack.c.l.b16 %v582
    %v2635 = vunpack.c.h.b16 %v582
    %v2636 = vunpack.c.l.b16 %v583
    %v2637 = vunpack.c.h.b16 %v583
    %v2638 = vunpack.c.l.b16 %v584
    %v2639 = vunpack.c.h.b16 %v584
    %v2640 = vunpack.c.l.b16 %v585
    %v2641 = vunpack.c.h.b16 %v585
    %v2642 = vunpack.c.l.b16 %v586
    %v2643 = vunpack.c.h.b16 %v586
    %v2644 = vunpack.c.l.b16 %v587
    %v2645 = vunpack.c.h.b16 %v587
    %v2646 = vunpack.c.l.b16 %v588
    %v2647 = vunpack.c.h.b16 %v588
    %v2648 = vunpack.c.l.b16 %v589
    %v2649 = vunpack.c.h.b16 %v589
    %v2650 = vunpack.c.l.b16 %v590
    %v2651 = vunpack.c.h.b16 %v590
    %v2652 = vunpack.c.l.b16 %v591
    %v2653 = vunpack.c.h.b16 %v591
    %v2654 = vunpack.c.l.b16 %v592
    %v2655 = vunpack.c.h.b16 %v592
    %v2656 = vunpack.c.l.b16 %v593
    %v2657 = vunpack.c.h.b16 %v593
    %v2658 = vunpack.c.l.b16 %v594
    %v2659 = vunpack.c.h.b16 %v594
    %v2660 = vunpack.c.l.b16 %v595
    %v2661 = vunpack.c.h.b16 %v595
    %v2662 = vunpack.c.l.b16 %v596
    %v2663 = vunpack.c.h.b16 %v596
    %v2664 = vunpack.c.l.b16 %v597
    %v2665 = vunpack.c.h.b16 %v597
    %v2666 = vunpack.c.l.b16 %v598
    %v2667 = vunpack.c.h.b16 %v598
    %v2668 = vunpack.c.l.b16 %v599
    %v2669 = vunpack.c.h.b16 %v599
    %v2670 = vunpack.c.l.b16 %v600
    %v2671 = vunpack.c.h.b16 %v600
    %v2672 = vunpack.c.l.b16 %v601
    %v2673 = vunpack.c.h.b16 %v601
    %v2674 = vunpack.c.l.b16 %v602
    %v2675 = vunpack.c.h.b16 %v602
    %v2676 = vunpack.c.l.b16 %v603
    %v2677 = vunpack.c.h.b16 %v603
    %v2678 = vunpack.c.l.b16 %v604
    %v2679 = vunpack.c.h.b16 %v604
    %v2680 = vunpack.c.l.b16 %v605
    %v2681 = vunpack.c.h.b16 %v605
    %v2682 = vunpack.c.l.b16 %v606
    %v2683 = vunpack.c.h.b16 %v606
    %v2684 = vunpack.c.l.b16 %v607
    %v2685 = vunpack.c.h.b16 %v607
    %v2686 = vunpack.c.l.b16 %v608
    %v2687 = vunpack.c.h.b16 %v608
    %v2688 = vunpack.c.l.b16 %v609
    %v2689 = vunpack.c.h.b16 %v609
    %v2690 = vunpack.c.l.b16 %v610
    %v2691 = vunpack.c.h.b16 %v610
    %v2692 = vunpack.c.l.b16 %v611
    %v2693 = vunpack.c.h.b16 %v611
    %v2694 = vunpack.c.l.b16 %v612
    %v2695 = vunpack.c.h.b16 %v612
    %v2696 = vunpack.c.l.b16 %v613
    %v2697 = vunpack.c.h.b16 %v613
    %v2698 = vunpack.c.l.b16 %v614
    %v2699 = vunpack.c.h.b16 %v614
    %v2700 = vunpack.c.l.b16 %v615
    %v2701 = vunpack.c.h.b16 %v615
    %v2702 = vunpack.c.l.b16 %v616
    %v2703 = vunpack.c.h.b16 %v616
    %v2704 = vunpack.c.l.b16 %v617
    %v2705 = vunpack.c.h.b16 %v617
    %v2706 = vunpack.c.l.b16 %v618
    %v2707 = vunpack.c.h.b16 %v618
    %v2708 = vunpack.c.l.b16 %v619
    %v2709 = vunpack.c.h.b16 %v619
    %v2710 = vunpack.c.l.b16 %v620
    %v2711 = vunpack.c.h.b16 %v620
    %v2712 = vunpack.c.l.b16 %v621
    %v2713 = vunpack.c.h.b16 %v621
    %v2714 = vunpack.c.l.b16 %v622
    %v2715 = vunpack.c.h.b16 %v622
    %v2716 = vunpack.c.l.b16 %v623
    %v2717 = vunpack.c.h.b16 %v623
    %v2718 = vunpack.c.l.b16 %v624
    %v2719 = vunpack.c.h.b16 %v624
    %v2720 = vunpack.c.l.b16 %v625
    %v2721 = vunpack.c.h.b16 %v625
    %v2722 = vunpack.c.l.b16 %v626
    %v2723 = vunpack.c.h.b16 %v626
    %v2724 = vunpack.c.l.b16 %v627
    %v2725 = vunpack.c.h.b16 %v627
    %v2726 = vunpack.c.l.b16 %v628
    %v2727 = vunpack.c.h.b16 %v628
    %v2728 = vunpack.c.l.b16 %v629
    %v2729 = vunpack.c.h.b16 %v629
    %v2730 = vunpack.c.l.b16 %v630
    %v2731 = vunpack.c.h.b16 %v630
    %v2732 = vunpack.c.l.b16 %v631
    %v2733 = vunpack.c.h.b16 %v631
    %v2734 = vunpack.c.l.b16 %v632
    %v2735 = vunpack.c.h.b16 %v632
    %v2736 = vunpack.c.l.b16 %v633
    %v2737 = vunpack.c.h.b16 %v633
    %v2738 = vunpack.c.l.b16 %v634
    %v2739 = vunpack.c.h.b16 %v634
    %v2740 = vunpack.c.l.b16 %v635
    %v2741 = vunpack.c.h.b16 %v635
    %v2742 = vunpack.c.l.b16 %v636
    %v2743 = vunpack.c.h.b16 %v636
    %v2744 = vunpack.c.l.b16 %v637
    %v2745 = vunpack.c.h.b16 %v637
    %v2746 = vunpack.c.l.b16 %v638
    %v2747 = vunpack.c.h.b16 %v638
    %v2748 = vunpack.c.l.b16 %v639
    %v2749 = vunpack.c.h.b16 %v639
    %v2750 = vunpack.c.l.b16 %v640
    %v2751 = vunpack.c.h.b16 %v640
    %v2752 = vunpack.c.l.b16 %v641
    %v2753 = vunpack.c.h.b16 %v641
    %v2754 = vunpack.c.l.b16 %v642
    %v2755 = vunpack.c.h.b16 %v642
    %v2756 = vunpack.c.l.b16 %v643
    %v2757 = vunpack.c.h.b16 %v643
    %v2758 = vunpack.c.l.b16 %v644
    %v2759 = vunpack.c.h.b16 %v644
    %v2760 = vunpack.c.l.b16 %v645
    %v2761 = vunpack.c.h.b16 %v645
    %v2762 = vunpack.c.l.b16 %v646
    %v2763 = vunpack.c.h.b16 %v646
    %v2764 = vunpack.c.l.b16 %v647
    %v2765 = vunpack.c.h.b16 %v647
    %v2766 = vunpack.c.l.b16 %v648
    %v2767 = vunpack.c.h.b16 %v648
    %v2768 = vunpack.c.l.b16 %v649
    %v2769 = vunpack.c.h.b16 %v649
    %v2770 = vunpack.c.l.b16 %v650
    %v2771 = vunpack.c.h.b16 %v650
    %v2772 = vunpack.c.l.b16 %v651
    %v2773 = vunpack.c.h.b16 %v651
    %v2774 = vunpack.c.l.b16 %v652
    %v2775 = vunpack.c.h.b16 %v652
    %v2776 = vunpack.c.l.b16 %v653
    %v2777 = vunpack.c.h.b16 %v653
    %v2778 = vunpack.c.l.b16 %v654
    %v2779 = vunpack.c.h.b16 %v654
    %v2780 = vunpack.c.l.b16 %v655
    %v2781 = vunpack.c.h.b16 %v655
    %v2782 = vunpack.c.l.b16 %v656
    %v2783 = vunpack.c.h.b16 %v656
    %v2784 = vunpack.c.l.b16 %v657
    %v2785 = vunpack.c.h.b16 %v657
    %v2786 = vunpack.c.l.b16 %v658
    %v2787 = vunpack.c.h.b16 %v658
    %v2788 = vunpack.c.l.b16 %v659
    %v2789 = vunpack.c.h.b16 %v659
    %v2790 = vunpack.c.l.b16 %v660
    %v2791 = vunpack.c.h.b16 %v660
    %v2792 = vunpack.c.l.b16 %v661
    %v2793 = vunpack.c.h.b16 %v661
    %v2794 = vunpack.c.l.b16 %v662
    %v2795 = vunpack.c.h.b16 %v662
    %v2796 = vunpack.c.l.b16 %v663
    %v2797 = vunpack.c.h.b16 %v663
    %v2798 = vunpack.c.l.b16 %v664
    %v2799 = vunpack.c.h.b16 %v664
    %v2800 = vunpack.c.l.b16 %v665
    %v2801 = vunpack.c.h.b16 %v665
    %v2802 = vunpack.c.l.b16 %v666
    %v2803 = vunpack.c.h.b16 %v666
    %v2804 = vunpack.c.l.b16 %v667
    %v2805 = vunpack.c.h.b16 %v667
    %v2806 = vunpack.c.l.b16 %v668
    %v2807 = vunpack.c.h.b16 %v668
    %v2808 = vunpack.c.l.b16 %v669
    %v2809 = vunpack.c.h.b16 %v669
    %v2810 = vunpack.c.l.b16 %v670
    %v2811 = vunpack.c.h.b16 %v670
    %v2812 = vunpack.c.l.b16 %v671
    %v2813 = vunpack.c.h.b16 %v671
    %v2814 = vunpack.c.l.b16 %v672
    %v2815 = vunpack.c.h.b16 %v672
    %v2816 = vunpack.c.l.b16 %v673
    %v2817 = vunpack.c.h.b16 %v673
    %v2818 = vunpack.c.l.b16 %v674
    %v2819 = vunpack.c.h.b16 %v674
    %v2820 = vunpack.c.l.b16 %v675
    %v2821 = vunpack.c.h.b16 %v675
    %v2822 = vunpack.c.l.b16 %v676
    %v2823 = vunpack.c.h.b16 %v676
    %v2824 = vunpack.c.l.b16 %v677
    %v2825 = vunpack.c.h.b16 %v677
    %v2826 = vunpack.c.l.b16 %v678
    %v2827 = vunpack.c.h.b16 %v678
    %v2828 = vunpack.c.l.b16 %v679
    %v2829 = vunpack.c.h.b16 %v679
    %v2830 = vunpack.c.l.b16 %v680
    %v2831 = vunpack.c.h.b16 %v680
    %v2832 = vunpack.c.l.b16 %v681
    %v2833 = vunpack.c.h.b16 %v681
    %v2834 = vunpack.c.l.b16 %v682
    %v2835 = vunpack.c.h.b16 %v682
    %v2836 = vunpack.c.l.b16 %v683
    %v2837 = vunpack.c.h.b16 %v683
    %v2838 = vunpack.c.l.b16 %v684
    %v2839 = vunpack.c.h.b16 %v684
    %v2840 = vunpack.c.l.b16 %v685
    %v2841 = vunpack.c.h.b16 %v685
    %v2842 = vunpack.c.l.b16 %v686
    %v2843 = vunpack.c.h.b16 %v686
    %v2844 = vunpack.c.l.b16 %v687
    %v2845 = vunpack.c.h.b16 %v687
    %v2846 = vunpack.c.l.b16 %v688
    %v2847 = vunpack.c.h.b16 %v688
    %v2848 = vunpack.c.l.b16 %v689
    %v2849 = vunpack.c.h.b16 %v689
    %v2850 = vunpack.c.l.b16 %v690
    %v2851 = vunpack.c.h.b16 %v690
    %v2852 = vunpack.c.l.b16 %v691
    %v2853 = vunpack.c.h.b16 %v691
    %v2854 = vunpack.c.l.b16 %v692
    %v2855 = vunpack.c.h.b16 %v692
    %v2856 = vunpack.c.l.b16 %v693
    %v2857 = vunpack.c.h.b16 %v693
    %v2858 = vunpack.c.l.b16 %v694
    %v2859 = vunpack.c.h.b16 %v694
    %v2860 = vunpack.c.l.b16 %v695
    %v2861 = vunpack.c.h.b16 %v695
    %v2862 = vunpack.c.l.b16 %v696
    %v2863 = vunpack.c.h.b16 %v696
    %v2864 = vunpack.c.l.b16 %v697
    %v2865 = vunpack.c.h.b16 %v697
    %v2866 = vunpack.c.l.b16 %v698
    %v2867 = vunpack.c.h.b16 %v698
    %v2868 = vunpack.c.l.b16 %v699
    %v2869 = vunpack.c.h.b16 %v699
    %v2870 = vunpack.c.l.b16 %v700
    %v2871 = vunpack.c.h.b16 %v700
    %v2872 = vunpack.c.l.b16 %v701
    %v2873 = vunpack.c.h.b16 %v701
    %v2874 = vunpack.c.l.b16 %v702
    %v2875 = vunpack.c.h.b16 %v702
    %v2876 = vunpack.c.l.b16 %v703
    %v2877 = vunpack.c.h.b16 %v703
    %v2878 = vunpack.c.l.b16 %v704
    %v2879 = vunpack.c.h.b16 %v704
    %v2880 = vunpack.c.l.b16 %v705
    %v2881 = vunpack.c.h.b16 %v705
    %v2882 = vunpack.c.l.b16 %v706
    %v2883 = vunpack.c.h.b16 %v706
    %v2884 = vunpack.c.l.b16 %v707
    %v2885 = vunpack.c.h.b16 %v707
    %v2886 = vunpack.c.l.b16 %v708
    %v2887 = vunpack.c.h.b16 %v708
    %v2888 = vunpack.c.l.b16 %v709
    %v2889 = vunpack.c.h.b16 %v709
    %v2890 = vunpack.c.l.b16 %v710
    %v2891 = vunpack.c.h.b16 %v710
    %v2892 = vunpack.c.l.b16 %v711
    %v2893 = vunpack.c.h.b16 %v711
    %v2894 = vunpack.c.l.b16 %v712
    %v2895 = vunpack.c.h.b16 %v712
    %v2896 = vunpack.c.l.b16 %v713
    %v2897 = vunpack.c.h.b16 %v713
    %v2898 = vunpack.c.l.b16 %v714
    %v2899 = vunpack.c.h.b16 %v714
    %v2900 = vunpack.c.l.b16 %v715
    %v2901 = vunpack.c.h.b16 %v715
    %v2902 = vunpack.c.l.b16 %v716
    %v2903 = vunpack.c.h.b16 %v716
    %v2904 = vunpack.c.l.b16 %v717
    %v2905 = vunpack.c.h.b16 %v717
    %v2906 = vunpack.c.l.b16 %v718
    %v2907 = vunpack.c.h.b16 %v718
    %v2908 = vunpack.c.l.b16 %v719
    %v2909 = vunpack.c.h.b16 %v719
    %v2910 = vunpack.c.l.b16 %v720
    %v2911 = vunpack.c.h.b16 %v720
    %v2912 = vunpack.c.l.b16 %v721
    %v2913 = vunpack.c.h.b16 %v721
    %v2914 = vunpack.c.l.b16 %v722
    %v2915 = vunpack.c.h.b16 %v722
    %v2916 = vunpack.c.l.b16 %v723
    %v2917 = vunpack.c.h.b16 %v723
    %v2918 = vunpack.c.l.b16 %v724
    %v2919 = vunpack.c.h.b16 %v724
    %v2920 = vunpack.c.l.b16 %v725
    %v2921 = vunpack.c.h.b16 %v725
    %v2922 = vunpack.c.l.b16 %v726
    %v2923 = vunpack.c.h.b16 %v726
    %v2924 = vunpack.c.l.b16 %v727
    %v2925 = vunpack.c.h.b16 %v727
    %v2926 = vunpack.c.l.b16 %v728
    %v2927 = vunpack.c.h.b16 %v728
    %v2928 = vunpack.c.l.b16 %v729
    %v2929 = vunpack.c.h.b16 %v729
    %v2930 = vunpack.c.l.b16 %v730
    %v2931 = vunpack.c.h.b16 %v730
    %v2932 = vunpack.c.l.b16 %v731
    %v2933 = vunpack.c.h.b16 %v731
    %v2934 = vunpack.c.l.b16 %v732
    %v2935 = vunpack.c.h.b16 %v732
    %v2936 = vunpack.c.l.b16 %v733
    %v2937 = vunpack.c.h.b16 %v733
    %v2938 = vunpack.c.l.b16 %v734
    %v2939 = vunpack.c.h.b16 %v734
    %v2940 = vunpack.c.l.b16 %v735
    %v2941 = vunpack.c.h.b16 %v735
    %v2942 = vunpack.c.l.b16 %v736
    %v2943 = vunpack.c.h.b16 %v736
    %v2944 = vunpack.c.l.b16 %v737
    %v2945 = vunpack.c.h.b16 %v737
    %v2946 = vunpack.c.l.b16 %v738
    %v2947 = vunpack.c.h.b16 %v738
    %v2948 = vunpack.c.l.b16 %v739
    %v2949 = vunpack.c.h.b16 %v739
    %v2950 = vunpack.c.l.b16 %v740
    %v2951 = vunpack.c.h.b16 %v740
    %v2952 = vunpack.c.l.b16 %v741
    %v2953 = vunpack.c.h.b16 %v741
    %v2954 = vunpack.c.l.b16 %v742
    %v2955 = vunpack.c.h.b16 %v742
    %v2956 = vunpack.c.l.b16 %v743
    %v2957 = vunpack.c.h.b16 %v743
    %v2958 = vunpack.c.l.b16 %v744
    %v2959 = vunpack.c.h.b16 %v744
    %v2960 = vunpack.c.l.b16 %v745
    %v2961 = vunpack.c.h.b16 %v745
    %v2962 = vunpack.c.l.b16 %v746
    %v2963 = vunpack.c.h.b16 %v746
    %v2964 = vunpack.c.l.b16 %v747
    %v2965 = vunpack.c.h.b16 %v747
    %v2966 = vunpack.c.l.b16 %v748
    %v2967 = vunpack.c.h.b16 %v748
    %v2968 = vunpack.c.l.b16 %v749
    %v2969 = vunpack.c.h.b16 %v749
    %v2970 = vunpack.c.l.b16 %v750
    %v2971 = vunpack.c.h.b16 %v750
    %v2972 = vunpack.c.l.b16 %v751
    %v2973 = vunpack.c.h.b16 %v751
    %v2974 = vunpack.c.l.b16 %v752
    %v2975 = vunpack.c.h.b16 %v752
    %v2976 = vunpack.c.l.b16 %v753
    %v2977 = vunpack.c.h.b16 %v753
    %v2978 = vunpack.c.l.b16 %v754
    %v2979 = vunpack.c.h.b16 %v754
    %v2980 = vunpack.c.l.b16 %v755
    %v2981 = vunpack.c.h.b16 %v755
    %v2982 = vunpack.c.l.b16 %v756
    %v2983 = vunpack.c.h.b16 %v756
    %v2984 = vunpack.c.l.b16 %v757
    %v2985 = vunpack.c.h.b16 %v757
    %v2986 = vunpack.c.l.b16 %v758
    %v2987 = vunpack.c.h.b16 %v758
    %v2988 = vunpack.c.l.b16 %v759
    %v2989 = vunpack.c.h.b16 %v759
    %v2990 = vunpack.c.l.b16 %v760
    %v2991 = vunpack.c.h.b16 %v760
    %v2992 = vunpack.c.l.b16 %v761
    %v2993 = vunpack.c.h.b16 %v761
    %v2994 = vunpack.c.l.b16 %v762
    %v2995 = vunpack.c.h.b16 %v762
    %v2996 = vunpack.c.l.b16 %v763
    %v2997 = vunpack.c.h.b16 %v763
    %v2998 = vunpack.c.l.b16 %v764
    %v2999 = vunpack.c.h.b16 %v764
    %v3000 = vunpack.c.l.b16 %v765
    %v3001 = vunpack.c.h.b16 %v765
    %v3002 = vunpack.c.l.b16 %v766
    %v3003 = vunpack.c.h.b16 %v766
    %v3004 = vunpack.c.l.b16 %v767
    %v3005 = vunpack.c.h.b16 %v767
    %v3006 = vunpack.c.l.b16 %v768
    %v3007 = vunpack.c.h.b16 %v768
    %v3008 = vunpack.c.l.b16 %v769
    %v3009 = vunpack.c.h.b16 %v769
    %v3010 = vunpack.c.l.b16 %v770
    %v3011 = vunpack.c.h.b16 %v770
    %v3012 = vunpack.c.l.b16 %v771
    %v3013 = vunpack.c.h.b16 %v771
    %v3014 = vunpack.c.l.b16 %v772
    %v3015 = vunpack.c.h.b16 %v772
    %v3016 = vunpack.c.l.b16 %v773
    %v3017 = vunpack.c.h.b16 %v773
    %v3018 = vunpack.c.l.b16 %v774
    %v3019 = vunpack.c.h.b16 %v774
    %v3020 = vunpack.c.l.b16 %v775
    %v3021 = vunpack.c.h.b16 %v775
    %v3022 = vunpack.c.l.b16 %v776
    %v3023 = vunpack.c.h.b16 %v776
    %v3024 = vunpack.c.l.b16 %v777
    %v3025 = vunpack.c.h.b16 %v777
    %v3026 = vunpack.c.l.b16 %v778
    %v3027 = vunpack.c.h.b16 %v778
    %v3028 = vunpack.c.l.b16 %v779
    %v3029 = vunpack.c.h.b16 %v779
    %v3030 = vunpack.c.l.b16 %v780
    %v3031 = vunpack.c.h.b16 %v780
    %v3032 = vunpack.c.l.b16 %v781
    %v3033 = vunpack.c.h.b16 %v781
    %v3034 = vunpack.c.l.b16 %v782
    %v3035 = vunpack.c.h.b16 %v782
    %v3036 = vunpack.c.l.b16 %v783
    %v3037 = vunpack.c.h.b16 %v783
    %v3038 = vunpack.c.l.b16 %v784
    %v3039 = vunpack.c.h.b16 %v784
    %v3040 = vunpack.c.l.b16 %v785
    %v3041 = vunpack.c.h.b16 %v785
    %v3042 = vunpack.c.l.b16 %v786
    %v3043 = vunpack.c.h.b16 %v786
    %v3044 = vunpack.c.l.b16 %v787
    %v3045 = vunpack.c.h.b16 %v787
    %v3046 = vunpack.c.l.b16 %v788
    %v3047 = vunpack.c.h.b16 %v788
    %v3048 = vunpack.c.l.b16 %v789
    %v3049 = vunpack.c.h.b16 %v789
    %v3050 = vunpack.c.l.b16 %v790
    %v3051 = vunpack.c.h.b16 %v790
    %v3052 = vunpack.c.l.b16 %v791
    %v3053 = vunpack.c.h.b16 %v791
    %v3054 = vunpack.c.l.b16 %v792
    %v3055 = vunpack.c.h.b16 %v792
    %v3056 = vunpack.c.l.b16 %v793
    %v3057 = vunpack.c.h.b16 %v793
    %v3058 = vunpack.c.l.b16 %v794
    %v3059 = vunpack.c.h.b16 %v794
    %v3060 = vunpack.c.l.b16 %v795
    %v3061 = vunpack.c.h.b16 %v795
    %v3062 = vunpack.c.l.b16 %v796
    %v3063 = vunpack.c.h.b16 %v796
    %v3064 = vunpack.c.l.b16 %v797
    %v3065 = vunpack.c.h.b16 %v797
    %v3066 = vunpack.c.l.b16 %v798
    %v3067 = vunpack.c.h.b16 %v798
    %v3068 = vunpack.c.l.b16 %v799
    %v3069 = vunpack.c.h.b16 %v799
    %v3070 = vunpack.c.l.b16 %v800
    %v3071 = vunpack.c.h.b16 %v800
    %v3072 = vunpack.c.l.b16 %v801
    %v3073 = vunpack.c.h.b16 %v801
    %v3074 = vunpack.c.l.b16 %v802
    %v3075 = vunpack.c.h.b16 %v802
    %v3076 = vunpack.c.l.b16 %v803
    %v3077 = vunpack.c.h.b16 %v803
    %v3078 = vunpack.c.l.b16 %v804
    %v3079 = vunpack.c.h.b16 %v804
    %v3080 = vunpack.c.l.b16 %v805
    %v3081 = vunpack.c.h.b16 %v805
    %v3082 = vunpack.c.l.b16 %v806
    %v3083 = vunpack.c.h.b16 %v806
    %v3084 = vunpack.c.l.b16 %v807
    %v3085 = vunpack.c.h.b16 %v807
    %v3086 = vunpack.c.l.b16 %v808
    %v3087 = vunpack.c.h.b16 %v808
    %v3088 = vunpack.c.l.b16 %v809
    %v3089 = vunpack.c.h.b16 %v809
    %v3090 = vunpack.c.l.b16 %v810
    %v3091 = vunpack.c.h.b16 %v810
    %v3092 = vunpack.c.l.b16 %v811
    %v3093 = vunpack.c.h.b16 %v811
    %v3094 = vunpack.c.l.b16 %v812
    %v3095 = vunpack.c.h.b16 %v812
    %v3096 = vunpack.c.l.b16 %v813
    %v3097 = vunpack.c.h.b16 %v813
    %v3098 = vunpack.c.l.b16 %v814
    %v3099 = vunpack.c.h.b16 %v814
    %v3100 = vunpack.c.l.b16 %v815
    %v3101 = vunpack.c.h.b16 %v815
    %v3102 = vunpack.c.l.b16 %v816
    %v3103 = vunpack.c.h.b16 %v816
    %v3104 = vunpack.c.l.b16 %v817
    %v3105 = vunpack.c.h.b16 %v817
    %v3106 = vunpack.c.l.b16 %v818
    %v3107 = vunpack.c.h.b16 %v818
    %v3108 = vunpack.c.l.b16 %v819
    %v3109 = vunpack.c.h.b16 %v819
    %v3110 = vunpack.c.l.b16 %v820
    %v3111 = vunpack.c.h.b16 %v820
    %v3112 = vunpack.c.l.b16 %v821
    %v3113 = vunpack.c.h.b16 %v821
    %v3114 = vunpack.c.l.b16 %v822
    %v3115 = vunpack.c.h.b16 %v822
    %v3116 = vunpack.c.l.b16 %v823
    %v3117 = vunpack.c.h.b16 %v823
    %v3118 = vunpack.c.l.b16 %v824
    %v3119 = vunpack.c.h.b16 %v824
    %v3120 = vunpack.c.l.b16 %v825
    %v3121 = vunpack.c.h.b16 %v825
    %v3122 = vunpack.c.l.b16 %v826
    %v3123 = vunpack.c.h.b16 %v826
    %v3124 = vunpack.c.l.b16 %v827
    %v3125 = vunpack.c.h.b16 %v827
    %v3126 = vunpack.c.l.b16 %v828
    %v3127 = vunpack.c.h.b16 %v828
    %v3128 = vunpack.c.l.b16 %v829
    %v3129 = vunpack.c.h.b16 %v829
    %v3130 = vunpack.c.l.b16 %v830
    %v3131 = vunpack.c.h.b16 %v830
    %v3132 = vunpack.c.l.b16 %v831
    %v3133 = vunpack.c.h.b16 %v831
    %v3134 = vunpack.c.l.b16 %v832
    %v3135 = vunpack.c.h.b16 %v832
    %v3136 = vunpack.c.l.b16 %v833
    %v3137 = vunpack.c.h.b16 %v833
    %v3138 = vunpack.c.l.b16 %v834
    %v3139 = vunpack.c.h.b16 %v834
    %v3140 = vunpack.c.l.b16 %v835
    %v3141 = vunpack.c.h.b16 %v835
    %v3142 = vunpack.c.l.b16 %v836
    %v3143 = vunpack.c.h.b16 %v836
    %v3144 = vunpack.c.l.b16 %v837
    %v3145 = vunpack.c.h.b16 %v837
    %v3146 = vunpack.c.l.b16 %v838
    %v3147 = vunpack.c.h.b16 %v838
    %v3148 = vunpack.c.l.b16 %v839
    %v3149 = vunpack.c.h.b16 %v839
    %v3150 = vunpack.c.l.b16 %v840
    %v3151 = vunpack.c.h.b16 %v840
    %v3152 = vunpack.c.l.b16 %v841
    %v3153 = vunpack.c.h.b16 %v841
    %v3154 = vunpack.c.l.b16 %v842
    %v3155 = vunpack.c.h.b16 %v842
    %v3156 = vunpack.c.l.b16 %v843
    %v3157 = vunpack.c.h.b16 %v843
    %v3158 = vunpack.c.l.b16 %v844
    %v3159 = vunpack.c.h.b16 %v844
    %v3160 = vunpack.c.l.b16 %v845
    %v3161 = vunpack.c.h.b16 %v845
    %v3162 = vunpack.c.l.b16 %v846
    %v3163 = vunpack.c.h.b16 %v846
    %v3164 = vunpack.c.l.b16 %v847
    %v3165 = vunpack.c.h.b16 %v847
    %v3166 = vunpack.c.l.b16 %v848
    %v3167 = vunpack.c.h.b16 %v848
    %v3168 = vunpack.c.l.b16 %v849
    %v3169 = vunpack.c.h.b16 %v849
    %v3170 = vunpack.c.l.b16 %v850
    %v3171 = vunpack.c.h.b16 %v850
    %v3172 = vunpack.c.l.b16 %v851
    %v3173 = vunpack.c.h.b16 %v851
    %v3174 = vunpack.c.l.b16 %v852
    %v3175 = vunpack.c.h.b16 %v852
    %v3176 = vunpack.c.l.b16 %v853
    %v3177 = vunpack.c.h.b16 %v853
    %v3178 = vunpack.c.l.b16 %v854
    %v3179 = vunpack.c.h.b16 %v854
    %v3180 = vunpack.c.l.b16 %v855
    %v3181 = vunpack.c.h.b16 %v855
    %v3182 = vunpack.c.l.b16 %v856
    %v3183 = vunpack.c.h.b16 %v856
    %v3184 = vunpack.c.l.b16 %v857
    %v3185 = vunpack.c.h.b16 %v857
    %v3186 = vunpack.c.l.b16 %v858
    %v3187 = vunpack.c.h.b16 %v858
    %v3188 = vunpack.c.l.b16 %v859
    %v3189 = vunpack.c.h.b16 %v859
    %v3190 = vunpack.c.l.b16 %v860
    %v3191 = vunpack.c.h.b16 %v860
    %v3192 = vunpack.c.l.b16 %v861
    %v3193 = vunpack.c.h.b16 %v861
    %v3194 = vunpack.c.l.b16 %v862
    %v3195 = vunpack.c.h.b16 %v862
    %v3196 = vunpack.c.l.b16 %v863
    %v3197 = vunpack.c.h.b16 %v863
    %v3198 = vunpack.c.l.b16 %v864
    %v3199 = vunpack.c.h.b16 %v864
    %v3200 = vunpack.c.l.b16 %v865
    %v3201 = vunpack.c.h.b16 %v865
    %v3202 = vunpack.c.l.b16 %v866
    %v3203 = vunpack.c.h.b16 %v866
    %v3204 = vunpack.c.l.b16 %v867
    %v3205 = vunpack.c.h.b16 %v867
    %v3206 = vunpack.c.l.b16 %v868
    %v3207 = vunpack.c.h.b16 %v868
    %v3208 = vunpack.c.l.b16 %v869
    %v3209 = vunpack.c.h.b16 %v869
    %v3210 = vunpack.c.l.b16 %v870
    %v3211 = vunpack.c.h.b16 %v870
    %v3212 = vunpack.c.l.b16 %v871
    %v3213 = vunpack.c.h.b16 %v871
    %v3214 = vunpack.c.l.b16 %v872
    %v3215 = vunpack.c.h.b16 %v872
    %v3216 = vunpack.c.l.b16 %v873
    %v3217 = vunpack.c.h.b16 %v873
    %v3218 = vunpack.c.l.b16 %v874
    %v3219 = vunpack.c.h.b16 %v874
    %v3220 = vunpack.c.l.b16 %v875
    %v3221 = vunpack.c.h.b16 %v875
    %v3222 = vunpack.c.l.b16 %v876
    %v3223 = vunpack.c.h.b16 %v876
    %v3224 = vunpack.c.l.b16 %v877
    %v3225 = vunpack.c.h.b16 %v877
    %v3226 = vunpack.c.l.b16 %v878
    %v3227 = vunpack.c.h.b16 %v878
    %v3228 = vunpack.c.l.b16 %v879
    %v3229 = vunpack.c.h.b16 %v879
    %v3230 = vunpack.c.l.b16 %v880
    %v3231 = vunpack.c.h.b16 %v880
    %v3232 = vunpack.c.l.b16 %v881
    %v3233 = vunpack.c.h.b16 %v881
    %v3234 = vunpack.c.l.b16 %v882
    %v3235 = vunpack.c.h.b16 %v882
    %v3236 = vunpack.c.l.b16 %v883
    %v3237 = vunpack.c.h.b16 %v883
    %v3238 = vunpack.c.l.b16 %v884
    %v3239 = vunpack.c.h.b16 %v884
    %v3240 = vunpack.c.l.b16 %v885
    %v3241 = vunpack.c.h.b16 %v885
    %v3242 = vunpack.c.l.b16 %v886
    %v3243 = vunpack.c.h.b16 %v886
    %v3244 = vunpack.c.l.b16 %v887
    %v3245 = vunpack.c.h.b16 %v887
    %v3246 = vunpack.c.l.b16 %v888
    %v3247 = vunpack.c.h.b16 %v888
    %v3248 = vunpack.c.l.b16 %v889
    %v3249 = vunpack.c.h.b16 %v889
    %v3250 = vunpack.c.l.b16 %v890
    %v3251 = vunpack.c.h.b16 %v890
    %v3252 = vunpack.c.l.b16 %v891
    %v3253 = vunpack.c.h.b16 %v891
    %v3254 = vunpack.c.l.b16 %v892
    %v3255 = vunpack.c.h.b16 %v892
    %v3256 = vunpack.c.l.b16 %v893
    %v3257 = vunpack.c.h.b16 %v893
    %v3258 = vunpack.c.l.b16 %v894
    %v3259 = vunpack.c.h.b16 %v894
    %v3260 = vunpack.c.l.b16 %v895
    %v3261 = vunpack.c.h.b16 %v895
    %v3262 = vunpack.c.l.b16 %v896
    %v3263 = vunpack.c.h.b16 %v896
    %v3264 = vunpack.c.l.b16 %v897
    %v3265 = vunpack.c.h.b16 %v897
    %v3266 = vunpack.c.l.b16 %v898
    %v3267 = vunpack.c.h.b16 %v898
    %v3268 = vunpack.c.l.b16 %v899
    %v3269 = vunpack.c.h.b16 %v899
    %v3270 = vunpack.c.l.b16 %v900
    %v3271 = vunpack.c.h.b16 %v900
    %v3272 = vunpack.c.l.b16 %v901
    %v3273 = vunpack.c.h.b16 %v901
    %v3274 = vunpack.c.l.b16 %v902
    %v3275 = vunpack.c.h.b16 %v902
    %v3276 = vunpack.c.l.b16 %v903
    %v3277 = vunpack.c.h.b16 %v903
    %v3278 = vunpack.c.l.b16 %v904
    %v3279 = vunpack.c.h.b16 %v904
    %v3280 = vunpack.c.l.b16 %v905
    %v3281 = vunpack.c.h.b16 %v905
    %v3282 = vunpack.c.l.b16 %v906
    %v3283 = vunpack.c.h.b16 %v906
    %v3284 = vunpack.c.l.b16 %v907
    %v3285 = vunpack.c.h.b16 %v907
    %v3286 = vunpack.c.l.b16 %v908
    %v3287 = vunpack.c.h.b16 %v908
    %v3288 = vunpack.c.l.b16 %v909
    %v3289 = vunpack.c.h.b16 %v909
    %v3290 = vunpack.c.l.b16 %v910
    %v3291 = vunpack.c.h.b16 %v910
    %v3292 = vunpack.c.l.b16 %v911
    %v3293 = vunpack.c.h.b16 %v911
    %v3294 = vunpack.c.l.b16 %v912
    %v3295 = vunpack.c.h.b16 %v912
    %v3296 = vunpack.c.l.b16 %v913
    %v3297 = vunpack.c.h.b16 %v913
    %v3298 = vunpack.c.l.b16 %v914
    %v3299 = vunpack.c.h.b16 %v914
    %v3300 = vunpack.c.l.b16 %v915
    %v3301 = vunpack.c.h.b16 %v915
    %v3302 = vunpack.c.l.b16 %v916
    %v3303 = vunpack.c.h.b16 %v916
    %v3304 = vunpack.c.l.b16 %v917
    %v3305 = vunpack.c.h.b16 %v917
    %v3306 = vunpack.c.l.b16 %v918
    %v3307 = vunpack.c.h.b16 %v918
    %v3308 = vunpack.c.l.b16 %v919
    %v3309 = vunpack.c.h.b16 %v919
    %v3310 = vunpack.c.l.b16 %v920
    %v3311 = vunpack.c.h.b16 %v920
    %v3312 = vunpack.c.l.b16 %v921
    %v3313 = vunpack.c.h.b16 %v921
    %v3314 = vpack.c.b16 %v1784, %v1778
    %v3315 = vpack.c.b16 %v1785, %v1779
    %v3316 = vpack.c.b16 %v1786, %v1780
    %v3317 = vpack.c.b16 %v1787, %v1781
    %v3318 = vpack.c.b16 %v1788, %v1782
    %v3319 = vpack.c.b16 %v1789, %v1783
    %v3320 = vpack.c.b16 %v1796, %v1790
    %v3321 = vpack.c.b16 %v1797, %v1791
    %v3322 = vpack.c.b16 %v1798, %v1792
    %v3323 = vpack.c.b16 %v1799, %v1793
    %v3324 = vpack.c.b16 %v1800, %v1794
    %v3325 = vpack.c.b16 %v1801, %v1795
    %v3326 = vpack.c.b16 %v1808, %v1802
    %v3327 = vpack.c.b16 %v1809, %v1803
    %v3328 = vpack.c.b16 %v1810, %v1804
    %v3329 = vpack.c.b16 %v1811, %v1805
    %v3330 = vpack.c.b16 %v1812, %v1806
    %v3331 = vpack.c.b16 %v1813, %v1807
    %v3332 = vpack.c.b16 %v1820, %v1814
    %v3333 = vpack.c.b16 %v1821, %v1815
    %v3334 = vpack.c.b16 %v1822, %v1816
    %v3335 = vpack.c.b16 %v1823, %v1817
    %v3336 = vpack.c.b16 %v1824, %v1818
    %v3337 = vpack.c.b16 %v1825, %v1819
    %v3338 = vpack.c.b16 %v1832, %v1826
    %v3339 = vpack.c.b16 %v1833, %v1827
    %v3340 = vpack.c.b16 %v1834, %v1828
    %v3341 = vpack.c.b16 %v1835, %v1829
    %v3342 = vpack.c.b16 %v1836, %v1830
    %v3343 = vpack.c.b16 %v1837, %v1831
    %v3344 = vpack.c.b16 %v1844, %v1838
    %v3345 = vpack.c.b16 %v1845, %v1839
    %v3346 = vpack.c.b16 %v1846, %v1840
    %v3347 = vpack.c.b16 %v1847, %v1841
    %v3348 = vpack.c.b16 %v1848, %v1842
    %v3349 = vpack.c.b16 %v1849, %v1843
    %v3350 = vpack.c.b16 %v1856, %v1850
    %v3351 = vpack.c.b16 %v1857, %v1851
    %v3352 = vpack.c.b16 %v1858, %v1852
    %v3353 = vpack.c.b16 %v1859, %v1853
    %v3354 = vpack.c.b16 %v1860, %v1854
    %v3355 = vpack.c.b16 %v1861, %v1855
    %v3356 = vpack.c.b16 %v1868, %v1862
    %v3357 = vpack.c.b16 %v1869, %v1863
    %v3358 = vpack.c.b16 %v1870, %v1864
    %v3359 = vpack.c.b16 %v1871, %v1865
    %v3360 = vpack.c.b16 %v1872, %v1866
    %v3361 = vpack.c.b16 %v1873, %v1867
    %v3362 = vpack.c.b16 %v1880, %v1874
    %v3363 = vpack.c.b16 %v1881, %v1875
    %v3364 = vpack.c.b16 %v1882, %v1876
    %v3365 = vpack.c.b16 %v1883, %v1877
    %v3366 = vpack.c.b16 %v1884, %v1878
    %v3367 = vpack.c.b16 %v1885, %v1879
    %v3368 = vpack.c.b16 %v1892, %v1886
    %v3369 = vpack.c.b16 %v1893, %v1887
    %v3370 = vpack.c.b16 %v1894, %v1888
    %v3371 = vpack.c.b16 %v1895, %v1889
    %v3372 = vpack.c.b16 %v1896, %v1890
    %v3373 = vpack.c.b16 %v1897, %v1891
    %v3374 = vpack.c.b16 %v1904, %v1898
    %v3375 = vpack.c.b16 %v1905, %v1899
    %v3376 = vpack.c.b16 %v1906, %v1900
    %v3377 = vpack.c.b16 %v1907, %v1901
    %v3378 = vpack.c.b16 %v1908, %v1902
    %v3379 = vpack.c.b16 %v1909, %v1903
    %v3380 = vpack.c.b16 %v1916, %v1910
    %v3381 = vpack.c.b16 %v1917, %v1911
    %v3382 = vpack.c.b16 %v1918, %v1912
    %v3383 = vpack.c.b16 %v1919, %v1913
    %v3384 = vpack.c.b16 %v1920, %v1914
    %v3385 = vpack.c.b16 %v1921, %v1915
    %v3386 = vpack.c.b16 %v1928, %v1922
    %v3387 = vpack.c.b16 %v1929, %v1923
    %v3388 = vpack.c.b16 %v1930, %v1924
    %v3389 = vpack.c.b16 %v1931, %v1925
    %v3390 = vpack.c.b16 %v1932, %v1926
    %v3391 = vpack.c.b16 %v1933, %v1927
    %v3392 = vpack.c.b16 %v1940, %v1934
    %v3393 = vpack.c.b16 %v1941, %v1935
    %v3394 = vpack.c.b16 %v1942, %v1936
    %v3395 = vpack.c.b16 %v1943, %v1937
    %v3396 = vpack.c.b16 %v1944, %v1938
    %v3397 = vpack.c.b16 %v1945, %v1939
    %v3398 = vpack.c.b16 %v1952, %v1946
    %v3399 = vpack.c.b16 %v1953, %v1947
    %v3400 = vpack.c.b16 %v1954, %v1948
    %v3401 = vpack.c.b16 %v1955, %v1949
    %v3402 = vpack.c.b16 %v1956, %v1950
    %v3403 = vpack.c.b16 %v1957, %v1951
    %v3404 = vpack.c.b16 %v1964, %v1958
    %v3405 = vpack.c.b16 %v1965, %v1959
    %v3406 = vpack.c.b16 %v1966, %v1960
    %v3407 = vpack.c.b16 %v1967, %v1961
    %v3408 = vpack.c.b16 %v1968, %v1962
    %v3409 = vpack.c.b16 %v1969, %v1963
    %v3410 = vpack.c.b16 %v1976, %v1970
    %v3411 = vpack.c.b16 %v1977, %v1971
    %v3412 = vpack.c.b16 %v1978, %v1972
    %v3413 = vpack.c.b16 %v1979, %v1973
    %v3414 = vpack.c.b16 %v1980, %v1974
    %v3415 = vpack.c.b16 %v1981, %v1975
    %v3416 = vpack.c.b16 %v1988, %v1982
    %v3417 = vpack.c.b16 %v1989, %v1983
    %v3418 = vpack.c.b16 %v1990, %v1984
    %v3419 = vpack.c.b16 %v1991, %v1985
    %v3420 = vpack.c.b16 %v1992, %v1986
    %v3421 = vpack.c.b16 %v1993, %v1987
    %v3422 = vpack.c.b16 %v2000, %v1994
    %v3423 = vpack.c.b16 %v2001, %v1995
    %v3424 = vpack.c.b16 %v2002, %v1996
    %v3425 = vpack.c.b16 %v2003, %v1997
    %v3426 = vpack.c.b16 %v2004, %v1998
    %v3427 = vpack.c.b16 %v2005, %v1999
    %v3428 = vpack.c.b16 %v2012, %v2006
    %v3429 = vpack.c.b16 %v2013, %v2007
    %v3430 = vpack.c.b16 %v2014, %v2008
    %v3431 = vpack.c.b16 %v2015, %v2009
    %v3432 = vpack.c.b16 %v2016, %v2010
    %v3433 = vpack.c.b16 %v2017, %v2011
    %v3434 = vpack.c.b16 %v2024, %v2018
    %v3435 = vpack.c.b16 %v2025, %v2019
    %v3436 = vpack.c.b16 %v2026, %v2020
    %v3437 = vpack.c.b16 %v2027, %v2021
    %v3438 = vpack.c.b16 %v2028, %v2022
    %v3439 = vpack.c.b16 %v2029, %v2023
    %v3440 = vpack.c.b16 %v2036, %v2030
    %v3441 = vpack.c.b16 %v2037, %v2031
    %v3442 = vpack.c.b16 %v2038, %v2032
    %v3443 = vpack.c.b16 %v2039, %v2033
    %v3444 = vpack.c.b16 %v2040, %v2034
    %v3445 = vpack.c.b16 %v2041, %v2035
    %v3446 = vpack.c.b16 %v2048, %v2042
    %v3447 = vpack.c.b16 %v2049, %v2043
    %v3448 = vpack.c.b16 %v2050, %v2044
    %v3449 = vpack.c.b16 %v2051, %v2045
    %v3450 = vpack.c.b16 %v2052, %v2046
    %v3451 = vpack.c.b16 %v2053, %v2047
    %v3452 = vpack.c.b16 %v2060, %v2054
    %v3453 = vpack.c.b16 %v2061, %v2055
    %v3454 = vpack.c.b16 %v2062, %v2056
    %v3455 = vpack.c.b16 %v2063, %v2057
    %v3456 = vpack.c.b16 %v2064, %v2058
    %v3457 = vpack.c.b16 %v2065, %v2059
    %v3458 = vpack.c.b16 %v2072, %v2066
    %v3459 = vpack.c.b16 %v2073, %v2067
    %v3460 = vpack.c.b16 %v2074, %v2068
    %v3461 = vpack.c.b16 %v2075, %v2069
    %v3462 = vpack.c.b16 %v2076, %v2070
    %v3463 = vpack.c.b16 %v2077, %v2071
    %v3464 = vpack.c.b16 %v2084, %v2078
    %v3465 = vpack.c.b16 %v2085, %v2079
    %v3466 = vpack.c.b16 %v2086, %v2080
    %v3467 = vpack.c.b16 %v2087, %v2081
    %v3468 = vpack.c.b16 %v2088, %v2082
    %v3469 = vpack.c.b16 %v2089, %v2083
    %v3470 = vpack.c.b16 %v2096, %v2090
    %v3471 = vpack.c.b16 %v2097, %v2091
    %v3472 = vpack.c.b16 %v2098, %v2092
    %v3473 = vpack.c.b16 %v2099, %v2093
    %v3474 = vpack.c.b16 %v2100, %v2094
    %v3475 = vpack.c.b16 %v2101, %v2095
    %v3476 = vpack.c.b16 %v2108, %v2102
    %v3477 = vpack.c.b16 %v2109, %v2103
    %v3478 = vpack.c.b16 %v2110, %v2104
    %v3479 = vpack.c.b16 %v2111, %v2105
    %v3480 = vpack.c.b16 %v2112, %v2106
    %v3481 = vpack.c.b16 %v2113, %v2107
    %v3482 = vpack.c.b16 %v2120, %v2114
    %v3483 = vpack.c.b16 %v2121, %v2115
    %v3484 = vpack.c.b16 %v2122, %v2116
    %v3485 = vpack.c.b16 %v2123, %v2117
    %v3486 = vpack.c.b16 %v2124, %v2118
    %v3487 = vpack.c.b16 %v2125, %v2119
    %v3488 = vpack.c.b16 %v2132, %v2126
    %v3489 = vpack.c.b16 %v2133, %v2127
    %v3490 = vpack.c.b16 %v2134, %v2128
    %v3491 = vpack.c.b16 %v2135, %v2129
    %v3492 = vpack.c.b16 %v2136, %v2130
    %v3493 = vpack.c.b16 %v2137, %v2131
    %v3494 = vpack.c.b16 %v2144, %v2138
    %v3495 = vpack.c.b16 %v2145, %v2139
    %v3496 = vpack.c.b16 %v2146, %v2140
    %v3497 = vpack.c.b16 %v2147, %v2141
    %v3498 = vpack.c.b16 %v2148, %v2142
    %v3499 = vpack.c.b16 %v2149, %v2143
    %v3500 = vpack.c.b16 %v2156, %v2150
    %v3501 = vpack.c.b16 %v2157, %v2151
    %v3502 = vpack.c.b16 %v2158, %v2152
    %v3503 = vpack.c.b16 %v2159, %v2153
    %v3504 = vpack.c.b16 %v2160, %v2154
    %v3505 = vpack.c.b16 %v2161, %v2155
    %v3506 = vpack.c.b16 %v2168, %v2162
    %v3507 = vpack.c.b16 %v2169, %v2163
    %v3508 = vpack.c.b16 %v2170, %v2164
    %v3509 = vpack.c.b16 %v2171, %v2165
    %v3510 = vpack.c.b16 %v2172, %v2166
    %v3511 = vpack.c.b16 %v2173, %v2167
    %v3512 = vpack.c.b16 %v2180, %v2174
    %v3513 = vpack.c.b16 %v2181, %v2175
    %v3514 = vpack.c.b16 %v2182, %v2176
    %v3515 = vpack.c.b16 %v2183, %v2177
    %v3516 = vpack.c.b16 %v2184, %v2178
    %v3517 = vpack.c.b16 %v2185, %v2179
    %v3518 = vpack.c.b16 %v2192, %v2186
    %v3519 = vpack.c.b16 %v2193, %v2187
    %v3520 = vpack.c.b16 %v2194, %v2188
    %v3521 = vpack.c.b16 %v2195, %v2189
    %v3522 = vpack.c.b16 %v2196, %v2190
    %v3523 = vpack.c.b16 %v2197, %v2191
    %v3524 = vpack.c.b16 %v2204, %v2198
    %v3525 = vpack.c.b16 %v2205, %v2199
    %v3526 = vpack.c.b16 %v2206, %v2200
    %v3527 = vpack.c.b16 %v2207, %v2201
    %v3528 = vpack.c.b16 %v2208, %v2202
    %v3529 = vpack.c.b16 %v2209, %v2203
    %v3530 = vpack.c.b16 %v2216, %v2210
    %v3531 = vpack.c.b16 %v2217, %v2211
    %v3532 = vpack.c.b16 %v2218, %v2212
    %v3533 = vpack.c.b16 %v2219, %v2213
    %v3534 = vpack.c.b16 %v2220, %v2214
    %v3535 = vpack.c.b16 %v2221, %v2215
    %v3536 = vpack.c.b16 %v2228, %v2222
    %v3537 = vpack.c.b16 %v2229, %v2223
    %v3538 = vpack.c.b16 %v2230, %v2224
    %v3539 = vpack.c.b16 %v2231, %v2225
    %v3540 = vpack.c.b16 %v2232, %v2226
    %v3541 = vpack.c.b16 %v2233, %v2227
    %v3542 = vpack.c.b16 %v2240, %v2234
    %v3543 = vpack.c.b16 %v2241, %v2235
    %v3544 = vpack.c.b16 %v2242, %v2236
    %v3545 = vpack.c.b16 %v2243, %v2237
    %v3546 = vpack.c.b16 %v2244, %v2238
    %v3547 = vpack.c.b16 %v2245, %v2239
    %v3548 = vpack.c.b16 %v2252, %v2246
    %v3549 = vpack.c.b16 %v2253, %v2247
    %v3550 = vpack.c.b16 %v2254, %v2248
    %v3551 = vpack.c.b16 %v2255, %v2249
    %v3552 = vpack.c.b16 %v2256, %v2250
    %v3553 = vpack.c.b16 %v2257, %v2251
    %v3554 = vpack.c.b16 %v2264, %v2258
    %v3555 = vpack.c.b16 %v2265, %v2259
    %v3556 = vpack.c.b16 %v2266, %v2260
    %v3557 = vpack.c.b16 %v2267, %v2261
    %v3558 = vpack.c.b16 %v2268, %v2262
    %v3559 = vpack.c.b16 %v2269, %v2263
    %v3560 = vpack.c.b16 %v2276, %v2270
    %v3561 = vpack.c.b16 %v2277, %v2271
    %v3562 = vpack.c.b16 %v2278, %v2272
    %v3563 = vpack.c.b16 %v2279, %v2273
    %v3564 = vpack.c.b16 %v2280, %v2274
    %v3565 = vpack.c.b16 %v2281, %v2275
    %v3566 = vpack.c.b16 %v2288, %v2282
    %v3567 = vpack.c.b16 %v2289, %v2283
    %v3568 = vpack.c.b16 %v2290, %v2284
    %v3569 = vpack.c.b16 %v2291, %v2285
    %v3570 = vpack.c.b16 %v2292, %v2286
    %v3571 = vpack.c.b16 %v2293, %v2287
    %v3572 = vpack.c.b16 %v2300, %v2294
    %v3573 = vpack.c.b16 %v2301, %v2295
    %v3574 = vpack.c.b16 %v2302, %v2296
    %v3575 = vpack.c.b16 %v2303, %v2297
    %v3576 = vpack.c.b16 %v2304, %v2298
    %v3577 = vpack.c.b16 %v2305, %v2299
    %v3578 = vpack.c.b16 %v2312, %v2306
    %v3579 = vpack.c.b16 %v2313, %v2307
    %v3580 = vpack.c.b16 %v2314, %v2308
    %v3581 = vpack.c.b16 %v2315, %v2309
    %v3582 = vpack.c.b16 %v2316, %v2310
    %v3583 = vpack.c.b16 %v2317, %v2311
    %v3584 = vpack.c.b16 %v2324, %v2318
    %v3585 = vpack.c.b16 %v2325, %v2319
    %v3586 = vpack.c.b16 %v2326, %v2320
    %v3587 = vpack.c.b16 %v2327, %v2321
    %v3588 = vpack.c.b16 %v2328, %v2322
    %v3589 = vpack.c.b16 %v2329, %v2323
    %v3590 = vpack.c.b16 %v2336, %v2330
    %v3591 = vpack.c.b16 %v2337, %v2331
    %v3592 = vpack.c.b16 %v2338, %v2332
    %v3593 = vpack.c.b16 %v2339, %v2333
    %v3594 = vpack.c.b16 %v2340, %v2334
    %v3595 = vpack.c.b16 %v2341, %v2335
    %v3596 = vpack.c.b16 %v2348, %v2342
    %v3597 = vpack.c.b16 %v2349, %v2343
    %v3598 = vpack.c.b16 %v2350, %v2344
    %v3599 = vpack.c.b16 %v2351, %v2345
    %v3600 = vpack.c.b16 %v2352, %v2346
    %v3601 = vpack.c.b16 %v2353, %v2347
    %v3602 = vpack.c.b16 %v2360, %v2354
    %v3603 = vpack.c.b16 %v2361, %v2355
    %v3604 = vpack.c.b16 %v2362, %v2356
    %v3605 = vpack.c.b16 %v2363, %v2357
    %v3606 = vpack.c.b16 %v2364, %v2358
    %v3607 = vpack.c.b16 %v2365, %v2359
    %v3608 = vpack.c.b16 %v2372, %v2366
    %v3609 = vpack.c.b16 %v2373, %v2367
    %v3610 = vpack.c.b16 %v2374, %v2368
    %v3611 = vpack.c.b16 %v2375, %v2369
    %v3612 = vpack.c.b16 %v2376, %v2370
    %v3613 = vpack.c.b16 %v2377, %v2371
    %v3614 = vpack.c.b16 %v2384, %v2378
    %v3615 = vpack.c.b16 %v2385, %v2379
    %v3616 = vpack.c.b16 %v2386, %v2380
    %v3617 = vpack.c.b16 %v2387, %v2381
    %v3618 = vpack.c.b16 %v2388, %v2382
    %v3619 = vpack.c.b16 %v2389, %v2383
    %v3620 = vpack.c.b16 %v2396, %v2390
    %v3621 = vpack.c.b16 %v2397, %v2391
    %v3622 = vpack.c.b16 %v2398, %v2392
    %v3623 = vpack.c.b16 %v2399, %v2393
    %v3624 = vpack.c.b16 %v2400, %v2394
    %v3625 = vpack.c.b16 %v2401, %v2395
    %v3626 = vpack.c.b16 %v2408, %v2402
    %v3627 = vpack.c.b16 %v2409, %v2403
    %v3628 = vpack.c.b16 %v2410, %v2404
    %v3629 = vpack.c.b16 %v2411, %v2405
    %v3630 = vpack.c.b16 %v2412, %v2406
    %v3631 = vpack.c.b16 %v2413, %v2407
    %v3632 = vpack.c.b16 %v2420, %v2414
    %v3633 = vpack.c.b16 %v2421, %v2415
    %v3634 = vpack.c.b16 %v2422, %v2416
    %v3635 = vpack.c.b16 %v2423, %v2417
    %v3636 = vpack.c.b16 %v2424, %v2418
    %v3637 = vpack.c.b16 %v2425, %v2419
    %v3638 = vpack.c.b16 %v2432, %v2426
    %v3639 = vpack.c.b16 %v2433, %v2427
    %v3640 = vpack.c.b16 %v2434, %v2428
    %v3641 = vpack.c.b16 %v2435, %v2429
    %v3642 = vpack.c.b16 %v2436, %v2430
    %v3643 = vpack.c.b16 %v2437, %v2431
    %v3644 = vpack.c.b16 %v2444, %v2438
    %v3645 = vpack.c.b16 %v2445, %v2439
    %v3646 = vpack.c.b16 %v2446, %v2440
    %v3647 = vpack.c.b16 %v2447, %v2441
    %v3648 = vpack.c.b16 %v2448, %v2442
    %v3649 = vpack.c.b16 %v2449, %v2443
    %v3650 = vpack.c.b16 %v2456, %v2450
    %v3651 = vpack.c.b16 %v2457, %v2451
    %v3652 = vpack.c.b16 %v2458, %v2452
    %v3653 = vpack.c.b16 %v2459, %v2453
    %v3654 = vpack.c.b16 %v2460, %v2454
    %v3655 = vpack.c.b16 %v2461, %v2455
    %v3656 = vpack.c.b16 %v2468, %v2462
    %v3657 = vpack.c.b16 %v2469, %v2463
    %v3658 = vpack.c.b16 %v2470, %v2464
    %v3659 = vpack.c.b16 %v2471, %v2465
    %v3660 = vpack.c.b16 %v2472, %v2466
    %v3661 = vpack.c.b16 %v2473, %v2467
    %v3662 = vpack.c.b16 %v2480, %v2474
    %v3663 = vpack.c.b16 %v2481, %v2475
    %v3664 = vpack.c.b16 %v2482, %v2476
    %v3665 = vpack.c.b16 %v2483, %v2477
    %v3666 = vpack.c.b16 %v2484, %v2478
    %v3667 = vpack.c.b16 %v2485, %v2479
    %v3668 = vpack.c.b16 %v2492, %v2486
    %v3669 = vpack.c.b16 %v2493, %v2487
    %v3670 = vpack.c.b16 %v2494, %v2488
    %v3671 = vpack.c.b16 %v2495, %v2489
    %v3672 = vpack.c.b16 %v2496, %v2490
    %v3673 = vpack.c.b16 %v2497, %v2491
    %v3674 = vpack.c.b16 %v2504, %v2498
    %v3675 = vpack.c.b16 %v2505, %v2499
    %v3676 = vpack.c.b16 %v2506, %v2500
    %v3677 = vpack.c.b16 %v2507, %v2501
    %v3678 = vpack.c.b16 %v2508, %v2502
    %v3679 = vpack.c.b16 %v2509, %v2503
    %v3680 = vpack.c.b16 %v2516, %v2510
    %v3681 = vpack.c.b16 %v2517, %v2511
    %v3682 = vpack.c.b16 %v2518, %v2512
    %v3683 = vpack.c.b16 %v2519, %v2513
    %v3684 = vpack.c.b16 %v2520, %v2514
    %v3685 = vpack.c.b16 %v2521, %v2515
    %v3686 = vpack.c.b16 %v2528, %v2522
    %v3687 = vpack.c.b16 %v2529, %v2523
    %v3688 = vpack.c.b16 %v2530, %v2524
    %v3689 = vpack.c.b16 %v2531, %v2525
    %v3690 = vpack.c.b16 %v2532, %v2526
    %v3691 = vpack.c.b16 %v2533, %v2527
    %v3692 = vpack.c.b16 %v2540, %v2534
    %v3693 = vpack.c.b16 %v2541, %v2535
    %v3694 = vpack.c.b16 %v2542, %v2536
    %v3695 = vpack.c.b16 %v2543, %v2537
    %v3696 = vpack.c.b16 %v2544, %v2538
    %v3697 = vpack.c.b16 %v2545, %v2539
    %v3698 = vpack.c.b16 %v2552, %v2546
    %v3699 = vpack.c.b16 %v2553, %v2547
    %v3700 = vpack.c.b16 %v2554, %v2548
    %v3701 = vpack.c.b16 %v2555, %v2549
    %v3702 = vpack.c.b16 %v2556, %v2550
    %v3703 = vpack.c.b16 %v2557, %v2551
    %v3704 = vpack.c.b16 %v2564, %v2558
    %v3705 = vpack.c.b16 %v2565, %v2559
    %v3706 = vpack.c.b16 %v2566, %v2560
    %v3707 = vpack.c.b16 %v2567, %v2561
    %v3708 = vpack.c.b16 %v2568, %v2562
    %v3709 = vpack.c.b16 %v2569, %v2563
    %v3710 = vpack.c.b16 %v2576, %v2570
    %v3711 = vpack.c.b16 %v2577, %v2571
    %v3712 = vpack.c.b16 %v2578, %v2572
    %v3713 = vpack.c.b16 %v2579, %v2573
    %v3714 = vpack.c.b16 %v2580, %v2574
    %v3715 = vpack.c.b16 %v2581, %v2575
    %v3716 = vpack.c.b16 %v2588, %v2582
    %v3717 = vpack.c.b16 %v2589, %v2583
    %v3718 = vpack.c.b16 %v2590, %v2584
    %v3719 = vpack.c.b16 %v2591, %v2585
    %v3720 = vpack.c.b16 %v2592, %v2586
    %v3721 = vpack.c.b16 %v2593, %v2587
    %v3722 = vpack.c.b16 %v2600, %v2594
    %v3723 = vpack.c.b16 %v2601, %v2595
    %v3724 = vpack.c.b16 %v2602, %v2596
    %v3725 = vpack.c.b16 %v2603, %v2597
    %v3726 = vpack.c.b16 %v2604, %v2598
    %v3727 = vpack.c.b16 %v2605, %v2599
    %v3728 = vpack.c.b16 %v2612, %v2606
    %v3729 = vpack.c.b16 %v2613, %v2607
    %v3730 = vpack.c.b16 %v2614, %v2608
    %v3731 = vpack.c.b16 %v2615, %v2609
    %v3732 = vpack.c.b16 %v2616, %v2610
    %v3733 = vpack.c.b16 %v2617, %v2611
    %v3734 = vpack.c.b16 %v2624, %v2618
    %v3735 = vpack.c.b16 %v2625, %v2619
    %v3736 = vpack.c.b16 %v2626, %v2620
    %v3737 = vpack.c.b16 %v2627, %v2621
    %v3738 = vpack.c.b16 %v2628, %v2622
    %v3739 = vpack.c.b16 %v2629, %v2623
    %v3740 = vpack.c.b16 %v2636, %v2630
    %v3741 = vpack.c.b16 %v2637, %v2631
    %v3742 = vpack.c.b16 %v2638, %v2632
    %v3743 = vpack.c.b16 %v2639, %v2633
    %v3744 = vpack.c.b16 %v2640, %v2634
    %v3745 = vpack.c.b16 %v2641, %v2635
    %v3746 = vpack.c.b16 %v2648, %v2642
    %v3747 = vpack.c.b16 %v2649, %v2643
    %v3748 = vpack.c.b16 %v2650, %v2644
    %v3749 = vpack.c.b16 %v2651, %v2645
    %v3750 = vpack.c.b16 %v2652, %v2646
    %v3751 = vpack.c.b16 %v2653, %v2647
    %v3752 = vpack.c.b16 %v2660, %v2654
    %v3753 = vpack.c.b16 %v2661, %v2655
    %v3754 = vpack.c.b16 %v2662, %v2656
    %v3755 = vpack.c.b16 %v2663, %v2657
    %v3756 = vpack.c.b16 %v2664, %v2658
    %v3757 = vpack.c.b16 %v2665, %v2659
    %v3758 = vpack.c.b16 %v2672, %v2666
    %v3759 = vpack.c.b16 %v2673, %v2667
    %v3760 = vpack.c.b16 %v2674, %v2668
    %v3761 = vpack.c.b16 %v2675, %v2669
    %v3762 = vpack.c.b16 %v2676, %v2670
    %v3763 = vpack.c.b16 %v2677, %v2671
    %v3764 = vpack.c.b16 %v2684, %v2678
    %v3765 = vpack.c.b16 %v2685, %v2679
    %v3766 = vpack.c.b16 %v2686, %v2680
    %v3767 = vpack.c.b16 %v2687, %v2681
    %v3768 = vpack.c.b16 %v2688, %v2682
    %v3769 = vpack.c.b16 %v2689, %v2683
    %v3770 = vpack.c.b16 %v2696, %v2690
    %v3771 = vpack.c.b16 %v2697, %v2691
    %v3772 = vpack.c.b16 %v2698, %v2692
    %v3773 = vpack.c.b16 %v2699, %v2693
    %v3774 = vpack.c.b16 %v2700, %v2694
    %v3775 = vpack.c.b16 %v2701, %v2695
    %v3776 = vpack.c.b16 %v2708, %v2702
    %v3777 = vpack.c.b16 %v2709, %v2703
    %v3778 = vpack.c.b16 %v2710, %v2704
    %v3779 = vpack.c.b16 %v2711, %v2705
    %v3780 = vpack.c.b16 %v2712, %v2706
    %v3781 = vpack.c.b16 %v2713, %v2707
    %v3782 = vpack.c.b16 %v2720, %v2714
    %v3783 = vpack.c.b16 %v2721, %v2715
    %v3784 = vpack.c.b16 %v2722, %v2716
    %v3785 = vpack.c.b16 %v2723, %v2717
    %v3786 = vpack.c.b16 %v2724, %v2718
    %v3787 = vpack.c.b16 %v2725, %v2719
    %v3788 = vpack.c.b16 %v2732, %v2726
    %v3789 = vpack.c.b16 %v2733, %v2727
    %v3790 = vpack.c.b16 %v2734, %v2728
    %v3791 = vpack.c.b16 %v2735, %v2729
    %v3792 = vpack.c.b16 %v2736, %v2730
    %v3793 = vpack.c.b16 %v2737, %v2731
    %v3794 = vpack.c.b16 %v2744, %v2738
    %v3795 = vpack.c.b16 %v2745, %v2739
    %v3796 = vpack.c.b16 %v2746, %v2740
    %v3797 = vpack.c.b16 %v2747, %v2741
    %v3798 = vpack.c.b16 %v2748, %v2742
    %v3799 = vpack.c.b16 %v2749, %v2743
    %v3800 = vpack.c.b16 %v2756, %v2750
    %v3801 = vpack.c.b16 %v2757, %v2751
    %v3802 = vpack.c.b16 %v2758, %v2752
    %v3803 = vpack.c.b16 %v2759, %v2753
    %v3804 = vpack.c.b16 %v2760, %v2754
    %v3805 = vpack.c.b16 %v2761, %v2755
    %v3806 = vpack.c.b16 %v2768, %v2762
    %v3807 = vpack.c.b16 %v2769, %v2763
    %v3808 = vpack.c.b16 %v2770, %v2764
    %v3809 = vpack.c.b16 %v2771, %v2765
    %v3810 = vpack.c.b16 %v2772, %v2766
    %v3811 = vpack.c.b16 %v2773, %v2767
    %v3812 = vpack.c.b16 %v2780, %v2774
    %v3813 = vpack.c.b16 %v2781, %v2775
    %v3814 = vpack.c.b16 %v2782, %v2776
    %v3815 = vpack.c.b16 %v2783, %v2777
    %v3816 = vpack.c.b16 %v2784, %v2778
    %v3817 = vpack.c.b16 %v2785, %v2779
    %v3818 = vpack.c.b16 %v2792, %v2786
    %v3819 = vpack.c.b16 %v2793, %v2787
    %v3820 = vpack.c.b16 %v2794, %v2788
    %v3821 = vpack.c.b16 %v2795, %v2789
    %v3822 = vpack.c.b16 %v2796, %v2790
    %v3823 = vpack.c.b16 %v2797, %v2791
    %v3824 = vpack.c.b16 %v2804, %v2798
    %v3825 = vpack.c.b16 %v2805, %v2799
    %v3826 = vpack.c.b16 %v2806, %v2800
    %v3827 = vpack.c.b16 %v2807, %v2801
    %v3828 = vpack.c.b16 %v2808, %v2802
    %v3829 = vpack.c.b16 %v2809, %v2803
    %v3830 = vpack.c.b16 %v2816, %v2810
    %v3831 = vpack.c.b16 %v2817, %v2811
    %v3832 = vpack.c.b16 %v2818, %v2812
    %v3833 = vpack.c.b16 %v2819, %v2813
    %v3834 = vpack.c.b16 %v2820, %v2814
    %v3835 = vpack.c.b16 %v2821, %v2815
    %v3836 = vpack.c.b16 %v2828, %v2822
    %v3837 = vpack.c.b16 %v2829, %v2823
    %v3838 = vpack.c.b16 %v2830, %v2824
    %v3839 = vpack.c.b16 %v2831, %v2825
    %v3840 = vpack.c.b16 %v2832, %v2826
    %v3841 = vpack.c.b16 %v2833, %v2827
    %v3842 = vpack.c.b16 %v2840, %v2834
    %v3843 = vpack.c.b16 %v2841, %v2835
    %v3844 = vpack.c.b16 %v2842, %v2836
    %v3845 = vpack.c.b16 %v2843, %v2837
    %v3846 = vpack.c.b16 %v2844, %v2838
    %v3847 = vpack.c.b16 %v2845, %v2839
    %v3848 = vpack.c.b16 %v2852, %v2846
    %v3849 = vpack.c.b16 %v2853, %v2847
    %v3850 = vpack.c.b16 %v2854, %v2848
    %v3851 = vpack.c.b16 %v2855, %v2849
    %v3852 = vpack.c.b16 %v2856, %v2850
    %v3853 = vpack.c.b16 %v2857, %v2851
    %v3854 = vpack.c.b16 %v2864, %v2858
    %v3855 = vpack.c.b16 %v2865, %v2859
    %v3856 = vpack.c.b16 %v2866, %v2860
    %v3857 = vpack.c.b16 %v2867, %v2861
    %v3858 = vpack.c.b16 %v2868, %v2862
    %v3859 = vpack.c.b16 %v2869, %v2863
    %v3860 = vpack.c.b16 %v2876, %v2870
    %v3861 = vpack.c.b16 %v2877, %v2871
    %v3862 = vpack.c.b16 %v2878, %v2872
    %v3863 = vpack.c.b16 %v2879, %v2873
    %v3864 = vpack.c.b16 %v2880, %v2874
    %v3865 = vpack.c.b16 %v2881, %v2875
    %v3866 = vpack.c.b16 %v2888, %v2882
    %v3867 = vpack.c.b16 %v2889, %v2883
    %v3868 = vpack.c.b16 %v2890, %v2884
    %v3869 = vpack.c.b16 %v2891, %v2885
    %v3870 = vpack.c.b16 %v2892, %v2886
    %v3871 = vpack.c.b16 %v2893, %v2887
    %v3872 = vpack.c.b16 %v2900, %v2894
    %v3873 = vpack.c.b16 %v2901, %v2895
    %v3874 = vpack.c.b16 %v2902, %v2896
    %v3875 = vpack.c.b16 %v2903, %v2897
    %v3876 = vpack.c.b16 %v2904, %v2898
    %v3877 = vpack.c.b16 %v2905, %v2899
    %v3878 = vpack.c.b16 %v2912, %v2906
    %v3879 = vpack.c.b16 %v2913, %v2907
    %v3880 = vpack.c.b16 %v2914, %v2908
    %v3881 = vpack.c.b16 %v2915, %v2909
    %v3882 = vpack.c.b16 %v2916, %v2910
    %v3883 = vpack.c.b16 %v2917, %v2911
    %v3884 = vpack.c.b16 %v2924, %v2918
    %v3885 = vpack.c.b16 %v2925, %v2919
    %v3886 = vpack.c.b16 %v2926, %v2920
    %v3887 = vpack.c.b16 %v2927, %v2921
    %v3888 = vpack.c.b16 %v2928, %v2922
    %v3889 = vpack.c.b16 %v2929, %v2923
    %v3890 = vpack.c.b16 %v2936, %v2930
    %v3891 = vpack.c.b16 %v2937, %v2931
    %v3892 = vpack.c.b16 %v2938, %v2932
    %v3893 = vpack.c.b16 %v2939, %v2933
    %v3894 = vpack.c.b16 %v2940, %v2934
    %v3895 = vpack.c.b16 %v2941, %v2935
    %v3896 = vpack.c.b16 %v2948, %v2942
    %v3897 = vpack.c.b16 %v2949, %v2943
    %v3898 = vpack.c.b16 %v2950, %v2944
    %v3899 = vpack.c.b16 %v2951, %v2945
    %v3900 = vpack.c.b16 %v2952, %v2946
    %v3901 = vpack.c.b16 %v2953, %v2947
    %v3902 = vpack.c.b16 %v2960, %v2954
    %v3903 = vpack.c.b16 %v2961, %v2955
    %v3904 = vpack.c.b16 %v2962, %v2956
    %v3905 = vpack.c.b16 %v2963, %v2957
    %v3906 = vpack.c.b16 %v2964, %v2958
    %v3907 = vpack.c.b16 %v2965, %v2959
    %v3908 = vpack.c.b16 %v2972, %v2966
    %v3909 = vpack.c.b16 %v2973, %v2967
    %v3910 = vpack.c.b16 %v2974, %v2968
    %v3911 = vpack.c.b16 %v2975, %v2969
    %v3912 = vpack.c.b16 %v2976, %v2970
    %v3913 = vpack.c.b16 %v2977, %v2971
    %v3914 = vpack.c.b16 %v2984, %v2978
    %v3915 = vpack.c.b16 %v2985, %v2979
    %v3916 = vpack.c.b16 %v2986, %v2980
    %v3917 = vpack.c.b16 %v2987, %v2981
    %v3918 = vpack.c.b16 %v2988, %v2982
    %v3919 = vpack.c.b16 %v2989, %v2983
    %v3920 = vpack.c.b16 %v2996, %v2990
    %v3921 = vpack.c.b16 %v2997, %v2991
    %v3922 = vpack.c.b16 %v2998, %v2992
    %v3923 = vpack.c.b16 %v2999, %v2993
    %v3924 = vpack.c.b16 %v3000, %v2994
    %v3925 = vpack.c.b16 %v3001, %v2995
    %v3926 = vpack.c.b16 %v3008, %v3002
    %v3927 = vpack.c.b16 %v3009, %v3003
    %v3928 = vpack.c.b16 %v3010, %v3004
    %v3929 = vpack.c.b16 %v3011, %v3005
    %v3930 = vpack.c.b16 %v3012, %v3006
    %v3931 = vpack.c.b16 %v3013, %v3007
    %v3932 = vpack.c.b16 %v3020, %v3014
    %v3933 = vpack.c.b16 %v3021, %v3015
    %v3934 = vpack.c.b16 %v3022, %v3016
    %v3935 = vpack.c.b16 %v3023, %v3017
    %v3936 = vpack.c.b16 %v3024, %v3018
    %v3937 = vpack.c.b16 %v3025, %v3019
    %v3938 = vpack.c.b16 %v3032, %v3026
    %v3939 = vpack.c.b16 %v3033, %v3027
    %v3940 = vpack.c.b16 %v3034, %v3028
    %v3941 = vpack.c.b16 %v3035, %v3029
    %v3942 = vpack.c.b16 %v3036, %v3030
    %v3943 = vpack.c.b16 %v3037, %v3031
    %v3944 = vpack.c.b16 %v3044, %v3038
    %v3945 = vpack.c.b16 %v3045, %v3039
    %v3946 = vpack.c.b16 %v3046, %v3040
    %v3947 = vpack.c.b16 %v3047, %v3041
    %v3948 = vpack.c.b16 %v3048, %v3042
    %v3949 = vpack.c.b16 %v3049, %v3043
    %v3950 = vpack.c.b16 %v3056, %v3050
    %v3951 = vpack.c.b16 %v3057, %v3051
    %v3952 = vpack.c.b16 %v3058, %v3052
    %v3953 = vpack.c.b16 %v3059, %v3053
    %v3954 = vpack.c.b16 %v3060, %v3054
    %v3955 = vpack.c.b16 %v3061, %v3055
    %v3956 = vpack.c.b16 %v3068, %v3062
    %v3957 = vpack.c.b16 %v3069, %v3063
    %v3958 = vpack.c.b16 %v3070, %v3064
    %v3959 = vpack.c.b16 %v3071, %v3065
    %v3960 = vpack.c.b16 %v3072, %v3066
    %v3961 = vpack.c.b16 %v3073, %v3067
    %v3962 = vpack.c.b16 %v3080, %v3074
    %v3963 = vpack.c.b16 %v3081, %v3075
    %v3964 = vpack.c.b16 %v3082, %v3076
    %v3965 = vpack.c.b16 %v3083, %v3077
    %v3966 = vpack.c.b16 %v3084, %v3078
    %v3967 = vpack.c.b16 %v3085, %v3079
    %v3968 = vpack.c.b16 %v3092, %v3086
    %v3969 = vpack.c.b16 %v3093, %v3087
    %v3970 = vpack.c.b16 %v3094, %v3088
    %v3971 = vpack.c.b16 %v3095, %v3089
    %v3972 = vpack.c.b16 %v3096, %v3090
    %v3973 = vpack.c.b16 %v3097, %v3091
    %v3974 = vpack.c.b16 %v3104, %v3098
    %v3975 = vpack.c.b16 %v3105, %v3099
    %v3976 = vpack.c.b16 %v3106, %v3100
    %v3977 = vpack.c.b16 %v3107, %v3101
    %v3978 = vpack.c.b16 %v3108, %v3102
    %v3979 = vpack.c.b16 %v3109, %v3103
    %v3980 = vpack.c.b16 %v3116, %v3110
    %v3981 = vpack.c.b16 %v3117, %v3111
    %v3982 = vpack.c.b16 %v3118, %v3112
    %v3983 = vpack.c.b16 %v3119, %v3113
    %v3984 = vpack.c.b16 %v3120, %v3114
    %v3985 = vpack.c.b16 %v3121, %v3115
    %v3986 = vpack.c.b16 %v3128, %v3122
    %v3987 = vpack.c.b16 %v3129, %v3123
    %v3988 = vpack.c.b16 %v3130, %v3124
    %v3989 = vpack.c.b16 %v3131, %v3125
    %v3990 = vpack.c.b16 %v3132, %v3126
    %v3991 = vpack.c.b16 %v3133, %v3127
    %v3992 = vpack.c.b16 %v3140, %v3134
    %v3993 = vpack.c.b16 %v3141, %v3135
    %v3994 = vpack.c.b16 %v3142, %v3136
    %v3995 = vpack.c.b16 %v3143, %v3137
    %v3996 = vpack.c.b16 %v3144, %v3138
    %v3997 = vpack.c.b16 %v3145, %v3139
    %v3998 = vpack.c.b16 %v3152, %v3146
    %v3999 = vpack.c.b16 %v3153, %v3147
    %v4000 = vpack.c.b16 %v3154, %v3148
    %v4001 = vpack.c.b16 %v3155, %v3149
    %v4002 = vpack.c.b16 %v3156, %v3150
    %v4003 = vpack.c.b16 %v3157, %v3151
    %v4004 = vpack.c.b16 %v3164, %v3158
    %v4005 = vpack.c.b16 %v3165, %v3159
    %v4006 = vpack.c.b16 %v3166, %v3160
    %v4007 = vpack.c.b16 %v3167, %v3161
    %v4008 = vpack.c.b16 %v3168, %v3162
    %v4009 = vpack.c.b16 %v3169, %v3163
    %v4010 = vpack.c.b16 %v3176, %v3170
    %v4011 = vpack.c.b16 %v3177, %v3171
    %v4012 = vpack.c.b16 %v3178, %v3172
    %v4013 = vpack.c.b16 %v3179, %v3173
    %v4014 = vpack.c.b16 %v3180, %v3174
    %v4015 = vpack.c.b16 %v3181, %v3175
    %v4016 = vpack.c.b16 %v3188, %v3182
    %v4017 = vpack.c.b16 %v3189, %v3183
    %v4018 = vpack.c.b16 %v3190, %v3184
    %v4019 = vpack.c.b16 %v3191, %v3185
    %v4020 = vpack.c.b16 %v3192, %v3186
    %v4021 = vpack.c.b16 %v3193, %v3187
    %v4022 = vpack.c.b16 %v3200, %v3194
    %v4023 = vpack.c.b16 %v3201, %v3195
    %v4024 = vpack.c.b16 %v3202, %v3196
    %v4025 = vpack.c.b16 %v3203, %v3197
    %v4026 = vpack.c.b16 %v3204, %v3198
    %v4027 = vpack.c.b16 %v3205, %v3199
    %v4028 = vpack.c.b16 %v3212, %v3206
    %v4029 = vpack.c.b16 %v3213, %v3207
    %v4030 = vpack.c.b16 %v3214, %v3208
    %v4031 = vpack.c.b16 %v3215, %v3209
    %v4032 = vpack.c.b16 %v3216, %v3210
    %v4033 = vpack.c.b16 %v3217, %v3211
    %v4034 = vpack.c.b16 %v3224, %v3218
    %v4035 = vpack.c.b16 %v3225, %v3219
    %v4036 = vpack.c.b16 %v3226, %v3220
    %v4037 = vpack.c.b16 %v3227, %v3221
    %v4038 = vpack.c.b16 %v3228, %v3222
    %v4039 = vpack.c.b16 %v3229, %v3223
    %v4040 = vpack.c.b16 %v3236, %v3230
    %v4041 = vpack.c.b16 %v3237, %v3231
    %v4042 = vpack.c.b16 %v3238, %v3232
    %v4043 = vpack.c.b16 %v3239, %v3233
    %v4044 = vpack.c.b16 %v3240, %v3234
    %v4045 = vpack.c.b16 %v3241, %v3235
    %v4046 = vpack.c.b16 %v3248, %v3242
    %v4047 = vpack.c.b16 %v3249, %v3243
    %v4048 = vpack.c.b16 %v3250, %v3244
    %v4049 = vpack.c.b16 %v3251, %v3245
    %v4050 = vpack.c.b16 %v3252, %v3246
    %v4051 = vpack.c.b16 %v3253, %v3247
    %v4052 = vpack.c.b16 %v3260, %v3254
    %v4053 = vpack.c.b16 %v3261, %v3255
    %v4054 = vpack.c.b16 %v3262, %v3256
    %v4055 = vpack.c.b16 %v3263, %v3257
    %v4056 = vpack.c.b16 %v3264, %v3258
    %v4057 = vpack.c.b16 %v3265, %v3259
    %v4058 = vpack.c.b16 %v3272, %v3266
    %v4059 = vpack.c.b16 %v3273, %v3267
    %v4060 = vpack.c.b16 %v3274, %v3268
    %v4061 = vpack.c.b16 %v3275, %v3269
    %v4062 = vpack.c.b16 %v3276, %v3270
    %v4063 = vpack.c.b16 %v3277, %v3271
    %v4064 = vpack.c.b16 %v3284, %v3278
    %v4065 = vpack.c.b16 %v3285, %v3279
    %v4066 = vpack.c.b16 %v3286, %v3280
    %v4067 = vpack.c.b16 %v3287, %v3281
    %v4068 = vpack.c.b16 %v3288, %v3282
    %v4069 = vpack.c.b16 %v3289, %v3283
    %v4070 = vpack.c.b16 %v3296, %v3290
    %v4071 = vpack.c.b16 %v3297, %v3291
    %v4072 = vpack.c.b16 %v3298, %v3292
    %v4073 = vpack.c.b16 %v3299, %v3293
    %v4074 = vpack.c.b16 %v3300, %v3294
    %v4075 = vpack.c.b16 %v3301, %v3295
    %v4076 = vpack.c.b16 %v3308, %v3302
    %v4077 = vpack.c.b16 %v3309, %v3303
    %v4078 = vpack.c.b16 %v3310, %v3304
    %v4079 = vpack.c.b16 %v3311, %v3305
    %v4080 = vpack.c.b16 %v3312, %v3306
    %v4081 = vpack.c.b16 %v3313, %v3307
    %4850 = vmatprep.subr.bf16.mxu0 %v3357
    %4851 = vmatpush1.bf16.msra.mxu0 %v3356
    %4852 = vmatprep.subr.bf16.mxu0 %v3351
    %4853 = vmatpush1.bf16.msra.mxu0 %v3350
    %4854 = vmatprep.subr.bf16.mxu0 %v3345
    %4855 = vmatpush1.bf16.msra.mxu0 %v3344
    %4856 = vmatprep.subr.bf16.mxu0 %v3339
    %4857 = vmatpush1.bf16.msra.mxu0 %v3338
    %4858 = vmatprep.subr.bf16.mxu0 %v3333
    %4859 = vmatpush1.bf16.msra.mxu0 %v3332
    %4860 = vmatprep.subr.bf16.mxu0 %v3327
    %4861 = vmatpush1.bf16.msra.mxu0 %v3326
    %4862 = vmatprep.subr.bf16.mxu0 %v3321
    %4863 = vmatpush1.bf16.msra.mxu0 %v3320
    %4864 = vmatprep.subr.bf16.mxu0 %v3315
    %4865 = vmatpush1.bf16.msra.mxu0 %v3314
    %4866 = vmatprep.subr.bf16.mxu0 %v3405
    %4867 = vmatpush2.bf16.msra.mxu0 %v3404
    %4868 = vmatprep.subr.bf16.mxu0 %v3399
    %4869 = vmatpush2.bf16.msra.mxu0 %v3398
    %4870 = vmatprep.subr.bf16.mxu0 %v3393
    %4871 = vmatpush2.bf16.msra.mxu0 %v3392
    %4872 = vmatprep.subr.bf16.mxu0 %v3387
    %4873 = vmatpush2.bf16.msra.mxu0 %v3386
    %4874 = vmatprep.subr.bf16.mxu0 %v3381
    %4875 = vmatpush2.bf16.msra.mxu0 %v3380
    %4876 = vmatprep.subr.bf16.mxu0 %v3375
    %4877 = vmatpush2.bf16.msra.mxu0 %v3374
    %4878 = vmatprep.subr.bf16.mxu0 %v3369
    %4879 = vmatpush2.bf16.msra.mxu0 %v3368
    %4880 = vmatprep.subr.bf16.mxu0 %v3363
    %4881 = vmatpush2.bf16.msra.mxu0 %v3362
    %4882 = vmatprep.mubr.bf16.mxu0 %v979
    %4883 = vmatmul.mubr.bf16.gmra.mxu0 %v978
    %v4884 = vpop.f32.mrf.mxu0
    %v4885 = vadd.f32 %v927, %v4884
    %v4886 = vpop.f32.mrf.mxu0
    %v4887 = vadd.f32 %v931, %v4886
    %v4888 = vpop.f32.mrf.mxu0
    %v4889 = vpop.f32.mrf.mxu0
    %4890 = vdwg.mxu0
    %4891 = vmatprep.subr.bf16.mxu0 %v3453
    %4892 = vmatpush1.bf16.msra.mxu0 %v3452
    %4893 = vmatprep.subr.bf16.mxu0 %v3447
    %4894 = vmatpush1.bf16.msra.mxu0 %v3446
    %4895 = vmatprep.subr.bf16.mxu0 %v3441
    %4896 = vmatpush1.bf16.msra.mxu0 %v3440
    %4897 = vmatprep.subr.bf16.mxu0 %v3435
    %4898 = vmatpush1.bf16.msra.mxu0 %v3434
    %4899 = vmatprep.subr.bf16.mxu0 %v3429
    %4900 = vmatpush1.bf16.msra.mxu0 %v3428
    %4901 = vmatprep.subr.bf16.mxu0 %v3423
    %4902 = vmatpush1.bf16.msra.mxu0 %v3422
    %4903 = vmatprep.subr.bf16.mxu0 %v3417
    %4904 = vmatpush1.bf16.msra.mxu0 %v3416
    %4905 = vmatprep.subr.bf16.mxu0 %v3411
    %4906 = vmatpush1.bf16.msra.mxu0 %v3410
    %4907 = vmatprep.subr.bf16.mxu0 %v3501
    %4908 = vmatpush2.bf16.msra.mxu0 %v3500
    %4909 = vmatprep.subr.bf16.mxu0 %v3495
    %4910 = vmatpush2.bf16.msra.mxu0 %v3494
    %4911 = vmatprep.subr.bf16.mxu0 %v3489
    %4912 = vmatpush2.bf16.msra.mxu0 %v3488
    %4913 = vmatprep.subr.bf16.mxu0 %v3483
    %4914 = vmatpush2.bf16.msra.mxu0 %v3482
    %4915 = vmatprep.subr.bf16.mxu0 %v3477
    %4916 = vmatpush2.bf16.msra.mxu0 %v3476
    %4917 = vmatprep.subr.bf16.mxu0 %v3471
    %4918 = vmatpush2.bf16.msra.mxu0 %v3470
    %4919 = vmatprep.subr.bf16.mxu0 %v3465
    %4920 = vmatpush2.bf16.msra.mxu0 %v3464
    %4921 = vmatprep.subr.bf16.mxu0 %v3459
    %4922 = vmatpush2.bf16.msra.mxu0 %v3458
    %4923 = vmatprep.mubr.bf16.mxu0 %v981
    %4924 = vmatmul.mubr.bf16.gmra.mxu0 %v980
    %v4925 = vpop.f32.mrf.mxu0
    %v4926 = vadd.f32 %v4885, %v4925
    %v4927 = vpop.f32.mrf.mxu0
    %v4928 = vadd.f32 %v4887, %v4927
    %v4929 = vpop.f32.mrf.mxu0
    %v4930 = vpop.f32.mrf.mxu0
    %4931 = vdwg.mxu0
    %4932 = vmatprep.subr.bf16.mxu0 %v3549
    %4933 = vmatpush1.bf16.msra.mxu0 %v3548
    %4934 = vmatprep.subr.bf16.mxu0 %v3543
    %4935 = vmatpush1.bf16.msra.mxu0 %v3542
    %4936 = vmatprep.subr.bf16.mxu0 %v3537
    %4937 = vmatpush1.bf16.msra.mxu0 %v3536
    %4938 = vmatprep.subr.bf16.mxu0 %v3531
    %4939 = vmatpush1.bf16.msra.mxu0 %v3530
    %4940 = vmatprep.subr.bf16.mxu0 %v3525
    %4941 = vmatpush1.bf16.msra.mxu0 %v3524
    %4942 = vmatprep.subr.bf16.mxu0 %v3519
    %4943 = vmatpush1.bf16.msra.mxu0 %v3518
    %4944 = vmatprep.subr.bf16.mxu0 %v3513
    %4945 = vmatpush1.bf16.msra.mxu0 %v3512
    %4946 = vmatprep.subr.bf16.mxu0 %v3507
    %4947 = vmatpush1.bf16.msra.mxu0 %v3506
    %4948 = vmatprep.subr.bf16.mxu0 %v3597
    %4949 = vmatpush2.bf16.msra.mxu0 %v3596
    %4950 = vmatprep.subr.bf16.mxu0 %v3591
    %4951 = vmatpush2.bf16.msra.mxu0 %v3590
    %4952 = vmatprep.subr.bf16.mxu0 %v3585
    %4953 = vmatpush2.bf16.msra.mxu0 %v3584
    %4954 = vmatprep.subr.bf16.mxu0 %v3579
    %4955 = vmatpush2.bf16.msra.mxu0 %v3578
    %4956 = vmatprep.subr.bf16.mxu0 %v3573
    %4957 = vmatpush2.bf16.msra.mxu0 %v3572
    %4958 = vmatprep.subr.bf16.mxu0 %v3567
    %4959 = vmatpush2.bf16.msra.mxu0 %v3566
    %4960 = vmatprep.subr.bf16.mxu0 %v3561
    %4961 = vmatpush2.bf16.msra.mxu0 %v3560
    %4962 = vmatprep.subr.bf16.mxu0 %v3555
    %4963 = vmatpush2.bf16.msra.mxu0 %v3554
    %4964 = vmatprep.mubr.bf16.mxu0 %v983
    %4965 = vmatmul.mubr.bf16.gmra.mxu0 %v982
    %v4966 = vpop.f32.mrf.mxu0
    %v4967 = vadd.f32 %v4926, %v4966
    %v4968 = vpop.f32.mrf.mxu0
    %v4969 = vadd.f32 %v4928, %v4968
    %v4970 = vpop.f32.mrf.mxu0
    %v4971 = vpop.f32.mrf.mxu0
    %4972 = vdwg.mxu0
    %4973 = vmatprep.subr.bf16.mxu0 %v3645
    %4974 = vmatpush1.bf16.msra.mxu0 %v3644
    %4975 = vmatprep.subr.bf16.mxu0 %v3639
    %4976 = vmatpush1.bf16.msra.mxu0 %v3638
    %4977 = vmatprep.subr.bf16.mxu0 %v3633
    %4978 = vmatpush1.bf16.msra.mxu0 %v3632
    %4979 = vmatprep.subr.bf16.mxu0 %v3627
    %4980 = vmatpush1.bf16.msra.mxu0 %v3626
    %4981 = vmatprep.subr.bf16.mxu0 %v3621
    %4982 = vmatpush1.bf16.msra.mxu0 %v3620
    %4983 = vmatprep.subr.bf16.mxu0 %v3615
    %4984 = vmatpush1.bf16.msra.mxu0 %v3614
    %4985 = vmatprep.subr.bf16.mxu0 %v3609
    %4986 = vmatpush1.bf16.msra.mxu0 %v3608
    %4987 = vmatprep.subr.bf16.mxu0 %v3603
    %4988 = vmatpush1.bf16.msra.mxu0 %v3602
    %4989 = vmatprep.subr.bf16.mxu0 %v3693
    %4990 = vmatpush2.bf16.msra.mxu0 %v3692
    %4991 = vmatprep.subr.bf16.mxu0 %v3687
    %4992 = vmatpush2.bf16.msra.mxu0 %v3686
    %4993 = vmatprep.subr.bf16.mxu0 %v3681
    %4994 = vmatpush2.bf16.msra.mxu0 %v3680
    %4995 = vmatprep.subr.bf16.mxu0 %v3675
    %4996 = vmatpush2.bf16.msra.mxu0 %v3674
    %4997 = vmatprep.subr.bf16.mxu0 %v3669
    %4998 = vmatpush2.bf16.msra.mxu0 %v3668
    %4999 = vmatprep.subr.bf16.mxu0 %v3663
    %5000 = vmatpush2.bf16.msra.mxu0 %v3662
    %5001 = vmatprep.subr.bf16.mxu0 %v3657
    %5002 = vmatpush2.bf16.msra.mxu0 %v3656
    %5003 = vmatprep.subr.bf16.mxu0 %v3651
    %5004 = vmatpush2.bf16.msra.mxu0 %v3650
    %5005 = vmatprep.mubr.bf16.mxu0 %v985
    %5006 = vmatmul.mubr.bf16.gmra.mxu0 %v984
    %v5007 = vpop.f32.mrf.mxu0
    %v5008 = vadd.f32 %v4967, %v5007
    %v5009 = vpop.f32.mrf.mxu0
    %v5010 = vadd.f32 %v4969, %v5009
    %v5011 = vpop.f32.mrf.mxu0
    %v5012 = vpop.f32.mrf.mxu0
    %5013 = vdwg.mxu0
    %5014 = vmatprep.subr.bf16.mxu0 %v3741
    %5015 = vmatpush1.bf16.msra.mxu0 %v3740
    %5016 = vmatprep.subr.bf16.mxu0 %v3735
    %5017 = vmatpush1.bf16.msra.mxu0 %v3734
    %5018 = vmatprep.subr.bf16.mxu0 %v3729
    %5019 = vmatpush1.bf16.msra.mxu0 %v3728
    %5020 = vmatprep.subr.bf16.mxu0 %v3723
    %5021 = vmatpush1.bf16.msra.mxu0 %v3722
    %5022 = vmatprep.subr.bf16.mxu0 %v3717
    %5023 = vmatpush1.bf16.msra.mxu0 %v3716
    %5024 = vmatprep.subr.bf16.mxu0 %v3711
    %5025 = vmatpush1.bf16.msra.mxu0 %v3710
    %5026 = vmatprep.subr.bf16.mxu0 %v3705
    %5027 = vmatpush1.bf16.msra.mxu0 %v3704
    %5028 = vmatprep.subr.bf16.mxu0 %v3699
    %5029 = vmatpush1.bf16.msra.mxu0 %v3698
    %5030 = vmatprep.subr.bf16.mxu0 %v3789
    %5031 = vmatpush2.bf16.msra.mxu0 %v3788
    %5032 = vmatprep.subr.bf16.mxu0 %v3783
    %5033 = vmatpush2.bf16.msra.mxu0 %v3782
    %5034 = vmatprep.subr.bf16.mxu0 %v3777
    %5035 = vmatpush2.bf16.msra.mxu0 %v3776
    %5036 = vmatprep.subr.bf16.mxu0 %v3771
    %5037 = vmatpush2.bf16.msra.mxu0 %v3770
    %5038 = vmatprep.subr.bf16.mxu0 %v3765
    %5039 = vmatpush2.bf16.msra.mxu0 %v3764
    %5040 = vmatprep.subr.bf16.mxu0 %v3759
    %5041 = vmatpush2.bf16.msra.mxu0 %v3758
    %5042 = vmatprep.subr.bf16.mxu0 %v3753
    %5043 = vmatpush2.bf16.msra.mxu0 %v3752
    %5044 = vmatprep.subr.bf16.mxu0 %v3747
    %5045 = vmatpush2.bf16.msra.mxu0 %v3746
    %5046 = vmatprep.mubr.bf16.mxu0 %v987
    %5047 = vmatmul.mubr.bf16.gmra.mxu0 %v986
    %v5048 = vpop.f32.mrf.mxu0
    %v5049 = vadd.f32 %v5008, %v5048
    %v5050 = vpop.f32.mrf.mxu0
    %v5051 = vadd.f32 %v5010, %v5050
    %v5052 = vpop.f32.mrf.mxu0
    %v5053 = vpop.f32.mrf.mxu0
    %5054 = vdwg.mxu0
    %5055 = vmatprep.subr.bf16.mxu0 %v3837
    %5056 = vmatpush1.bf16.msra.mxu0 %v3836
    %5057 = vmatprep.subr.bf16.mxu0 %v3831
    %5058 = vmatpush1.bf16.msra.mxu0 %v3830
    %5059 = vmatprep.subr.bf16.mxu0 %v3825
    %5060 = vmatpush1.bf16.msra.mxu0 %v3824
    %5061 = vmatprep.subr.bf16.mxu0 %v3819
    %5062 = vmatpush1.bf16.msra.mxu0 %v3818
    %5063 = vmatprep.subr.bf16.mxu0 %v3813
    %5064 = vmatpush1.bf16.msra.mxu0 %v3812
    %5065 = vmatprep.subr.bf16.mxu0 %v3807
    %5066 = vmatpush1.bf16.msra.mxu0 %v3806
    %5067 = vmatprep.subr.bf16.mxu0 %v3801
    %5068 = vmatpush1.bf16.msra.mxu0 %v3800
    %5069 = vmatprep.subr.bf16.mxu0 %v3795
    %5070 = vmatpush1.bf16.msra.mxu0 %v3794
    %5071 = vmatprep.subr.bf16.mxu0 %v3885
    %5072 = vmatpush2.bf16.msra.mxu0 %v3884
    %5073 = vmatprep.subr.bf16.mxu0 %v3879
    %5074 = vmatpush2.bf16.msra.mxu0 %v3878
    %5075 = vmatprep.subr.bf16.mxu0 %v3873
    %5076 = vmatpush2.bf16.msra.mxu0 %v3872
    %5077 = vmatprep.subr.bf16.mxu0 %v3867
    %5078 = vmatpush2.bf16.msra.mxu0 %v3866
    %5079 = vmatprep.subr.bf16.mxu0 %v3861
    %5080 = vmatpush2.bf16.msra.mxu0 %v3860
    %5081 = vmatprep.subr.bf16.mxu0 %v3855
    %5082 = vmatpush2.bf16.msra.mxu0 %v3854
    %5083 = vmatprep.subr.bf16.mxu0 %v3849
    %5084 = vmatpush2.bf16.msra.mxu0 %v3848
    %5085 = vmatprep.subr.bf16.mxu0 %v3843
    %5086 = vmatpush2.bf16.msra.mxu0 %v3842
    %5087 = vmatprep.mubr.bf16.mxu0 %v989
    %5088 = vmatmul.mubr.bf16.gmra.mxu0 %v988
    %v5089 = vpop.f32.mrf.mxu0
    %v5090 = vadd.f32 %v5049, %v5089
    %v5091 = vpop.f32.mrf.mxu0
    %v5092 = vadd.f32 %v5051, %v5091
    %v5093 = vpop.f32.mrf.mxu0
    %v5094 = vpop.f32.mrf.mxu0
    %5095 = vdwg.mxu0
    %5096 = vmatprep.subr.bf16.mxu0 %v3933
    %5097 = vmatpush1.bf16.msra.mxu0 %v3932
    %5098 = vmatprep.subr.bf16.mxu0 %v3927
    %5099 = vmatpush1.bf16.msra.mxu0 %v3926
    %5100 = vmatprep.subr.bf16.mxu0 %v3921
    %5101 = vmatpush1.bf16.msra.mxu0 %v3920
    %5102 = vmatprep.subr.bf16.mxu0 %v3915
    %5103 = vmatpush1.bf16.msra.mxu0 %v3914
    %5104 = vmatprep.subr.bf16.mxu0 %v3909
    %5105 = vmatpush1.bf16.msra.mxu0 %v3908
    %5106 = vmatprep.subr.bf16.mxu0 %v3903
    %5107 = vmatpush1.bf16.msra.mxu0 %v3902
    %5108 = vmatprep.subr.bf16.mxu0 %v3897
    %5109 = vmatpush1.bf16.msra.mxu0 %v3896
    %5110 = vmatprep.subr.bf16.mxu0 %v3891
    %5111 = vmatpush1.bf16.msra.mxu0 %v3890
    %5112 = vmatprep.subr.bf16.mxu0 %v3981
    %5113 = vmatpush2.bf16.msra.mxu0 %v3980
    %5114 = vmatprep.subr.bf16.mxu0 %v3975
    %5115 = vmatpush2.bf16.msra.mxu0 %v3974
    %5116 = vmatprep.subr.bf16.mxu0 %v3969
    %5117 = vmatpush2.bf16.msra.mxu0 %v3968
    %5118 = vmatprep.subr.bf16.mxu0 %v3963
    %5119 = vmatpush2.bf16.msra.mxu0 %v3962
    %5120 = vmatprep.subr.bf16.mxu0 %v3957
    %5121 = vmatpush2.bf16.msra.mxu0 %v3956
    %5122 = vmatprep.subr.bf16.mxu0 %v3951
    %5123 = vmatpush2.bf16.msra.mxu0 %v3950
    %5124 = vmatprep.subr.bf16.mxu0 %v3945
    %5125 = vmatpush2.bf16.msra.mxu0 %v3944
    %5126 = vmatprep.subr.bf16.mxu0 %v3939
    %5127 = vmatpush2.bf16.msra.mxu0 %v3938
    %5128 = vmatprep.mubr.bf16.mxu0 %v991
    %5129 = vmatmul.mubr.bf16.gmra.mxu0 %v990
    %v5130 = vpop.f32.mrf.mxu0
    %v5131 = vadd.f32 %v5090, %v5130
    %v5132 = vpop.f32.mrf.mxu0
    %v5133 = vadd.f32 %v5092, %v5132
    %v5134 = vpop.f32.mrf.mxu0
    %v5135 = vpop.f32.mrf.mxu0
    %5136 = vdwg.mxu0
    %5137 = vmatprep.subr.bf16.mxu0 %v4029
    %5138 = vmatpush1.bf16.msra.mxu0 %v4028
    %5139 = vmatprep.subr.bf16.mxu0 %v4023
    %5140 = vmatpush1.bf16.msra.mxu0 %v4022
    %5141 = vmatprep.subr.bf16.mxu0 %v4017
    %5142 = vmatpush1.bf16.msra.mxu0 %v4016
    %5143 = vmatprep.subr.bf16.mxu0 %v4011
    %5144 = vmatpush1.bf16.msra.mxu0 %v4010
    %5145 = vmatprep.subr.bf16.mxu0 %v4005
    %5146 = vmatpush1.bf16.msra.mxu0 %v4004
    %5147 = vmatprep.subr.bf16.mxu0 %v3999
    %5148 = vmatpush1.bf16.msra.mxu0 %v3998
    %5149 = vmatprep.subr.bf16.mxu0 %v3993
    %5150 = vmatpush1.bf16.msra.mxu0 %v3992
    %5151 = vmatprep.subr.bf16.mxu0 %v3987
    %5152 = vmatpush1.bf16.msra.mxu0 %v3986
    %5153 = vmatprep.subr.bf16.mxu0 %v4077
    %5154 = vmatpush2.bf16.msra.mxu0 %v4076
    %5155 = vmatprep.subr.bf16.mxu0 %v4071
    %5156 = vmatpush2.bf16.msra.mxu0 %v4070
    %5157 = vmatprep.subr.bf16.mxu0 %v4065
    %5158 = vmatpush2.bf16.msra.mxu0 %v4064
    %5159 = vmatprep.subr.bf16.mxu0 %v4059
    %5160 = vmatpush2.bf16.msra.mxu0 %v4058
    %5161 = vmatprep.subr.bf16.mxu0 %v4053
    %5162 = vmatpush2.bf16.msra.mxu0 %v4052
    %5163 = vmatprep.subr.bf16.mxu0 %v4047
    %5164 = vmatpush2.bf16.msra.mxu0 %v4046
    %5165 = vmatprep.subr.bf16.mxu0 %v4041
    %5166 = vmatpush2.bf16.msra.mxu0 %v4040
    %5167 = vmatprep.subr.bf16.mxu0 %v4035
    %5168 = vmatpush2.bf16.msra.mxu0 %v4034
    %5169 = vmatprep.mubr.bf16.mxu0 %v993
    %5170 = vmatmul.mubr.bf16.gmra.mxu0 %v992
    %v5171 = vpop.f32.mrf.mxu0
    %v5172 = vadd.f32 %v5131, %v5171
    %v5173 = vpop.f32.mrf.mxu0
    %v5174 = vadd.f32 %v5133, %v5173
    %v5175 = vpop.f32.mrf.mxu0
    %v5176 = vpop.f32.mrf.mxu0
    %5177 = vdwg.mxu0
    %5178 = vmatprep.subr.bf16.mxu0 %v3359
    %5179 = vmatpush1.bf16.msra.mxu0 %v3358
    %5180 = vmatprep.subr.bf16.mxu0 %v3353
    %5181 = vmatpush1.bf16.msra.mxu0 %v3352
    %5182 = vmatprep.subr.bf16.mxu0 %v3347
    %5183 = vmatpush1.bf16.msra.mxu0 %v3346
    %5184 = vmatprep.subr.bf16.mxu0 %v3341
    %5185 = vmatpush1.bf16.msra.mxu0 %v3340
    %5186 = vmatprep.subr.bf16.mxu0 %v3335
    %5187 = vmatpush1.bf16.msra.mxu0 %v3334
    %5188 = vmatprep.subr.bf16.mxu0 %v3329
    %5189 = vmatpush1.bf16.msra.mxu0 %v3328
    %5190 = vmatprep.subr.bf16.mxu0 %v3323
    %5191 = vmatpush1.bf16.msra.mxu0 %v3322
    %5192 = vmatprep.subr.bf16.mxu0 %v3317
    %5193 = vmatpush1.bf16.msra.mxu0 %v3316
    %5194 = vmatprep.subr.bf16.mxu0 %v3407
    %5195 = vmatpush2.bf16.msra.mxu0 %v3406
    %5196 = vmatprep.subr.bf16.mxu0 %v3401
    %5197 = vmatpush2.bf16.msra.mxu0 %v3400
    %5198 = vmatprep.subr.bf16.mxu0 %v3395
    %5199 = vmatpush2.bf16.msra.mxu0 %v3394
    %5200 = vmatprep.subr.bf16.mxu0 %v3389
    %5201 = vmatpush2.bf16.msra.mxu0 %v3388
    %5202 = vmatprep.subr.bf16.mxu0 %v3383
    %5203 = vmatpush2.bf16.msra.mxu0 %v3382
    %5204 = vmatprep.subr.bf16.mxu0 %v3377
    %5205 = vmatpush2.bf16.msra.mxu0 %v3376
    %5206 = vmatprep.subr.bf16.mxu0 %v3371
    %5207 = vmatpush2.bf16.msra.mxu0 %v3370
    %5208 = vmatprep.subr.bf16.mxu0 %v3365
    %5209 = vmatpush2.bf16.msra.mxu0 %v3364
    %5210 = vmatprep.mubr.bf16.mxu0 %v979
    %5211 = vmatmul.mubr.bf16.gmra.mxu0 %v978
    %v5212 = vpop.f32.mrf.mxu0
    %v5213 = vadd.f32 %v935, %v5212
    %v5214 = vpop.f32.mrf.mxu0
    %v5215 = vadd.f32 %v939, %v5214
    %v5216 = vpop.f32.mrf.mxu0
    %v5217 = vpop.f32.mrf.mxu0
    %5218 = vdwg.mxu0
    %5219 = vmatprep.subr.bf16.mxu0 %v3455
    %5220 = vmatpush1.bf16.msra.mxu0 %v3454
    %5221 = vmatprep.subr.bf16.mxu0 %v3449
    %5222 = vmatpush1.bf16.msra.mxu0 %v3448
    %5223 = vmatprep.subr.bf16.mxu0 %v3443
    %5224 = vmatpush1.bf16.msra.mxu0 %v3442
    %5225 = vmatprep.subr.bf16.mxu0 %v3437
    %5226 = vmatpush1.bf16.msra.mxu0 %v3436
    %5227 = vmatprep.subr.bf16.mxu0 %v3431
    %5228 = vmatpush1.bf16.msra.mxu0 %v3430
    %5229 = vmatprep.subr.bf16.mxu0 %v3425
    %5230 = vmatpush1.bf16.msra.mxu0 %v3424
    %5231 = vmatprep.subr.bf16.mxu0 %v3419
    %5232 = vmatpush1.bf16.msra.mxu0 %v3418
    %5233 = vmatprep.subr.bf16.mxu0 %v3413
    %5234 = vmatpush1.bf16.msra.mxu0 %v3412
    %5235 = vmatprep.subr.bf16.mxu0 %v3503
    %5236 = vmatpush2.bf16.msra.mxu0 %v3502
    %5237 = vmatprep.subr.bf16.mxu0 %v3497
    %5238 = vmatpush2.bf16.msra.mxu0 %v3496
    %5239 = vmatprep.subr.bf16.mxu0 %v3491
    %5240 = vmatpush2.bf16.msra.mxu0 %v3490
    %5241 = vmatprep.subr.bf16.mxu0 %v3485
    %5242 = vmatpush2.bf16.msra.mxu0 %v3484
    %5243 = vmatprep.subr.bf16.mxu0 %v3479
    %5244 = vmatpush2.bf16.msra.mxu0 %v3478
    %5245 = vmatprep.subr.bf16.mxu0 %v3473
    %5246 = vmatpush2.bf16.msra.mxu0 %v3472
    %5247 = vmatprep.subr.bf16.mxu0 %v3467
    %5248 = vmatpush2.bf16.msra.mxu0 %v3466
    %5249 = vmatprep.subr.bf16.mxu0 %v3461
    %5250 = vmatpush2.bf16.msra.mxu0 %v3460
    %5251 = vmatprep.mubr.bf16.mxu0 %v981
    %5252 = vmatmul.mubr.bf16.gmra.mxu0 %v980
    %v5253 = vpop.f32.mrf.mxu0
    %v5254 = vadd.f32 %v5213, %v5253
    %v5255 = vpop.f32.mrf.mxu0
    %v5256 = vadd.f32 %v5215, %v5255
    %v5257 = vpop.f32.mrf.mxu0
    %v5258 = vpop.f32.mrf.mxu0
    %5259 = vdwg.mxu0
    %5260 = vmatprep.subr.bf16.mxu0 %v3551
    %5261 = vmatpush1.bf16.msra.mxu0 %v3550
    %5262 = vmatprep.subr.bf16.mxu0 %v3545
    %5263 = vmatpush1.bf16.msra.mxu0 %v3544
    %5264 = vmatprep.subr.bf16.mxu0 %v3539
    %5265 = vmatpush1.bf16.msra.mxu0 %v3538
    %5266 = vmatprep.subr.bf16.mxu0 %v3533
    %5267 = vmatpush1.bf16.msra.mxu0 %v3532
    %5268 = vmatprep.subr.bf16.mxu0 %v3527
    %5269 = vmatpush1.bf16.msra.mxu0 %v3526
    %5270 = vmatprep.subr.bf16.mxu0 %v3521
    %5271 = vmatpush1.bf16.msra.mxu0 %v3520
    %5272 = vmatprep.subr.bf16.mxu0 %v3515
    %5273 = vmatpush1.bf16.msra.mxu0 %v3514
    %5274 = vmatprep.subr.bf16.mxu0 %v3509
    %5275 = vmatpush1.bf16.msra.mxu0 %v3508
    %5276 = vmatprep.subr.bf16.mxu0 %v3599
    %5277 = vmatpush2.bf16.msra.mxu0 %v3598
    %5278 = vmatprep.subr.bf16.mxu0 %v3593
    %5279 = vmatpush2.bf16.msra.mxu0 %v3592
    %5280 = vmatprep.subr.bf16.mxu0 %v3587
    %5281 = vmatpush2.bf16.msra.mxu0 %v3586
    %5282 = vmatprep.subr.bf16.mxu0 %v3581
    %5283 = vmatpush2.bf16.msra.mxu0 %v3580
    %5284 = vmatprep.subr.bf16.mxu0 %v3575
    %5285 = vmatpush2.bf16.msra.mxu0 %v3574
    %5286 = vmatprep.subr.bf16.mxu0 %v3569
    %5287 = vmatpush2.bf16.msra.mxu0 %v3568
    %5288 = vmatprep.subr.bf16.mxu0 %v3563
    %5289 = vmatpush2.bf16.msra.mxu0 %v3562
    %5290 = vmatprep.subr.bf16.mxu0 %v3557
    %5291 = vmatpush2.bf16.msra.mxu0 %v3556
    %5292 = vmatprep.mubr.bf16.mxu0 %v983
    %5293 = vmatmul.mubr.bf16.gmra.mxu0 %v982
    %v5294 = vpop.f32.mrf.mxu0
    %v5295 = vadd.f32 %v5254, %v5294
    %v5296 = vpop.f32.mrf.mxu0
    %v5297 = vadd.f32 %v5256, %v5296
    %v5298 = vpop.f32.mrf.mxu0
    %v5299 = vpop.f32.mrf.mxu0
    %5300 = vdwg.mxu0
    %5301 = vmatprep.subr.bf16.mxu0 %v3647
    %5302 = vmatpush1.bf16.msra.mxu0 %v3646
    %5303 = vmatprep.subr.bf16.mxu0 %v3641
    %5304 = vmatpush1.bf16.msra.mxu0 %v3640
    %5305 = vmatprep.subr.bf16.mxu0 %v3635
    %5306 = vmatpush1.bf16.msra.mxu0 %v3634
    %5307 = vmatprep.subr.bf16.mxu0 %v3629
    %5308 = vmatpush1.bf16.msra.mxu0 %v3628
    %5309 = vmatprep.subr.bf16.mxu0 %v3623
    %5310 = vmatpush1.bf16.msra.mxu0 %v3622
    %5311 = vmatprep.subr.bf16.mxu0 %v3617
    %5312 = vmatpush1.bf16.msra.mxu0 %v3616
    %5313 = vmatprep.subr.bf16.mxu0 %v3611
    %5314 = vmatpush1.bf16.msra.mxu0 %v3610
    %5315 = vmatprep.subr.bf16.mxu0 %v3605
    %5316 = vmatpush1.bf16.msra.mxu0 %v3604
    %5317 = vmatprep.subr.bf16.mxu0 %v3695
    %5318 = vmatpush2.bf16.msra.mxu0 %v3694
    %5319 = vmatprep.subr.bf16.mxu0 %v3689
    %5320 = vmatpush2.bf16.msra.mxu0 %v3688
    %5321 = vmatprep.subr.bf16.mxu0 %v3683
    %5322 = vmatpush2.bf16.msra.mxu0 %v3682
    %5323 = vmatprep.subr.bf16.mxu0 %v3677
    %5324 = vmatpush2.bf16.msra.mxu0 %v3676
    %5325 = vmatprep.subr.bf16.mxu0 %v3671
    %5326 = vmatpush2.bf16.msra.mxu0 %v3670
    %5327 = vmatprep.subr.bf16.mxu0 %v3665
    %5328 = vmatpush2.bf16.msra.mxu0 %v3664
    %5329 = vmatprep.subr.bf16.mxu0 %v3659
    %5330 = vmatpush2.bf16.msra.mxu0 %v3658
    %5331 = vmatprep.subr.bf16.mxu0 %v3653
    %5332 = vmatpush2.bf16.msra.mxu0 %v3652
    %5333 = vmatprep.mubr.bf16.mxu0 %v985
    %5334 = vmatmul.mubr.bf16.gmra.mxu0 %v984
    %v5335 = vpop.f32.mrf.mxu0
    %v5336 = vadd.f32 %v5295, %v5335
    %v5337 = vpop.f32.mrf.mxu0
    %v5338 = vadd.f32 %v5297, %v5337
    %v5339 = vpop.f32.mrf.mxu0
    %v5340 = vpop.f32.mrf.mxu0
    %5341 = vdwg.mxu0
    %5342 = vmatprep.subr.bf16.mxu0 %v3743
    %5343 = vmatpush1.bf16.msra.mxu0 %v3742
    %5344 = vmatprep.subr.bf16.mxu0 %v3737
    %5345 = vmatpush1.bf16.msra.mxu0 %v3736
    %5346 = vmatprep.subr.bf16.mxu0 %v3731
    %5347 = vmatpush1.bf16.msra.mxu0 %v3730
    %5348 = vmatprep.subr.bf16.mxu0 %v3725
    %5349 = vmatpush1.bf16.msra.mxu0 %v3724
    %5350 = vmatprep.subr.bf16.mxu0 %v3719
    %5351 = vmatpush1.bf16.msra.mxu0 %v3718
    %5352 = vmatprep.subr.bf16.mxu0 %v3713
    %5353 = vmatpush1.bf16.msra.mxu0 %v3712
    %5354 = vmatprep.subr.bf16.mxu0 %v3707
    %5355 = vmatpush1.bf16.msra.mxu0 %v3706
    %5356 = vmatprep.subr.bf16.mxu0 %v3701
    %5357 = vmatpush1.bf16.msra.mxu0 %v3700
    %5358 = vmatprep.subr.bf16.mxu0 %v3791
    %5359 = vmatpush2.bf16.msra.mxu0 %v3790
    %5360 = vmatprep.subr.bf16.mxu0 %v3785
    %5361 = vmatpush2.bf16.msra.mxu0 %v3784
    %5362 = vmatprep.subr.bf16.mxu0 %v3779
    %5363 = vmatpush2.bf16.msra.mxu0 %v3778
    %5364 = vmatprep.subr.bf16.mxu0 %v3773
    %5365 = vmatpush2.bf16.msra.mxu0 %v3772
    %5366 = vmatprep.subr.bf16.mxu0 %v3767
    %5367 = vmatpush2.bf16.msra.mxu0 %v3766
    %5368 = vmatprep.subr.bf16.mxu0 %v3761
    %5369 = vmatpush2.bf16.msra.mxu0 %v3760
    %5370 = vmatprep.subr.bf16.mxu0 %v3755
    %5371 = vmatpush2.bf16.msra.mxu0 %v3754
    %5372 = vmatprep.subr.bf16.mxu0 %v3749
    %5373 = vmatpush2.bf16.msra.mxu0 %v3748
    %5374 = vmatprep.mubr.bf16.mxu0 %v987
    %5375 = vmatmul.mubr.bf16.gmra.mxu0 %v986
    %v5376 = vpop.f32.mrf.mxu0
    %v5377 = vadd.f32 %v5336, %v5376
    %v5378 = vpop.f32.mrf.mxu0
    %v5379 = vadd.f32 %v5338, %v5378
    %v5380 = vpop.f32.mrf.mxu0
    %v5381 = vpop.f32.mrf.mxu0
    %5382 = vdwg.mxu0
    %5383 = vmatprep.subr.bf16.mxu0 %v3839
    %5384 = vmatpush1.bf16.msra.mxu0 %v3838
    %5385 = vmatprep.subr.bf16.mxu0 %v3833
    %5386 = vmatpush1.bf16.msra.mxu0 %v3832
    %5387 = vmatprep.subr.bf16.mxu0 %v3827
    %5388 = vmatpush1.bf16.msra.mxu0 %v3826
    %5389 = vmatprep.subr.bf16.mxu0 %v3821
    %5390 = vmatpush1.bf16.msra.mxu0 %v3820
    %5391 = vmatprep.subr.bf16.mxu0 %v3815
    %5392 = vmatpush1.bf16.msra.mxu0 %v3814
    %5393 = vmatprep.subr.bf16.mxu0 %v3809
    %5394 = vmatpush1.bf16.msra.mxu0 %v3808
    %5395 = vmatprep.subr.bf16.mxu0 %v3803
    %5396 = vmatpush1.bf16.msra.mxu0 %v3802
    %5397 = vmatprep.subr.bf16.mxu0 %v3797
    %5398 = vmatpush1.bf16.msra.mxu0 %v3796
    %5399 = vmatprep.subr.bf16.mxu0 %v3887
    %5400 = vmatpush2.bf16.msra.mxu0 %v3886
    %5401 = vmatprep.subr.bf16.mxu0 %v3881
    %5402 = vmatpush2.bf16.msra.mxu0 %v3880
    %5403 = vmatprep.subr.bf16.mxu0 %v3875
    %5404 = vmatpush2.bf16.msra.mxu0 %v3874
    %5405 = vmatprep.subr.bf16.mxu0 %v3869
    %5406 = vmatpush2.bf16.msra.mxu0 %v3868
    %5407 = vmatprep.subr.bf16.mxu0 %v3863
    %5408 = vmatpush2.bf16.msra.mxu0 %v3862
    %5409 = vmatprep.subr.bf16.mxu0 %v3857
    %5410 = vmatpush2.bf16.msra.mxu0 %v3856
    %5411 = vmatprep.subr.bf16.mxu0 %v3851
    %5412 = vmatpush2.bf16.msra.mxu0 %v3850
    %5413 = vmatprep.subr.bf16.mxu0 %v3845
    %5414 = vmatpush2.bf16.msra.mxu0 %v3844
    %5415 = vmatprep.mubr.bf16.mxu0 %v989
    %5416 = vmatmul.mubr.bf16.gmra.mxu0 %v988
    %v5417 = vpop.f32.mrf.mxu0
    %v5418 = vadd.f32 %v5377, %v5417
    %v5419 = vpop.f32.mrf.mxu0
    %v5420 = vadd.f32 %v5379, %v5419
    %v5421 = vpop.f32.mrf.mxu0
    %v5422 = vpop.f32.mrf.mxu0
    %5423 = vdwg.mxu0
    %5424 = vmatprep.subr.bf16.mxu0 %v3935
    %5425 = vmatpush1.bf16.msra.mxu0 %v3934
    %5426 = vmatprep.subr.bf16.mxu0 %v3929
    %5427 = vmatpush1.bf16.msra.mxu0 %v3928
    %5428 = vmatprep.subr.bf16.mxu0 %v3923
    %5429 = vmatpush1.bf16.msra.mxu0 %v3922
    %5430 = vmatprep.subr.bf16.mxu0 %v3917
    %5431 = vmatpush1.bf16.msra.mxu0 %v3916
    %5432 = vmatprep.subr.bf16.mxu0 %v3911
    %5433 = vmatpush1.bf16.msra.mxu0 %v3910
    %5434 = vmatprep.subr.bf16.mxu0 %v3905
    %5435 = vmatpush1.bf16.msra.mxu0 %v3904
    %5436 = vmatprep.subr.bf16.mxu0 %v3899
    %5437 = vmatpush1.bf16.msra.mxu0 %v3898
    %5438 = vmatprep.subr.bf16.mxu0 %v3893
    %5439 = vmatpush1.bf16.msra.mxu0 %v3892
    %5440 = vmatprep.subr.bf16.mxu0 %v3983
    %5441 = vmatpush2.bf16.msra.mxu0 %v3982
    %5442 = vmatprep.subr.bf16.mxu0 %v3977
    %5443 = vmatpush2.bf16.msra.mxu0 %v3976
    %5444 = vmatprep.subr.bf16.mxu0 %v3971
    %5445 = vmatpush2.bf16.msra.mxu0 %v3970
    %5446 = vmatprep.subr.bf16.mxu0 %v3965
    %5447 = vmatpush2.bf16.msra.mxu0 %v3964
    %5448 = vmatprep.subr.bf16.mxu0 %v3959
    %5449 = vmatpush2.bf16.msra.mxu0 %v3958
    %5450 = vmatprep.subr.bf16.mxu0 %v3953
    %5451 = vmatpush2.bf16.msra.mxu0 %v3952
    %5452 = vmatprep.subr.bf16.mxu0 %v3947
    %5453 = vmatpush2.bf16.msra.mxu0 %v3946
    %5454 = vmatprep.subr.bf16.mxu0 %v3941
    %5455 = vmatpush2.bf16.msra.mxu0 %v3940
    %5456 = vmatprep.mubr.bf16.mxu0 %v991
    %5457 = vmatmul.mubr.bf16.gmra.mxu0 %v990
    %v5458 = vpop.f32.mrf.mxu0
    %v5459 = vadd.f32 %v5418, %v5458
    %v5460 = vpop.f32.mrf.mxu0
    %v5461 = vadd.f32 %v5420, %v5460
    %v5462 = vpop.f32.mrf.mxu0
    %v5463 = vpop.f32.mrf.mxu0
    %5464 = vdwg.mxu0
    %5465 = vmatprep.subr.bf16.mxu0 %v4031
    %5466 = vmatpush1.bf16.msra.mxu0 %v4030
    %5467 = vmatprep.subr.bf16.mxu0 %v4025
    %5468 = vmatpush1.bf16.msra.mxu0 %v4024
    %5469 = vmatprep.subr.bf16.mxu0 %v4019
    %5470 = vmatpush1.bf16.msra.mxu0 %v4018
    %5471 = vmatprep.subr.bf16.mxu0 %v4013
    %5472 = vmatpush1.bf16.msra.mxu0 %v4012
    %5473 = vmatprep.subr.bf16.mxu0 %v4007
    %5474 = vmatpush1.bf16.msra.mxu0 %v4006
    %5475 = vmatprep.subr.bf16.mxu0 %v4001
    %5476 = vmatpush1.bf16.msra.mxu0 %v4000
    %5477 = vmatprep.subr.bf16.mxu0 %v3995
    %5478 = vmatpush1.bf16.msra.mxu0 %v3994
    %5479 = vmatprep.subr.bf16.mxu0 %v3989
    %5480 = vmatpush1.bf16.msra.mxu0 %v3988
    %5481 = vmatprep.subr.bf16.mxu0 %v4079
    %5482 = vmatpush2.bf16.msra.mxu0 %v4078
    %5483 = vmatprep.subr.bf16.mxu0 %v4073
    %5484 = vmatpush2.bf16.msra.mxu0 %v4072
    %5485 = vmatprep.subr.bf16.mxu0 %v4067
    %5486 = vmatpush2.bf16.msra.mxu0 %v4066
    %5487 = vmatprep.subr.bf16.mxu0 %v4061
    %5488 = vmatpush2.bf16.msra.mxu0 %v4060
    %5489 = vmatprep.subr.bf16.mxu0 %v4055
    %5490 = vmatpush2.bf16.msra.mxu0 %v4054
    %5491 = vmatprep.subr.bf16.mxu0 %v4049
    %5492 = vmatpush2.bf16.msra.mxu0 %v4048
    %5493 = vmatprep.subr.bf16.mxu0 %v4043
    %5494 = vmatpush2.bf16.msra.mxu0 %v4042
    %5495 = vmatprep.subr.bf16.mxu0 %v4037
    %5496 = vmatpush2.bf16.msra.mxu0 %v4036
    %5497 = vmatprep.mubr.bf16.mxu0 %v993
    %5498 = vmatmul.mubr.bf16.gmra.mxu0 %v992
    %v5499 = vpop.f32.mrf.mxu0
    %v5500 = vadd.f32 %v5459, %v5499
    %v5501 = vpop.f32.mrf.mxu0
    %v5502 = vadd.f32 %v5461, %v5501
    %v5503 = vpop.f32.mrf.mxu0
    %v5504 = vpop.f32.mrf.mxu0
    %5505 = vdwg.mxu0
    %5506 = vmatprep.subr.bf16.mxu0 %v3361
    %5507 = vmatpush1.bf16.msra.mxu0 %v3360
    %5508 = vmatprep.subr.bf16.mxu0 %v3355
    %5509 = vmatpush1.bf16.msra.mxu0 %v3354
    %5510 = vmatprep.subr.bf16.mxu0 %v3349
    %5511 = vmatpush1.bf16.msra.mxu0 %v3348
    %5512 = vmatprep.subr.bf16.mxu0 %v3343
    %5513 = vmatpush1.bf16.msra.mxu0 %v3342
    %5514 = vmatprep.subr.bf16.mxu0 %v3337
    %5515 = vmatpush1.bf16.msra.mxu0 %v3336
    %5516 = vmatprep.subr.bf16.mxu0 %v3331
    %5517 = vmatpush1.bf16.msra.mxu0 %v3330
    %5518 = vmatprep.subr.bf16.mxu0 %v3325
    %5519 = vmatpush1.bf16.msra.mxu0 %v3324
    %5520 = vmatprep.subr.bf16.mxu0 %v3319
    %5521 = vmatpush1.bf16.msra.mxu0 %v3318
    %5522 = vmatprep.subr.bf16.mxu0 %v3409
    %5523 = vmatpush2.bf16.msra.mxu0 %v3408
    %5524 = vmatprep.subr.bf16.mxu0 %v3403
    %5525 = vmatpush2.bf16.msra.mxu0 %v3402
    %5526 = vmatprep.subr.bf16.mxu0 %v3397
    %5527 = vmatpush2.bf16.msra.mxu0 %v3396
    %5528 = vmatprep.subr.bf16.mxu0 %v3391
    %5529 = vmatpush2.bf16.msra.mxu0 %v3390
    %5530 = vmatprep.subr.bf16.mxu0 %v3385
    %5531 = vmatpush2.bf16.msra.mxu0 %v3384
    %5532 = vmatprep.subr.bf16.mxu0 %v3379
    %5533 = vmatpush2.bf16.msra.mxu0 %v3378
    %5534 = vmatprep.subr.bf16.mxu0 %v3373
    %5535 = vmatpush2.bf16.msra.mxu0 %v3372
    %5536 = vmatprep.subr.bf16.mxu0 %v3367
    %5537 = vmatpush2.bf16.msra.mxu0 %v3366
    %5538 = vmatprep.mubr.bf16.mxu0 %v979
    %5539 = vmatmul.mubr.bf16.gmra.mxu0 %v978
    %v5540 = vpop.f32.mrf.mxu0
    %v5541 = vadd.f32 %v943, %v5540
    %v5542 = vpop.f32.mrf.mxu0
    %v5543 = vadd.f32 %v947, %v5542
    %v5544 = vpop.f32.mrf.mxu0
    %v5545 = vpop.f32.mrf.mxu0
    %5546 = vdwg.mxu0
    %5547 = vmatprep.subr.bf16.mxu0 %v3457
    %5548 = vmatpush1.bf16.msra.mxu0 %v3456
    %5549 = vmatprep.subr.bf16.mxu0 %v3451
    %5550 = vmatpush1.bf16.msra.mxu0 %v3450
    %5551 = vmatprep.subr.bf16.mxu0 %v3445
    %5552 = vmatpush1.bf16.msra.mxu0 %v3444
    %5553 = vmatprep.subr.bf16.mxu0 %v3439
    %5554 = vmatpush1.bf16.msra.mxu0 %v3438
    %5555 = vmatprep.subr.bf16.mxu0 %v3433
    %5556 = vmatpush1.bf16.msra.mxu0 %v3432
    %5557 = vmatprep.subr.bf16.mxu0 %v3427
    %5558 = vmatpush1.bf16.msra.mxu0 %v3426
    %5559 = vmatprep.subr.bf16.mxu0 %v3421
    %5560 = vmatpush1.bf16.msra.mxu0 %v3420
    %5561 = vmatprep.subr.bf16.mxu0 %v3415
    %5562 = vmatpush1.bf16.msra.mxu0 %v3414
    %5563 = vmatprep.subr.bf16.mxu0 %v3505
    %5564 = vmatpush2.bf16.msra.mxu0 %v3504
    %5565 = vmatprep.subr.bf16.mxu0 %v3499
    %5566 = vmatpush2.bf16.msra.mxu0 %v3498
    %5567 = vmatprep.subr.bf16.mxu0 %v3493
    %5568 = vmatpush2.bf16.msra.mxu0 %v3492
    %5569 = vmatprep.subr.bf16.mxu0 %v3487
    %5570 = vmatpush2.bf16.msra.mxu0 %v3486
    %5571 = vmatprep.subr.bf16.mxu0 %v3481
    %5572 = vmatpush2.bf16.msra.mxu0 %v3480
    %5573 = vmatprep.subr.bf16.mxu0 %v3475
    %5574 = vmatpush2.bf16.msra.mxu0 %v3474
    %5575 = vmatprep.subr.bf16.mxu0 %v3469
    %5576 = vmatpush2.bf16.msra.mxu0 %v3468
    %5577 = vmatprep.subr.bf16.mxu0 %v3463
    %5578 = vmatpush2.bf16.msra.mxu0 %v3462
    %5579 = vmatprep.mubr.bf16.mxu0 %v981
    %5580 = vmatmul.mubr.bf16.gmra.mxu0 %v980
    %v5581 = vpop.f32.mrf.mxu0
    %v5582 = vadd.f32 %v5541, %v5581
    %v5583 = vpop.f32.mrf.mxu0
    %v5584 = vadd.f32 %v5543, %v5583
    %v5585 = vpop.f32.mrf.mxu0
    %v5586 = vpop.f32.mrf.mxu0
    %5587 = vdwg.mxu0
    %5588 = vmatprep.subr.bf16.mxu0 %v3553
    %5589 = vmatpush1.bf16.msra.mxu0 %v3552
    %5590 = vmatprep.subr.bf16.mxu0 %v3547
    %5591 = vmatpush1.bf16.msra.mxu0 %v3546
    %5592 = vmatprep.subr.bf16.mxu0 %v3541
    %5593 = vmatpush1.bf16.msra.mxu0 %v3540
    %5594 = vmatprep.subr.bf16.mxu0 %v3535
    %5595 = vmatpush1.bf16.msra.mxu0 %v3534
    %5596 = vmatprep.subr.bf16.mxu0 %v3529
    %5597 = vmatpush1.bf16.msra.mxu0 %v3528
    %5598 = vmatprep.subr.bf16.mxu0 %v3523
    %5599 = vmatpush1.bf16.msra.mxu0 %v3522
    %5600 = vmatprep.subr.bf16.mxu0 %v3517
    %5601 = vmatpush1.bf16.msra.mxu0 %v3516
    %5602 = vmatprep.subr.bf16.mxu0 %v3511
    %5603 = vmatpush1.bf16.msra.mxu0 %v3510
    %5604 = vmatprep.subr.bf16.mxu0 %v3601
    %5605 = vmatpush2.bf16.msra.mxu0 %v3600
    %5606 = vmatprep.subr.bf16.mxu0 %v3595
    %5607 = vmatpush2.bf16.msra.mxu0 %v3594
    %5608 = vmatprep.subr.bf16.mxu0 %v3589
    %5609 = vmatpush2.bf16.msra.mxu0 %v3588
    %5610 = vmatprep.subr.bf16.mxu0 %v3583
    %5611 = vmatpush2.bf16.msra.mxu0 %v3582
    %5612 = vmatprep.subr.bf16.mxu0 %v3577
    %5613 = vmatpush2.bf16.msra.mxu0 %v3576
    %5614 = vmatprep.subr.bf16.mxu0 %v3571
    %5615 = vmatpush2.bf16.msra.mxu0 %v3570
    %5616 = vmatprep.subr.bf16.mxu0 %v3565
    %5617 = vmatpush2.bf16.msra.mxu0 %v3564
    %5618 = vmatprep.subr.bf16.mxu0 %v3559
    %5619 = vmatpush2.bf16.msra.mxu0 %v3558
    %5620 = vmatprep.mubr.bf16.mxu0 %v983
    %5621 = vmatmul.mubr.bf16.gmra.mxu0 %v982
    %v5622 = vpop.f32.mrf.mxu0
    %v5623 = vadd.f32 %v5582, %v5622
    %v5624 = vpop.f32.mrf.mxu0
    %v5625 = vadd.f32 %v5584, %v5624
    %v5626 = vpop.f32.mrf.mxu0
    %v5627 = vpop.f32.mrf.mxu0
    %5628 = vdwg.mxu0
    %5629 = vmatprep.subr.bf16.mxu0 %v3649
    %5630 = vmatpush1.bf16.msra.mxu0 %v3648
    %5631 = vmatprep.subr.bf16.mxu0 %v3643
    %5632 = vmatpush1.bf16.msra.mxu0 %v3642
    %5633 = vmatprep.subr.bf16.mxu0 %v3637
    %5634 = vmatpush1.bf16.msra.mxu0 %v3636
    %5635 = vmatprep.subr.bf16.mxu0 %v3631
    %5636 = vmatpush1.bf16.msra.mxu0 %v3630
    %5637 = vmatprep.subr.bf16.mxu0 %v3625
    %5638 = vmatpush1.bf16.msra.mxu0 %v3624
    %5639 = vmatprep.subr.bf16.mxu0 %v3619
    %5640 = vmatpush1.bf16.msra.mxu0 %v3618
    %5641 = vmatprep.subr.bf16.mxu0 %v3613
    %5642 = vmatpush1.bf16.msra.mxu0 %v3612
    %5643 = vmatprep.subr.bf16.mxu0 %v3607
    %5644 = vmatpush1.bf16.msra.mxu0 %v3606
    %5645 = vmatprep.subr.bf16.mxu0 %v3697
    %5646 = vmatpush2.bf16.msra.mxu0 %v3696
    %5647 = vmatprep.subr.bf16.mxu0 %v3691
    %5648 = vmatpush2.bf16.msra.mxu0 %v3690
    %5649 = vmatprep.subr.bf16.mxu0 %v3685
    %5650 = vmatpush2.bf16.msra.mxu0 %v3684
    %5651 = vmatprep.subr.bf16.mxu0 %v3679
    %5652 = vmatpush2.bf16.msra.mxu0 %v3678
    %5653 = vmatprep.subr.bf16.mxu0 %v3673
    %5654 = vmatpush2.bf16.msra.mxu0 %v3672
    %5655 = vmatprep.subr.bf16.mxu0 %v3667
    %5656 = vmatpush2.bf16.msra.mxu0 %v3666
    %5657 = vmatprep.subr.bf16.mxu0 %v3661
    %5658 = vmatpush2.bf16.msra.mxu0 %v3660
    %5659 = vmatprep.subr.bf16.mxu0 %v3655
    %5660 = vmatpush2.bf16.msra.mxu0 %v3654
    %5661 = vmatprep.mubr.bf16.mxu0 %v985
    %5662 = vmatmul.mubr.bf16.gmra.mxu0 %v984
    %v5663 = vpop.f32.mrf.mxu0
    %v5664 = vadd.f32 %v5623, %v5663
    %v5665 = vpop.f32.mrf.mxu0
    %v5666 = vadd.f32 %v5625, %v5665
    %v5667 = vpop.f32.mrf.mxu0
    %v5668 = vpop.f32.mrf.mxu0
    %5669 = vdwg.mxu0
    %5670 = vmatprep.subr.bf16.mxu0 %v3745
    %5671 = vmatpush1.bf16.msra.mxu0 %v3744
    %5672 = vmatprep.subr.bf16.mxu0 %v3739
    %5673 = vmatpush1.bf16.msra.mxu0 %v3738
    %5674 = vmatprep.subr.bf16.mxu0 %v3733
    %5675 = vmatpush1.bf16.msra.mxu0 %v3732
    %5676 = vmatprep.subr.bf16.mxu0 %v3727
    %5677 = vmatpush1.bf16.msra.mxu0 %v3726
    %5678 = vmatprep.subr.bf16.mxu0 %v3721
    %5679 = vmatpush1.bf16.msra.mxu0 %v3720
    %5680 = vmatprep.subr.bf16.mxu0 %v3715
    %5681 = vmatpush1.bf16.msra.mxu0 %v3714
    %5682 = vmatprep.subr.bf16.mxu0 %v3709
    %5683 = vmatpush1.bf16.msra.mxu0 %v3708
    %5684 = vmatprep.subr.bf16.mxu0 %v3703
    %5685 = vmatpush1.bf16.msra.mxu0 %v3702
    %5686 = vmatprep.subr.bf16.mxu0 %v3793
    %5687 = vmatpush2.bf16.msra.mxu0 %v3792
    %5688 = vmatprep.subr.bf16.mxu0 %v3787
    %5689 = vmatpush2.bf16.msra.mxu0 %v3786
    %5690 = vmatprep.subr.bf16.mxu0 %v3781
    %5691 = vmatpush2.bf16.msra.mxu0 %v3780
    %5692 = vmatprep.subr.bf16.mxu0 %v3775
    %5693 = vmatpush2.bf16.msra.mxu0 %v3774
    %5694 = vmatprep.subr.bf16.mxu0 %v3769
    %5695 = vmatpush2.bf16.msra.mxu0 %v3768
    %5696 = vmatprep.subr.bf16.mxu0 %v3763
    %5697 = vmatpush2.bf16.msra.mxu0 %v3762
    %5698 = vmatprep.subr.bf16.mxu0 %v3757
    %5699 = vmatpush2.bf16.msra.mxu0 %v3756
    %5700 = vmatprep.subr.bf16.mxu0 %v3751
    %5701 = vmatpush2.bf16.msra.mxu0 %v3750
    %5702 = vmatprep.mubr.bf16.mxu0 %v987
    %5703 = vmatmul.mubr.bf16.gmra.mxu0 %v986
    %v5704 = vpop.f32.mrf.mxu0
    %v5705 = vadd.f32 %v5664, %v5704
    %v5706 = vpop.f32.mrf.mxu0
    %v5707 = vadd.f32 %v5666, %v5706
    %v5708 = vpop.f32.mrf.mxu0
    %v5709 = vpop.f32.mrf.mxu0
    %5710 = vdwg.mxu0
    %5711 = vmatprep.subr.bf16.mxu0 %v3841
    %5712 = vmatpush1.bf16.msra.mxu0 %v3840
    %5713 = vmatprep.subr.bf16.mxu0 %v3835
    %5714 = vmatpush1.bf16.msra.mxu0 %v3834
    %5715 = vmatprep.subr.bf16.mxu0 %v3829
    %5716 = vmatpush1.bf16.msra.mxu0 %v3828
    %5717 = vmatprep.subr.bf16.mxu0 %v3823
    %5718 = vmatpush1.bf16.msra.mxu0 %v3822
    %5719 = vmatprep.subr.bf16.mxu0 %v3817
    %5720 = vmatpush1.bf16.msra.mxu0 %v3816
    %5721 = vmatprep.subr.bf16.mxu0 %v3811
    %5722 = vmatpush1.bf16.msra.mxu0 %v3810
    %5723 = vmatprep.subr.bf16.mxu0 %v3805
    %5724 = vmatpush1.bf16.msra.mxu0 %v3804
    %5725 = vmatprep.subr.bf16.mxu0 %v3799
    %5726 = vmatpush1.bf16.msra.mxu0 %v3798
    %5727 = vmatprep.subr.bf16.mxu0 %v3889
    %5728 = vmatpush2.bf16.msra.mxu0 %v3888
    %5729 = vmatprep.subr.bf16.mxu0 %v3883
    %5730 = vmatpush2.bf16.msra.mxu0 %v3882
    %5731 = vmatprep.subr.bf16.mxu0 %v3877
    %5732 = vmatpush2.bf16.msra.mxu0 %v3876
    %5733 = vmatprep.subr.bf16.mxu0 %v3871
    %5734 = vmatpush2.bf16.msra.mxu0 %v3870
    %5735 = vmatprep.subr.bf16.mxu0 %v3865
    %5736 = vmatpush2.bf16.msra.mxu0 %v3864
    %5737 = vmatprep.subr.bf16.mxu0 %v3859
    %5738 = vmatpush2.bf16.msra.mxu0 %v3858
    %5739 = vmatprep.subr.bf16.mxu0 %v3853
    %5740 = vmatpush2.bf16.msra.mxu0 %v3852
    %5741 = vmatprep.subr.bf16.mxu0 %v3847
    %5742 = vmatpush2.bf16.msra.mxu0 %v3846
    %5743 = vmatprep.mubr.bf16.mxu0 %v989
    %5744 = vmatmul.mubr.bf16.gmra.mxu0 %v988
    %v5745 = vpop.f32.mrf.mxu0
    %v5746 = vadd.f32 %v5705, %v5745
    %v5747 = vpop.f32.mrf.mxu0
    %v5748 = vadd.f32 %v5707, %v5747
    %v5749 = vpop.f32.mrf.mxu0
    %v5750 = vpop.f32.mrf.mxu0
    %5751 = vdwg.mxu0
    %5752 = vmatprep.subr.bf16.mxu0 %v3937
    %5753 = vmatpush1.bf16.msra.mxu0 %v3936
    %5754 = vmatprep.subr.bf16.mxu0 %v3931
    %5755 = vmatpush1.bf16.msra.mxu0 %v3930
    %5756 = vmatprep.subr.bf16.mxu0 %v3925
    %5757 = vmatpush1.bf16.msra.mxu0 %v3924
    %5758 = vmatprep.subr.bf16.mxu0 %v3919
    %5759 = vmatpush1.bf16.msra.mxu0 %v3918
    %5760 = vmatprep.subr.bf16.mxu0 %v3913
    %5761 = vmatpush1.bf16.msra.mxu0 %v3912
    %5762 = vmatprep.subr.bf16.mxu0 %v3907
    %5763 = vmatpush1.bf16.msra.mxu0 %v3906
    %5764 = vmatprep.subr.bf16.mxu0 %v3901
    %5765 = vmatpush1.bf16.msra.mxu0 %v3900
    %5766 = vmatprep.subr.bf16.mxu0 %v3895
    %5767 = vmatpush1.bf16.msra.mxu0 %v3894
    %5768 = vmatprep.subr.bf16.mxu0 %v3985
    %5769 = vmatpush2.bf16.msra.mxu0 %v3984
    %5770 = vmatprep.subr.bf16.mxu0 %v3979
    %5771 = vmatpush2.bf16.msra.mxu0 %v3978
    %5772 = vmatprep.subr.bf16.mxu0 %v3973
    %5773 = vmatpush2.bf16.msra.mxu0 %v3972
    %5774 = vmatprep.subr.bf16.mxu0 %v3967
    %5775 = vmatpush2.bf16.msra.mxu0 %v3966
    %5776 = vmatprep.subr.bf16.mxu0 %v3961
    %5777 = vmatpush2.bf16.msra.mxu0 %v3960
    %5778 = vmatprep.subr.bf16.mxu0 %v3955
    %5779 = vmatpush2.bf16.msra.mxu0 %v3954
    %5780 = vmatprep.subr.bf16.mxu0 %v3949
    %5781 = vmatpush2.bf16.msra.mxu0 %v3948
    %5782 = vmatprep.subr.bf16.mxu0 %v3943
    %5783 = vmatpush2.bf16.msra.mxu0 %v3942
    %5784 = vmatprep.mubr.bf16.mxu0 %v991
    %5785 = vmatmul.mubr.bf16.gmra.mxu0 %v990
    %v5786 = vpop.f32.mrf.mxu0
    %v5787 = vadd.f32 %v5746, %v5786
    %v5788 = vpop.f32.mrf.mxu0
    %v5789 = vadd.f32 %v5748, %v5788
    %v5790 = vpop.f32.mrf.mxu0
    %v5791 = vpop.f32.mrf.mxu0
    %5792 = vdwg.mxu0
    %5793 = vmatprep.subr.bf16.mxu0 %v4033
    %5794 = vmatpush1.bf16.msra.mxu0 %v4032
    %5795 = vmatprep.subr.bf16.mxu0 %v4027
    %5796 = vmatpush1.bf16.msra.mxu0 %v4026
    %5797 = vmatprep.subr.bf16.mxu0 %v4021
    %5798 = vmatpush1.bf16.msra.mxu0 %v4020
    %5799 = vmatprep.subr.bf16.mxu0 %v4015
    %5800 = vmatpush1.bf16.msra.mxu0 %v4014
    %5801 = vmatprep.subr.bf16.mxu0 %v4009
    %5802 = vmatpush1.bf16.msra.mxu0 %v4008
    %5803 = vmatprep.subr.bf16.mxu0 %v4003
    %5804 = vmatpush1.bf16.msra.mxu0 %v4002
    %5805 = vmatprep.subr.bf16.mxu0 %v3997
    %5806 = vmatpush1.bf16.msra.mxu0 %v3996
    %5807 = vmatprep.subr.bf16.mxu0 %v3991
    %5808 = vmatpush1.bf16.msra.mxu0 %v3990
    %5809 = vmatprep.subr.bf16.mxu0 %v4081
    %5810 = vmatpush2.bf16.msra.mxu0 %v4080
    %5811 = vmatprep.subr.bf16.mxu0 %v4075
    %5812 = vmatpush2.bf16.msra.mxu0 %v4074
    %5813 = vmatprep.subr.bf16.mxu0 %v4069
    %5814 = vmatpush2.bf16.msra.mxu0 %v4068
    %5815 = vmatprep.subr.bf16.mxu0 %v4063
    %5816 = vmatpush2.bf16.msra.mxu0 %v4062
    %5817 = vmatprep.subr.bf16.mxu0 %v4057
    %5818 = vmatpush2.bf16.msra.mxu0 %v4056
    %5819 = vmatprep.subr.bf16.mxu0 %v4051
    %5820 = vmatpush2.bf16.msra.mxu0 %v4050
    %5821 = vmatprep.subr.bf16.mxu0 %v4045
    %5822 = vmatpush2.bf16.msra.mxu0 %v4044
    %5823 = vmatprep.subr.bf16.mxu0 %v4039
    %5824 = vmatpush2.bf16.msra.mxu0 %v4038
    %5825 = vmatprep.mubr.bf16.mxu0 %v993
    %5826 = vmatmul.mubr.bf16.gmra.mxu0 %v992
    %v5827 = vpop.f32.mrf.mxu0
    %v5828 = vadd.f32 %v5787, %v5827
    %v5829 = vpop.f32.mrf.mxu0
    %v5830 = vadd.f32 %v5789, %v5829
    %v5831 = vpop.f32.mrf.mxu0
    %v5832 = vpop.f32.mrf.mxu0
    %5833 = vdwg.mxu0
    %v5834 = vmax.f32 %v5172, 0.0
    %v5835 = vmax.f32 %v5174, 0.0
    %v5836 = vmax.f32 %v5500, 0.0
    %v5837 = vmax.f32 %v5502, 0.0
    %v5838 = vmax.f32 %v5828, 0.0
    %v5839 = vmax.f32 %v5830, 0.0
    %v5840 = vpack.c.bf16 %v5834, %v5834
    %v5841 = vpack.c.bf16 %v5835, %v5835
    %v5842 = vpack.c.bf16 %v5836, %v5836
    %v5843 = vpack.c.bf16 %v5837, %v5837
    %v5844 = vpack.c.bf16 %v5838, %v5838
    %v5845 = vpack.c.bf16 %v5839, %v5839
    %v5846 = vld [vmem:[#allocation8] sm:$0xf]
    %v5847 = vld [vmem:[#allocation8 + $0x4] sm:$0xf]
    %v5848 = vld [vmem:[#allocation8 + $0x8] sm:$0xf]
    %v5849 = vld [vmem:[#allocation8 + $0xc] sm:$0xf]
    %v5850 = vld [vmem:[#allocation8 + $0x10] sm:$0xf]
    %v5851 = vld [vmem:[#allocation8 + $0x14] sm:$0xf]
    %v5852 = vld [vmem:[#allocation8 + $0x18] sm:$0xf]
    %v5853 = vld [vmem:[#allocation8 + $0x1c] sm:$0xf]
    %v5854 = vld [vmem:[#allocation8 + $0x20] sm:$0xf]
    %v5855 = vld [vmem:[#allocation8 + $0x24] sm:$0xf]
    %v5856 = vld [vmem:[#allocation8 + $0x28] sm:$0xf]
    %v5857 = vld [vmem:[#allocation8 + $0x2c] sm:$0xf]
    %v5858 = vld [vmem:[#allocation8 + $0x30] sm:$0xf]
    %v5859 = vld [vmem:[#allocation8 + $0x34] sm:$0xf]
    %v5860 = vld [vmem:[#allocation8 + $0x38] sm:$0xf]
    %v5861 = vld [vmem:[#allocation8 + $0x3c] sm:$0xf]
    %v5862 = vld [vmem:[#allocation8 + $0x40] sm:$0xf]
    %v5863 = vld [vmem:[#allocation8 + $0x44] sm:$0xf]
    %v5864 = vld [vmem:[#allocation8 + $0x48] sm:$0xf]
    %v5865 = vld [vmem:[#allocation8 + $0x4c] sm:$0xf]
    %v5866 = vld [vmem:[#allocation8 + $0x50] sm:$0xf]
    %v5867 = vld [vmem:[#allocation8 + $0x54] sm:$0xf]
    %v5868 = vld [vmem:[#allocation8 + $0x58] sm:$0xf]
    %v5869 = vld [vmem:[#allocation8 + $0x5c] sm:$0xf]
    %v5870 = vld [vmem:[#allocation8 + $0x60] sm:$0xf]
    %v5871 = vld [vmem:[#allocation8 + $0x64] sm:$0xf]
    %v5872 = vld [vmem:[#allocation8 + $0x68] sm:$0xf]
    %v5873 = vld [vmem:[#allocation8 + $0x6c] sm:$0xf]
    %v5874 = vld [vmem:[#allocation8 + $0x70] sm:$0xf]
    %v5875 = vld [vmem:[#allocation8 + $0x74] sm:$0xf]
    %v5876 = vld [vmem:[#allocation8 + $0x78] sm:$0xf]
    %v5877 = vld [vmem:[#allocation8 + $0x7c] sm:$0xf]
    %v5878 = vld [vmem:[#allocation8 + $0x80] sm:$0xf]
    %v5879 = vld [vmem:[#allocation8 + $0x84] sm:$0xf]
    %v5880 = vld [vmem:[#allocation8 + $0x88] sm:$0xf]
    %v5881 = vld [vmem:[#allocation8 + $0x8c] sm:$0xf]
    %v5882 = vld [vmem:[#allocation8 + $0x90] sm:$0xf]
    %v5883 = vld [vmem:[#allocation8 + $0x94] sm:$0xf]
    %v5884 = vld [vmem:[#allocation8 + $0x98] sm:$0xf]
    %v5885 = vld [vmem:[#allocation8 + $0x9c] sm:$0xf]
    %v5886 = vld [vmem:[#allocation8 + $0xa0] sm:$0xf]
    %v5887 = vld [vmem:[#allocation8 + $0xa4] sm:$0xf]
    %v5888 = vld [vmem:[#allocation8 + $0xa8] sm:$0xf]
    %v5889 = vld [vmem:[#allocation8 + $0xac] sm:$0xf]
    %v5890 = vld [vmem:[#allocation8 + $0xb0] sm:$0xf]
    %v5891 = vld [vmem:[#allocation8 + $0xb4] sm:$0xf]
    %v5892 = vld [vmem:[#allocation8 + $0xb8] sm:$0xf]
    %v5893 = vld [vmem:[#allocation8 + $0xbc] sm:$0xf]
    %v5894 = vld [vmem:[#allocation8 + $0xc0] sm:$0xf]
    %v5895 = vld [vmem:[#allocation8 + $0xc4] sm:$0xf]
    %v5896 = vld [vmem:[#allocation8 + $0xc8] sm:$0xf]
    %v5897 = vld [vmem:[#allocation8 + $0xcc] sm:$0xf]
    %v5898 = vld [vmem:[#allocation8 + $0xd0] sm:$0xf]
    %v5899 = vld [vmem:[#allocation8 + $0xd4] sm:$0xf]
    %v5900 = vld [vmem:[#allocation8 + $0xd8] sm:$0xf]
    %v5901 = vld [vmem:[#allocation8 + $0xdc] sm:$0xf]
    %v5902 = vld [vmem:[#allocation8 + $0xe0] sm:$0xf]
    %v5903 = vld [vmem:[#allocation8 + $0xe4] sm:$0xf]
    %v5904 = vld [vmem:[#allocation8 + $0xe8] sm:$0xf]
    %v5905 = vld [vmem:[#allocation8 + $0xec] sm:$0xf]
    %v5906 = vld [vmem:[#allocation8 + $0xf0] sm:$0xf]
    %v5907 = vld [vmem:[#allocation8 + $0xf4] sm:$0xf]
    %v5908 = vld [vmem:[#allocation8 + $0xf8] sm:$0xf]
    %v5909 = vld [vmem:[#allocation8 + $0xfc] sm:$0xf]
    %v5910 = vld [vmem:[#allocation8 + $0x100] sm:$0xf]
    %v5911 = vld [vmem:[#allocation8 + $0x104] sm:$0xf]
    %v5912 = vld [vmem:[#allocation8 + $0x108] sm:$0xf]
    %v5913 = vld [vmem:[#allocation8 + $0x10c] sm:$0xf]
    %v5914 = vld [vmem:[#allocation8 + $0x110] sm:$0xf]
    %v5915 = vld [vmem:[#allocation8 + $0x114] sm:$0xf]
    %v5916 = vld [vmem:[#allocation8 + $0x118] sm:$0xf]
    %v5917 = vld [vmem:[#allocation8 + $0x11c] sm:$0xf]
    %v5918 = vld [vmem:[#allocation8 + $0x120] sm:$0xf]
    %v5919 = vld [vmem:[#allocation8 + $0x124] sm:$0xf]
    %v5920 = vld [vmem:[#allocation8 + $0x128] sm:$0xf]
    %v5921 = vld [vmem:[#allocation8 + $0x12c] sm:$0xf]
    %v5922 = vld [vmem:[#allocation8 + $0x130] sm:$0xf]
    %v5923 = vld [vmem:[#allocation8 + $0x134] sm:$0xf]
    %v5924 = vld [vmem:[#allocation8 + $0x138] sm:$0xf]
    %v5925 = vld [vmem:[#allocation8 + $0x13c] sm:$0xf]
    %v5926 = vld [vmem:[#allocation8 + $0x140] sm:$0xf]
    %v5927 = vld [vmem:[#allocation8 + $0x144] sm:$0xf]
    %v5928 = vld [vmem:[#allocation8 + $0x148] sm:$0xf]
    %v5929 = vld [vmem:[#allocation8 + $0x14c] sm:$0xf]
    %v5930 = vld [vmem:[#allocation8 + $0x150] sm:$0xf]
    %v5931 = vld [vmem:[#allocation8 + $0x154] sm:$0xf]
    %v5932 = vld [vmem:[#allocation8 + $0x158] sm:$0xf]
    %v5933 = vld [vmem:[#allocation8 + $0x15c] sm:$0xf]
    %v5934 = vld [vmem:[#allocation8 + $0x160] sm:$0xf]
    %v5935 = vld [vmem:[#allocation8 + $0x164] sm:$0xf]
    %v5936 = vld [vmem:[#allocation8 + $0x168] sm:$0xf]
    %v5937 = vld [vmem:[#allocation8 + $0x16c] sm:$0xf]
    %v5938 = vld [vmem:[#allocation8 + $0x170] sm:$0xf]
    %v5939 = vld [vmem:[#allocation8 + $0x174] sm:$0xf]
    %v5940 = vld [vmem:[#allocation8 + $0x178] sm:$0xf]
    %v5941 = vld [vmem:[#allocation8 + $0x17c] sm:$0xf]
    %v5942 = vld [vmem:[#allocation10] sm:$0x1]
    %v5944 = vlaneseq
    %v5945 = vshrl.u32 %v5944, 7
    %v5946 = vsub.s32 0, %v5945
    %v5947 = vrot.slane %v5942, %v5946
    %v6045 = vunpack.c.l.b16 %v5846
    %v6046 = vunpack.c.l.b16 %v5847
    %v6047 = vunpack.c.l.b16 %v5848
    %v6048 = vunpack.c.l.b16 %v5849
    %v6049 = vunpack.c.l.b16 %v5850
    %v6050 = vunpack.c.l.b16 %v5851
    %v6051 = vunpack.c.l.b16 %v5852
    %v6052 = vunpack.c.l.b16 %v5853
    %v6053 = vunpack.c.l.b16 %v5854
    %v6054 = vunpack.c.l.b16 %v5855
    %v6055 = vunpack.c.l.b16 %v5856
    %v6056 = vunpack.c.l.b16 %v5857
    %v6057 = vunpack.c.l.b16 %v5858
    %v6058 = vunpack.c.l.b16 %v5859
    %v6059 = vunpack.c.l.b16 %v5860
    %v6060 = vunpack.c.l.b16 %v5861
    %v6061 = vunpack.c.l.b16 %v5862
    %v6062 = vunpack.c.l.b16 %v5863
    %v6063 = vunpack.c.l.b16 %v5864
    %v6064 = vunpack.c.l.b16 %v5865
    %v6065 = vunpack.c.l.b16 %v5866
    %v6066 = vunpack.c.l.b16 %v5867
    %v6067 = vunpack.c.l.b16 %v5868
    %v6068 = vunpack.c.l.b16 %v5869
    %v6069 = vunpack.c.l.b16 %v5870
    %v6070 = vunpack.c.l.b16 %v5871
    %v6071 = vunpack.c.l.b16 %v5872
    %v6072 = vunpack.c.l.b16 %v5873
    %v6073 = vunpack.c.l.b16 %v5874
    %v6074 = vunpack.c.l.b16 %v5875
    %v6075 = vunpack.c.l.b16 %v5876
    %v6076 = vunpack.c.l.b16 %v5877
    %v6077 = vunpack.c.l.b16 %v5878
    %v6078 = vunpack.c.l.b16 %v5879
    %v6079 = vunpack.c.l.b16 %v5880
    %v6080 = vunpack.c.l.b16 %v5881
    %v6081 = vunpack.c.l.b16 %v5882
    %v6082 = vunpack.c.l.b16 %v5883
    %v6083 = vunpack.c.l.b16 %v5884
    %v6084 = vunpack.c.l.b16 %v5885
    %v6085 = vunpack.c.l.b16 %v5886
    %v6086 = vunpack.c.l.b16 %v5887
    %v6087 = vunpack.c.l.b16 %v5888
    %v6088 = vunpack.c.l.b16 %v5889
    %v6089 = vunpack.c.l.b16 %v5890
    %v6090 = vunpack.c.l.b16 %v5891
    %v6091 = vunpack.c.l.b16 %v5892
    %v6092 = vunpack.c.l.b16 %v5893
    %v6093 = vunpack.c.l.b16 %v5894
    %v6094 = vunpack.c.l.b16 %v5895
    %v6095 = vunpack.c.l.b16 %v5896
    %v6096 = vunpack.c.l.b16 %v5897
    %v6097 = vunpack.c.l.b16 %v5898
    %v6098 = vunpack.c.l.b16 %v5899
    %v6099 = vunpack.c.l.b16 %v5900
    %v6100 = vunpack.c.l.b16 %v5901
    %v6101 = vunpack.c.l.b16 %v5902
    %v6102 = vunpack.c.l.b16 %v5903
    %v6103 = vunpack.c.l.b16 %v5904
    %v6104 = vunpack.c.l.b16 %v5905
    %v6105 = vunpack.c.l.b16 %v5906
    %v6106 = vunpack.c.l.b16 %v5907
    %v6107 = vunpack.c.l.b16 %v5908
    %v6108 = vunpack.c.l.b16 %v5909
    %v6109 = vunpack.c.l.b16 %v5910
    %v6110 = vunpack.c.l.b16 %v5911
    %v6111 = vunpack.c.l.b16 %v5912
    %v6112 = vunpack.c.l.b16 %v5913
    %v6113 = vunpack.c.l.b16 %v5914
    %v6114 = vunpack.c.l.b16 %v5915
    %v6115 = vunpack.c.l.b16 %v5916
    %v6116 = vunpack.c.l.b16 %v5917
    %v6117 = vunpack.c.l.b16 %v5918
    %v6118 = vunpack.c.l.b16 %v5919
    %v6119 = vunpack.c.l.b16 %v5920
    %v6120 = vunpack.c.l.b16 %v5921
    %v6121 = vunpack.c.l.b16 %v5922
    %v6122 = vunpack.c.l.b16 %v5923
    %v6123 = vunpack.c.l.b16 %v5924
    %v6124 = vunpack.c.l.b16 %v5925
    %v6125 = vunpack.c.l.b16 %v5926
    %v6126 = vunpack.c.l.b16 %v5927
    %v6127 = vunpack.c.l.b16 %v5928
    %v6128 = vunpack.c.l.b16 %v5929
    %v6129 = vunpack.c.l.b16 %v5930
    %v6130 = vunpack.c.l.b16 %v5931
    %v6131 = vunpack.c.l.b16 %v5932
    %v6132 = vunpack.c.l.b16 %v5933
    %v6133 = vunpack.c.l.b16 %v5934
    %v6134 = vunpack.c.l.b16 %v5935
    %v6135 = vunpack.c.l.b16 %v5936
    %v6136 = vunpack.c.l.b16 %v5937
    %v6137 = vunpack.c.l.b16 %v5938
    %v6138 = vunpack.c.l.b16 %v5939
    %v6139 = vunpack.c.l.b16 %v5940
    %v6140 = vunpack.c.l.b16 %v5941
    %v6141 = vpack.c.b16 %v6046, %v6045
    %v6142 = vpack.c.b16 %v6048, %v6047
    %v6143 = vpack.c.b16 %v6050, %v6049
    %v6144 = vpack.c.b16 %v6052, %v6051
    %v6145 = vpack.c.b16 %v6054, %v6053
    %v6146 = vpack.c.b16 %v6056, %v6055
    %v6147 = vpack.c.b16 %v6058, %v6057
    %v6148 = vpack.c.b16 %v6060, %v6059
    %v6149 = vpack.c.b16 %v6062, %v6061
    %v6150 = vpack.c.b16 %v6064, %v6063
    %v6151 = vpack.c.b16 %v6066, %v6065
    %v6152 = vpack.c.b16 %v6068, %v6067
    %v6153 = vpack.c.b16 %v6070, %v6069
    %v6154 = vpack.c.b16 %v6072, %v6071
    %v6155 = vpack.c.b16 %v6074, %v6073
    %v6156 = vpack.c.b16 %v6076, %v6075
    %v6157 = vpack.c.b16 %v6078, %v6077
    %v6158 = vpack.c.b16 %v6080, %v6079
    %v6159 = vpack.c.b16 %v6082, %v6081
    %v6160 = vpack.c.b16 %v6084, %v6083
    %v6161 = vpack.c.b16 %v6086, %v6085
    %v6162 = vpack.c.b16 %v6088, %v6087
    %v6163 = vpack.c.b16 %v6090, %v6089
    %v6164 = vpack.c.b16 %v6092, %v6091
    %v6165 = vpack.c.b16 %v6094, %v6093
    %v6166 = vpack.c.b16 %v6096, %v6095
    %v6167 = vpack.c.b16 %v6098, %v6097
    %v6168 = vpack.c.b16 %v6100, %v6099
    %v6169 = vpack.c.b16 %v6102, %v6101
    %v6170 = vpack.c.b16 %v6104, %v6103
    %v6171 = vpack.c.b16 %v6106, %v6105
    %v6172 = vpack.c.b16 %v6108, %v6107
    %v6173 = vpack.c.b16 %v6110, %v6109
    %v6174 = vpack.c.b16 %v6112, %v6111
    %v6175 = vpack.c.b16 %v6114, %v6113
    %v6176 = vpack.c.b16 %v6116, %v6115
    %v6177 = vpack.c.b16 %v6118, %v6117
    %v6178 = vpack.c.b16 %v6120, %v6119
    %v6179 = vpack.c.b16 %v6122, %v6121
    %v6180 = vpack.c.b16 %v6124, %v6123
    %v6181 = vpack.c.b16 %v6126, %v6125
    %v6182 = vpack.c.b16 %v6128, %v6127
    %v6183 = vpack.c.b16 %v6130, %v6129
    %v6184 = vpack.c.b16 %v6132, %v6131
    %v6185 = vpack.c.b16 %v6134, %v6133
    %v6186 = vpack.c.b16 %v6136, %v6135
    %v6187 = vpack.c.b16 %v6138, %v6137
    %v6188 = vpack.c.b16 %v6140, %v6139
    %6237 = vmatprep.subr.bf16.mxu0 0
    %6238 = vmatpush1.bf16.msra.mxu0 %v6148
    %6239 = vmatprep.subr.bf16.mxu0 0
    %6240 = vmatpush1.bf16.msra.mxu0 %v6147
    %6241 = vmatprep.subr.bf16.mxu0 0
    %6242 = vmatpush1.bf16.msra.mxu0 %v6146
    %6243 = vmatprep.subr.bf16.mxu0 0
    %6244 = vmatpush1.bf16.msra.mxu0 %v6145
    %6245 = vmatprep.subr.bf16.mxu0 0
    %6246 = vmatpush1.bf16.msra.mxu0 %v6144
    %6247 = vmatprep.subr.bf16.mxu0 0
    %6248 = vmatpush1.bf16.msra.mxu0 %v6143
    %6249 = vmatprep.subr.bf16.mxu0 0
    %6250 = vmatpush1.bf16.msra.mxu0 %v6142
    %6251 = vmatprep.subr.bf16.mxu0 0
    %6252 = vmatpush1.bf16.msra.mxu0 %v6141
    %6253 = vmatprep.subr.bf16.mxu0 0
    %6254 = vmatpush2.bf16.msra.mxu0 %v6156
    %6255 = vmatprep.subr.bf16.mxu0 0
    %6256 = vmatpush2.bf16.msra.mxu0 %v6155
    %6257 = vmatprep.subr.bf16.mxu0 0
    %6258 = vmatpush2.bf16.msra.mxu0 %v6154
    %6259 = vmatprep.subr.bf16.mxu0 0
    %6260 = vmatpush2.bf16.msra.mxu0 %v6153
    %6261 = vmatprep.subr.bf16.mxu0 0
    %6262 = vmatpush2.bf16.msra.mxu0 %v6152
    %6263 = vmatprep.subr.bf16.mxu0 0
    %6264 = vmatpush2.bf16.msra.mxu0 %v6151
    %6265 = vmatprep.subr.bf16.mxu0 0
    %6266 = vmatpush2.bf16.msra.mxu0 %v6150
    %6267 = vmatprep.subr.bf16.mxu0 0
    %6268 = vmatpush2.bf16.msra.mxu0 %v6149
    %6269 = vmatprep.mubr.bf16.mxu0 %v5841
    %6270 = vmatmul.mubr.bf16.gmra.mxu0 %v5840
    %v6271 = vpop.f32.mrf.mxu0
    %v6272 = vadd.f32 %v5947, %v6271
    %v6273 = vpop.f32.mrf.mxu0
    %v6274 = vpop.f32.mrf.mxu0
    %v6275 = vpop.f32.mrf.mxu0
    %6276 = vdwg.mxu0
    %6277 = vmatprep.subr.bf16.mxu0 0
    %6278 = vmatpush1.bf16.msra.mxu0 %v6164
    %6279 = vmatprep.subr.bf16.mxu0 0
    %6280 = vmatpush1.bf16.msra.mxu0 %v6163
    %6281 = vmatprep.subr.bf16.mxu0 0
    %6282 = vmatpush1.bf16.msra.mxu0 %v6162
    %6283 = vmatprep.subr.bf16.mxu0 0
    %6284 = vmatpush1.bf16.msra.mxu0 %v6161
    %6285 = vmatprep.subr.bf16.mxu0 0
    %6286 = vmatpush1.bf16.msra.mxu0 %v6160
    %6287 = vmatprep.subr.bf16.mxu0 0
    %6288 = vmatpush1.bf16.msra.mxu0 %v6159
    %6289 = vmatprep.subr.bf16.mxu0 0
    %6290 = vmatpush1.bf16.msra.mxu0 %v6158
    %6291 = vmatprep.subr.bf16.mxu0 0
    %6292 = vmatpush1.bf16.msra.mxu0 %v6157
    %6293 = vmatprep.subr.bf16.mxu0 0
    %6294 = vmatpush2.bf16.msra.mxu0 %v6172
    %6295 = vmatprep.subr.bf16.mxu0 0
    %6296 = vmatpush2.bf16.msra.mxu0 %v6171
    %6297 = vmatprep.subr.bf16.mxu0 0
    %6298 = vmatpush2.bf16.msra.mxu0 %v6170
    %6299 = vmatprep.subr.bf16.mxu0 0
    %6300 = vmatpush2.bf16.msra.mxu0 %v6169
    %6301 = vmatprep.subr.bf16.mxu0 0
    %6302 = vmatpush2.bf16.msra.mxu0 %v6168
    %6303 = vmatprep.subr.bf16.mxu0 0
    %6304 = vmatpush2.bf16.msra.mxu0 %v6167
    %6305 = vmatprep.subr.bf16.mxu0 0
    %6306 = vmatpush2.bf16.msra.mxu0 %v6166
    %6307 = vmatprep.subr.bf16.mxu0 0
    %6308 = vmatpush2.bf16.msra.mxu0 %v6165
    %6309 = vmatprep.mubr.bf16.mxu0 %v5843
    %6310 = vmatmul.mubr.bf16.gmra.mxu0 %v5842
    %v6311 = vpop.f32.mrf.mxu0
    %v6312 = vadd.f32 %v6272, %v6311
    %v6313 = vpop.f32.mrf.mxu0
    %v6314 = vpop.f32.mrf.mxu0
    %v6315 = vpop.f32.mrf.mxu0
    %6316 = vdwg.mxu0
    %6317 = vmatprep.subr.bf16.mxu0 0
    %6318 = vmatpush1.bf16.msra.mxu0 %v6180
    %6319 = vmatprep.subr.bf16.mxu0 0
    %6320 = vmatpush1.bf16.msra.mxu0 %v6179
    %6321 = vmatprep.subr.bf16.mxu0 0
    %6322 = vmatpush1.bf16.msra.mxu0 %v6178
    %6323 = vmatprep.subr.bf16.mxu0 0
    %6324 = vmatpush1.bf16.msra.mxu0 %v6177
    %6325 = vmatprep.subr.bf16.mxu0 0
    %6326 = vmatpush1.bf16.msra.mxu0 %v6176
    %6327 = vmatprep.subr.bf16.mxu0 0
    %6328 = vmatpush1.bf16.msra.mxu0 %v6175
    %6329 = vmatprep.subr.bf16.mxu0 0
    %6330 = vmatpush1.bf16.msra.mxu0 %v6174
    %6331 = vmatprep.subr.bf16.mxu0 0
    %6332 = vmatpush1.bf16.msra.mxu0 %v6173
    %6333 = vmatprep.subr.bf16.mxu0 0
    %6334 = vmatpush2.bf16.msra.mxu0 %v6188
    %6335 = vmatprep.subr.bf16.mxu0 0
    %6336 = vmatpush2.bf16.msra.mxu0 %v6187
    %6337 = vmatprep.subr.bf16.mxu0 0
    %6338 = vmatpush2.bf16.msra.mxu0 %v6186
    %6339 = vmatprep.subr.bf16.mxu0 0
    %6340 = vmatpush2.bf16.msra.mxu0 %v6185
    %6341 = vmatprep.subr.bf16.mxu0 0
    %6342 = vmatpush2.bf16.msra.mxu0 %v6184
    %6343 = vmatprep.subr.bf16.mxu0 0
    %6344 = vmatpush2.bf16.msra.mxu0 %v6183
    %6345 = vmatprep.subr.bf16.mxu0 0
    %6346 = vmatpush2.bf16.msra.mxu0 %v6182
    %6347 = vmatprep.subr.bf16.mxu0 0
    %6348 = vmatpush2.bf16.msra.mxu0 %v6181
    %6349 = vmatprep.mubr.bf16.mxu0 %v5845
    %6350 = vmatmul.mubr.bf16.gmra.mxu0 %v5844
    %v6351 = vpop.f32.mrf.mxu0
    %v6352 = vadd.f32 %v6312, %v6351
    %v6353 = vpop.f32.mrf.mxu0
    %v6354 = vpop.f32.mrf.mxu0
    %v6355 = vpop.f32.mrf.mxu0
    %6356 = vdwg.mxu0
    %v6357 = vmax.f32 %v6352, 0.0
    %v6358 = vpack.c.bf16 %v6357, %v6357
    %v6359 = vld [vmem:[#allocation11] sm:$0xf]
    %v6360 = vld [vmem:[#allocation11 + $0x4] sm:$0xf]
    %v6361 = vld [vmem:[#allocation11 + $0x8] sm:$0xf]
    %v6362 = vld [vmem:[#allocation11 + $0xc] sm:$0xf]
    %v6363 = vld [vmem:[#allocation11 + $0x10] sm:$0xf]
    %v6364 = vld [vmem:[#allocation11 + $0x14] sm:$0xf]
    %v6365 = vld [vmem:[#allocation11 + $0x18] sm:$0xf]
    %v6366 = vld [vmem:[#allocation11 + $0x1c] sm:$0xf]
    %v6367 = vld [vmem:[#allocation11 + $0x20] sm:$0xf]
    %v6368 = vld [vmem:[#allocation11 + $0x24] sm:$0xf]
    %v6369 = vld [vmem:[#allocation11 + $0x28] sm:$0xf]
    %v6370 = vld [vmem:[#allocation11 + $0x2c] sm:$0xf]
    %v6371 = vld [vmem:[#allocation11 + $0x30] sm:$0xf]
    %v6372 = vld [vmem:[#allocation11 + $0x34] sm:$0xf]
    %v6373 = vld [vmem:[#allocation11 + $0x38] sm:$0xf]
    %v6374 = vld [vmem:[#allocation11 + $0x3c] sm:$0xf]
    %v6375 = vld [vmem:[#allocation13] sm:$0x1]
    %v6377 = vlaneseq
    %v6378 = vshrl.u32 %v6377, 7
    %v6379 = vsub.s32 0, %v6378
    %v6380 = vrot.slane %v6375, %v6379
    %v6398 = vunpack.c.l.b16 %v6359
    %v6399 = vunpack.c.l.b16 %v6360
    %v6400 = vunpack.c.l.b16 %v6361
    %v6401 = vunpack.c.l.b16 %v6362
    %v6402 = vunpack.c.l.b16 %v6363
    %v6403 = vunpack.c.l.b16 %v6364
    %v6404 = vunpack.c.l.b16 %v6365
    %v6405 = vunpack.c.l.b16 %v6366
    %v6406 = vunpack.c.l.b16 %v6367
    %v6407 = vunpack.c.l.b16 %v6368
    %v6408 = vunpack.c.l.b16 %v6369
    %v6409 = vunpack.c.l.b16 %v6370
    %v6410 = vunpack.c.l.b16 %v6371
    %v6411 = vunpack.c.l.b16 %v6372
    %v6412 = vunpack.c.l.b16 %v6373
    %v6413 = vunpack.c.l.b16 %v6374
    %v6414 = vpack.c.b16 %v6399, %v6398
    %v6415 = vpack.c.b16 %v6401, %v6400
    %v6416 = vpack.c.b16 %v6403, %v6402
    %v6417 = vpack.c.b16 %v6405, %v6404
    %v6418 = vpack.c.b16 %v6407, %v6406
    %v6419 = vpack.c.b16 %v6409, %v6408
    %v6420 = vpack.c.b16 %v6411, %v6410
    %v6421 = vpack.c.b16 %v6413, %v6412
    %6430 = vmatprep.subr.bf16.mxu0 0
    %6431 = vmatpush1.bf16.msra.mxu0 %v6421
    %6432 = vmatprep.subr.bf16.mxu0 0
    %6433 = vmatpush1.bf16.msra.mxu0 %v6420
    %6434 = vmatprep.subr.bf16.mxu0 0
    %6435 = vmatpush1.bf16.msra.mxu0 %v6419
    %6436 = vmatprep.subr.bf16.mxu0 0
    %6437 = vmatpush1.bf16.msra.mxu0 %v6418
    %6438 = vmatprep.subr.bf16.mxu0 0
    %6439 = vmatpush1.bf16.msra.mxu0 %v6417
    %6440 = vmatprep.subr.bf16.mxu0 0
    %6441 = vmatpush1.bf16.msra.mxu0 %v6416
    %6442 = vmatprep.subr.bf16.mxu0 0
    %6443 = vmatpush1.bf16.msra.mxu0 %v6415
    %6444 = vmatprep.subr.bf16.mxu0 0
    %6445 = vmatpush1.bf16.msra.mxu0 %v6414
    %6446 = vmatprep.subr.bf16.mxu0 0
    %6447 = vmatpush2.bf16.msra.mxu0 0
    %6448 = vmatprep.subr.bf16.mxu0 0
    %6449 = vmatpush2.bf16.msra.mxu0 0
    %6450 = vmatprep.subr.bf16.mxu0 0
    %6451 = vmatpush2.bf16.msra.mxu0 0
    %6452 = vmatprep.subr.bf16.mxu0 0
    %6453 = vmatpush2.bf16.msra.mxu0 0
    %6454 = vmatprep.subr.bf16.mxu0 0
    %6455 = vmatpush2.bf16.msra.mxu0 0
    %6456 = vmatprep.subr.bf16.mxu0 0
    %6457 = vmatpush2.bf16.msra.mxu0 0
    %6458 = vmatprep.subr.bf16.mxu0 0
    %6459 = vmatpush2.bf16.msra.mxu0 0
    %6460 = vmatprep.subr.bf16.mxu0 0
    %6461 = vmatpush2.bf16.msra.mxu0 0
    %6462 = vmatprep.mubr.bf16.mxu0 0
    %6463 = vmatmul.mubr.bf16.gmra.mxu0 %v6358
    %v6464 = vpop.f32.mrf.mxu0
    %v6465 = vadd.f32 %v6380, %v6464
    %v6466 = vpop.f32.mrf.mxu0
    %v6467 = vpop.f32.mrf.mxu0
    %v6468 = vpop.f32.mrf.mxu0
    %6469 = vdwg.mxu0
    %v6470 = vmax.f32 %v6465, 0.0
    %v6471 = vpack.c.bf16 %v6470, %v6470
    %v6472 = vld [vmem:[#allocation14] sm:$0xf]
    %v6473 = vld [vmem:[#allocation14 + $0x4] sm:$0xf]
    %v6474 = vld [vmem:[#allocation14 + $0x8] sm:$0xf]
    %v6475 = vld [vmem:[#allocation14 + $0xc] sm:$0xf]
    %v6476 = vld [vmem:[#allocation14 + $0x10] sm:$0xf]
    %v6477 = vld [vmem:[#allocation14 + $0x14] sm:$0xf]
    %v6478 = vld [vmem:[#allocation14 + $0x18] sm:$0xf]
    %v6479 = vld [vmem:[#allocation14 + $0x1c] sm:$0xf]
    %v6480 = vld [vmem:[#allocation14 + $0x20] sm:$0xf]
    %v6481 = vld [vmem:[#allocation14 + $0x24] sm:$0xf]
    %v6482 = vld [vmem:[#allocation14 + $0x28] sm:$0xf]
    %v6483 = vld [vmem:[#allocation14 + $0x2c] sm:$0xf]
    %v6484 = vld [vmem:[#allocation14 + $0x30] sm:$0xf]
    %v6485 = vld [vmem:[#allocation14 + $0x34] sm:$0xf]
    %v6486 = vld [vmem:[#allocation14 + $0x38] sm:$0xf]
    %v6487 = vld [vmem:[#allocation14 + $0x3c] sm:$0xf]
    %v6488 = vld [vmem:[#allocation16] sm:$0x1]
    %v6490 = vlaneseq
    %v6491 = vshrl.u32 %v6490, 7
    %v6492 = vsub.s32 0, %v6491
    %v6493 = vrot.slane %v6488, %v6492
    %v6511 = vunpack.c.l.b16 %v6472
    %v6512 = vunpack.c.l.b16 %v6473
    %v6513 = vunpack.c.l.b16 %v6474
    %v6514 = vunpack.c.l.b16 %v6475
    %v6515 = vunpack.c.l.b16 %v6476
    %v6516 = vunpack.c.l.b16 %v6477
    %v6517 = vunpack.c.l.b16 %v6478
    %v6518 = vunpack.c.l.b16 %v6479
    %v6519 = vunpack.c.l.b16 %v6480
    %v6520 = vunpack.c.l.b16 %v6481
    %v6521 = vunpack.c.l.b16 %v6482
    %v6522 = vunpack.c.l.b16 %v6483
    %v6523 = vunpack.c.l.b16 %v6484
    %v6524 = vunpack.c.l.b16 %v6485
    %v6525 = vunpack.c.l.b16 %v6486
    %v6526 = vunpack.c.l.b16 %v6487
    %v6527 = vpack.c.b16 %v6512, %v6511
    %v6528 = vpack.c.b16 %v6514, %v6513
    %v6529 = vpack.c.b16 %v6516, %v6515
    %v6530 = vpack.c.b16 %v6518, %v6517
    %v6531 = vpack.c.b16 %v6520, %v6519
    %v6532 = vpack.c.b16 %v6522, %v6521
    %v6533 = vpack.c.b16 %v6524, %v6523
    %v6534 = vpack.c.b16 %v6526, %v6525
    %6543 = vmatprep.subr.bf16.mxu0 0
    %6544 = vmatpush1.bf16.msra.mxu0 %v6534
    %6545 = vmatprep.subr.bf16.mxu0 0
    %6546 = vmatpush1.bf16.msra.mxu0 %v6533
    %6547 = vmatprep.subr.bf16.mxu0 0
    %6548 = vmatpush1.bf16.msra.mxu0 %v6532
    %6549 = vmatprep.subr.bf16.mxu0 0
    %6550 = vmatpush1.bf16.msra.mxu0 %v6531
    %6551 = vmatprep.subr.bf16.mxu0 0
    %6552 = vmatpush1.bf16.msra.mxu0 %v6530
    %6553 = vmatprep.subr.bf16.mxu0 0
    %6554 = vmatpush1.bf16.msra.mxu0 %v6529
    %6555 = vmatprep.subr.bf16.mxu0 0
    %6556 = vmatpush1.bf16.msra.mxu0 %v6528
    %6557 = vmatprep.subr.bf16.mxu0 0
    %6558 = vmatpush1.bf16.msra.mxu0 %v6527
    %6559 = vmatprep.subr.bf16.mxu0 0
    %6560 = vmatpush2.bf16.msra.mxu0 0
    %6561 = vmatprep.subr.bf16.mxu0 0
    %6562 = vmatpush2.bf16.msra.mxu0 0
    %6563 = vmatprep.subr.bf16.mxu0 0
    %6564 = vmatpush2.bf16.msra.mxu0 0
    %6565 = vmatprep.subr.bf16.mxu0 0
    %6566 = vmatpush2.bf16.msra.mxu0 0
    %6567 = vmatprep.subr.bf16.mxu0 0
    %6568 = vmatpush2.bf16.msra.mxu0 0
    %6569 = vmatprep.subr.bf16.mxu0 0
    %6570 = vmatpush2.bf16.msra.mxu0 0
    %6571 = vmatprep.subr.bf16.mxu0 0
    %6572 = vmatpush2.bf16.msra.mxu0 0
    %6573 = vmatprep.subr.bf16.mxu0 0
    %6574 = vmatpush2.bf16.msra.mxu0 0
    %6575 = vmatprep.mubr.bf16.mxu0 0
    %6576 = vmatmul.mubr.bf16.gmra.mxu0 %v6471
    %v6577 = vpop.f32.mrf.mxu0
    %v6578 = vadd.f32 %v6493, %v6577
    %v6579 = vpop.f32.mrf.mxu0
    %v6580 = vpop.f32.mrf.mxu0
    %v6581 = vpop.f32.mrf.mxu0
    %6582 = vdwg.mxu0
    %v6583 = vsub.f32 0.0, %v6578
    %v6584 = vmul.f32 %v6583, 1.442695
    %v6585 = vpow.pop %v6584
    %v6586 = vadd.f32 %v6585, 1.0
    %v6587 = vrcp.pop %v6586
    %6588 = vst [vmem:[#allocation17] sm:$0xff] %v6587
    // Predicated region
    $region74: #{tpu_custom_call.1} parent=1 // pred_check
      _
    $region75: #{tpu_custom_call.1} parent=1 // pred_check_branch
      %6590 = sbr.rel (0) target = $region77
    $region76: #{tpu_custom_call.1} parent=1 // pred_region
      %s6592 = ssub.s32 128, 128
      %6593 = vsyncadd [#allocation4], %s6592
      %s6595 = sshll.u32 [#allocation17], 4
      %s6596 = int_to_ptr.vmem [resolvable:$true] %s6595
      %6598 = dma.vmem_to_hbm [thread:$0]  %s6596, 128, %s9, [#allocation4]
    $region77: #{tpu_custom_call.1} parent=1 // pred_fallthru
      _
    // Predicated region
    $region78: #{tpu_custom_call.1} parent=1 // pred_check
      _
    $region79: #{tpu_custom_call.1} parent=1 // pred_check_branch
      %6600 = sbr.rel (0) target = $region81
    $region80: #{tpu_custom_call.1} parent=1 // pred_region
      %6601 = dma.done [#allocation4], 128
    $region81: #{tpu_custom_call.1} parent=1 // pred_fallthru
      _
    %6602 = vsyncpa [#allocation3], 1
    %6603 = vsyncpa [#allocation6], 1
    %6604 = vsyncpa [#allocation9], 1
    %6605 = vsyncpa [#allocation12], 1
    %6606 = vsyncpa [#allocation15], 1
    %6607 = vsyncpa [#allocation4], 1

</llo_original>
